<compile_context>
chip_gen: v7x
topology: tpu7x:2x2x1
jax: 0.10.0
libtpu: 0.0.40
codegen_flags: <defaults>
</compile_context>

<pallas_src>
import jax
import jax.numpy as jnp
from jax import lax
from jax.experimental import pallas as pl
from jax.experimental.pallas import tpu as pltpu

# Model hyperparameters (match the PyTorch module; TPU-tile friendly).
vocab_size = 128
m = 16
n_step = 8
n_hidden = 64
n_hidden_p = 128             # hidden width padded to a full 128-lane vreg
feat = n_step * m            # 128
K_ALL = n_step * vocab_size  # 1024 — contraction depth of the folded matmuls
TM = 128                     # batch rows per grid step (MXU M tile)


def nnlm_kernel(tok_ref, ch_ref, cw_ref, u_ref, d_ref, b_ref, out_ref, onehot_ref):
    """Fused NNLM forward for one block of TM sequences.

    tok_ref:    (TM, n_step) int32            token ids
    ch_ref:     (n_step*vocab, n_hidden_p)    bf16 folded C @ H (stacked per position)
    cw_ref:     (n_step*vocab, vocab)         bf16 folded C @ W
    u_ref:      (n_hidden_p, vocab)           bf16
    d_ref:      (1, n_hidden_p)               f32
    b_ref:      (1, vocab)                    f32
    out_ref:    (TM, vocab)                   f32 logits
    onehot_ref: (TM, n_step*vocab)            bf16 VMEM scratch (stacked one-hot)
    """
    tm = out_ref.shape[0]
    vocab_iota = lax.broadcasted_iota(jnp.int32, (tm, vocab_size), 1)

    # Build the stacked one-hot selector: 8 aligned 128-lane slices, each an exact
    # {0,1} row selector for one context position (exactly representable in bf16).
    for s in range(n_step):
        onehot_ref[:, s * vocab_size:(s + 1) * vocab_size] = (
            tok_ref[:, s:s + 1] == vocab_iota).astype(jnp.bfloat16)

    onehot = onehot_ref[...]                                    # (tm, 1024) bf16

    # Hidden branch: one deep K=1024 bf16 matmul, f32 accumulate, bias folded in.
    hid = jnp.dot(onehot, ch_ref[...],
                  preferred_element_type=jnp.float32) + d_ref[...]
    t = jnp.tanh(hid).astype(jnp.bfloat16)                      # (tm, n_hidden_p)

    # Direct branch + hidden projection, output bias folded into the accumulator.
    acc = jnp.dot(onehot, cw_ref[...],
                  preferred_element_type=jnp.float32) + b_ref[...]
    acc = acc + jnp.dot(t, u_ref[...], preferred_element_type=jnp.float32)
    out_ref[...] = acc.astype(out_ref.dtype)


def nnlm_forward(x_tokens, C, H, d, W, b, U):
    """x_tokens: (batch, n_step) int32 token ids -> (batch, vocab_size) f32 logits."""
    batch_in = x_tokens.shape[0]

    # Pad hidden 64 -> 128 with zeros (tanh(0)=0 and zero U rows contribute 0).
    H_p = jnp.pad(H, ((0, 0), (0, n_hidden_p - n_hidden)))
    d_p = jnp.pad(d, (0, n_hidden_p - n_hidden)).reshape(1, n_hidden_p).astype(jnp.float32)
    U_p = jnp.pad(U, ((0, n_hidden_p - n_hidden), (0, 0)))
    b2 = b.reshape(1, vocab_size).astype(jnp.float32)

    # Fold the embedding table into the weights (f32 einsum once, cast to bf16):
    #   CH_all[s*V + v, :] = C[v, :] @ H[s*m:(s+1)*m, :]
    CH_all = jnp.einsum('vm,smh->svh', C, H_p.reshape(n_step, m, n_hidden_p))
    CH_all = CH_all.reshape(K_ALL, n_hidden_p).astype(jnp.bfloat16)
    CW_all = jnp.einsum('vm,smk->svk', C, W.reshape(n_step, m, vocab_size))
    CW_all = CW_all.reshape(K_ALL, vocab_size).astype(jnp.bfloat16)
    U_b = U_p.astype(jnp.bfloat16)

    # Pad batch to a multiple of the row tile (pad rows use token 0, discarded after).
    pb = ((batch_in + TM - 1) // TM) * TM
    tok = jnp.pad(x_tokens, ((0, pb - batch_in), (0, 0)))

    out = pl.pallas_call(
        nnlm_kernel,
        out_shape=jax.ShapeDtypeStruct((pb, vocab_size), jnp.float32),
        grid=(pb // TM,),
        in_specs=[
            pl.BlockSpec((TM, n_step), lambda i: (i, 0)),              # token ids
            pl.BlockSpec((K_ALL, n_hidden_p), lambda i: (0, 0)),       # folded C@H
            pl.BlockSpec((K_ALL, vocab_size), lambda i: (0, 0)),       # folded C@W
            pl.BlockSpec((n_hidden_p, vocab_size), lambda i: (0, 0)),  # U (padded)
            pl.BlockSpec((1, n_hidden_p), lambda i: (0, 0)),           # d (padded)
            pl.BlockSpec((1, vocab_size), lambda i: (0, 0)),           # b
        ],
        out_specs=pl.BlockSpec((TM, vocab_size), lambda i: (i, 0)),
        scratch_shapes=[pltpu.VMEM((TM, K_ALL), jnp.bfloat16)],        # stacked one-hot
        compiler_params=pltpu.CompilerParams(
            dimension_semantics=("parallel",),   # batch blocks are independent
        ),
    )(tok, CH_all, CW_all, U_b, d_p, b2)
    return out[:batch_in]


def reference_forward(x_tokens, C, H, d, W, b, U):
    x = C[x_tokens].reshape(-1, n_step * m)
    t = jnp.tanh(d + x @ H)
    return b + x @ W + t @ U


if __name__ == "__main__":
    key = jax.random.PRNGKey(0)
    kC, kH, kd, kW, kb, kU, kx = jax.random.split(key, 7)

    # Deterministic "randn"-style parameter init (nn.Embedding / torch.randn shapes).
    C = jax.random.normal(kC, (vocab_size, m), dtype=jnp.float32)
    H = jax.random.normal(kH, (feat, n_hidden), dtype=jnp.float32)
    d = jax.random.normal(kd, (n_hidden,), dtype=jnp.float32)
    W = jax.random.normal(kW, (feat, vocab_size), dtype=jnp.float32)
    b = jax.random.normal(kb, (vocab_size,), dtype=jnp.float32)
    U = jax.random.normal(kU, (n_hidden, vocab_size), dtype=jnp.float32)

    batch = 512  # 4 TM=128 row blocks -> >=2 "parallel" grid steps per TensorCore on v7x
    x_tokens = jax.random.randint(kx, (batch, n_step), 0, vocab_size, dtype=jnp.int32)

    out = nnlm_forward(x_tokens, C, H, d, W, b, U)
    out = jax.block_until_ready(out)

    ref = reference_forward(x_tokens, C, H, d, W, b, U)
    assert out.shape == (batch, vocab_size), out.shape

    # MXU operands are bf16 (per perf review), so the check tolerance reflects bf16
    # weight rounding (~2^-9 relative) propagated through the K<=1024 reductions:
    # max abs error is a small fraction of a percent of the logit magnitude (~50).
    max_err = float(jnp.max(jnp.abs(out - ref)))
    ref_scale = float(jnp.max(jnp.abs(ref)))
    assert max_err <= 2e-2 * ref_scale, (max_err, ref_scale)

    print("KERNEL_OK")
</pallas_src>

<mosaic_0001>
module attributes {stable_mosaic.version = 11 : i64} {
  func.func @nnlm_kernel(%arg0: i32, %arg1: memref<128x8xi32, #tpu.memory_space<vmem>>, %arg2: memref<1024x128xbf16, #tpu.memory_space<vmem>>, %arg3: memref<1024x128xbf16, #tpu.memory_space<vmem>>, %arg4: memref<128x128xbf16, #tpu.memory_space<vmem>>, %arg5: memref<1x128xf32, #tpu.memory_space<vmem>>, %arg6: memref<1x128xf32, #tpu.memory_space<vmem>>, %arg7: memref<128x128xf32, #tpu.memory_space<vmem>>, %arg8: memref<128x1024xbf16, #tpu.memory_space<vmem>>) attributes {dimension_semantics = [#tpu.dimension_semantics<parallel>], iteration_bounds = array<i64: 4>, scalar_prefetch = 0 : i64, scratch_operands = 1 : i64, tpu.core_type = #tpu.core_type<tc>, window_params = [{transform_indices = @transform_0, window_bounds = array<i64: 128, 8>}, {pipeline_mode = #tpu.pipeline_mode<synchronous>, transform_indices = @transform_1, window_bounds = array<i64: 1024, 128>}, {pipeline_mode = #tpu.pipeline_mode<synchronous>, transform_indices = @transform_2, window_bounds = array<i64: 1024, 128>}, {pipeline_mode = #tpu.pipeline_mode<synchronous>, transform_indices = @transform_3, window_bounds = array<i64: 128, 128>}, {pipeline_mode = #tpu.pipeline_mode<synchronous>, transform_indices = @transform_4, window_bounds = array<i64: 1, 128>}, {pipeline_mode = #tpu.pipeline_mode<synchronous>, transform_indices = @transform_5, window_bounds = array<i64: 1, 128>}, {transform_indices = @transform_6, window_bounds = array<i64: 128, 128>}]} {
    %0 = tpu.iota {dimensions = array<i32: 1>} : vector<128x128xi32>
    %c0 = arith.constant 0 : index
    %c0_0 = arith.constant 0 : index
    %1 = vector.load %arg1[%c0, %c0_0] : memref<128x8xi32, #tpu.memory_space<vmem>>, vector<128x1xi32>
    %2 = vector.broadcast %1 : vector<128x1xi32> to vector<128x128xi32>
    %3 = arith.cmpi eq, %2, %0 : vector<128x128xi32>
    %4 = arith.extui %3 : vector<128x128xi1> to vector<128x128xi32>
    %5 = arith.sitofp %4 : vector<128x128xi32> to vector<128x128xf32>
    %6 = arith.truncf %5 : vector<128x128xf32> to vector<128x128xbf16>
    %c0_1 = arith.constant 0 : index
    %c0_2 = arith.constant 0 : index
    %7 = vector.load %arg8[%c0_1, %c0_2] : memref<128x1024xbf16, #tpu.memory_space<vmem>>, vector<128x128xbf16>
    tpu.vector_store %arg8[%c0_1, %c0_2], %6 {strides = array<i32>} : memref<128x1024xbf16, #tpu.memory_space<vmem>>, vector<128x128xbf16>,
    %c0_3 = arith.constant 0 : index
    %c1 = arith.constant 1 : index
    %8 = vector.load %arg1[%c0_3, %c1] : memref<128x8xi32, #tpu.memory_space<vmem>>, vector<128x1xi32>
    %9 = vector.broadcast %8 : vector<128x1xi32> to vector<128x128xi32>
    %10 = arith.cmpi eq, %9, %0 : vector<128x128xi32>
    %11 = arith.extui %10 : vector<128x128xi1> to vector<128x128xi32>
    %12 = arith.sitofp %11 : vector<128x128xi32> to vector<128x128xf32>
    %13 = arith.truncf %12 : vector<128x128xf32> to vector<128x128xbf16>
    %c0_4 = arith.constant 0 : index
    %c128 = arith.constant 128 : index
    %14 = vector.load %arg8[%c0_4, %c128] : memref<128x1024xbf16, #tpu.memory_space<vmem>>, vector<128x128xbf16>
    tpu.vector_store %arg8[%c0_4, %c128], %13 {strides = array<i32>} : memref<128x1024xbf16, #tpu.memory_space<vmem>>, vector<128x128xbf16>,
    %c0_5 = arith.constant 0 : index
    %c2 = arith.constant 2 : index
    %15 = vector.load %arg1[%c0_5, %c2] : memref<128x8xi32, #tpu.memory_space<vmem>>, vector<128x1xi32>
    %16 = vector.broadcast %15 : vector<128x1xi32> to vector<128x128xi32>
    %17 = arith.cmpi eq, %16, %0 : vector<128x128xi32>
    %18 = arith.extui %17 : vector<128x128xi1> to vector<128x128xi32>
    %19 = arith.sitofp %18 : vector<128x128xi32> to vector<128x128xf32>
    %20 = arith.truncf %19 : vector<128x128xf32> to vector<128x128xbf16>
    %c0_6 = arith.constant 0 : index
    %c256 = arith.constant 256 : index
    %21 = vector.load %arg8[%c0_6, %c256] : memref<128x1024xbf16, #tpu.memory_space<vmem>>, vector<128x128xbf16>
    tpu.vector_store %arg8[%c0_6, %c256], %20 {strides = array<i32>} : memref<128x1024xbf16, #tpu.memory_space<vmem>>, vector<128x128xbf16>,
    %c0_7 = arith.constant 0 : index
    %c3 = arith.constant 3 : index
    %22 = vector.load %arg1[%c0_7, %c3] : memref<128x8xi32, #tpu.memory_space<vmem>>, vector<128x1xi32>
    %23 = vector.broadcast %22 : vector<128x1xi32> to vector<128x128xi32>
    %24 = arith.cmpi eq, %23, %0 : vector<128x128xi32>
    %25 = arith.extui %24 : vector<128x128xi1> to vector<128x128xi32>
    %26 = arith.sitofp %25 : vector<128x128xi32> to vector<128x128xf32>
    %27 = arith.truncf %26 : vector<128x128xf32> to vector<128x128xbf16>
    %c0_8 = arith.constant 0 : index
    %c384 = arith.constant 384 : index
    %28 = vector.load %arg8[%c0_8, %c384] : memref<128x1024xbf16, #tpu.memory_space<vmem>>, vector<128x128xbf16>
    tpu.vector_store %arg8[%c0_8, %c384], %27 {strides = array<i32>} : memref<128x1024xbf16, #tpu.memory_space<vmem>>, vector<128x128xbf16>,
    %c0_9 = arith.constant 0 : index
    %c4 = arith.constant 4 : index
    %29 = vector.load %arg1[%c0_9, %c4] : memref<128x8xi32, #tpu.memory_space<vmem>>, vector<128x1xi32>
    %30 = vector.broadcast %29 : vector<128x1xi32> to vector<128x128xi32>
    %31 = arith.cmpi eq, %30, %0 : vector<128x128xi32>
    %32 = arith.extui %31 : vector<128x128xi1> to vector<128x128xi32>
    %33 = arith.sitofp %32 : vector<128x128xi32> to vector<128x128xf32>
    %34 = arith.truncf %33 : vector<128x128xf32> to vector<128x128xbf16>
    %c0_10 = arith.constant 0 : index
    %c512 = arith.constant 512 : index
    %35 = vector.load %arg8[%c0_10, %c512] : memref<128x1024xbf16, #tpu.memory_space<vmem>>, vector<128x128xbf16>
    tpu.vector_store %arg8[%c0_10, %c512], %34 {strides = array<i32>} : memref<128x1024xbf16, #tpu.memory_space<vmem>>, vector<128x128xbf16>,
    %c0_11 = arith.constant 0 : index
    %c5 = arith.constant 5 : index
    %36 = vector.load %arg1[%c0_11, %c5] : memref<128x8xi32, #tpu.memory_space<vmem>>, vector<128x1xi32>
    %37 = vector.broadcast %36 : vector<128x1xi32> to vector<128x128xi32>
    %38 = arith.cmpi eq, %37, %0 : vector<128x128xi32>
    %39 = arith.extui %38 : vector<128x128xi1> to vector<128x128xi32>
    %40 = arith.sitofp %39 : vector<128x128xi32> to vector<128x128xf32>
    %41 = arith.truncf %40 : vector<128x128xf32> to vector<128x128xbf16>
    %c0_12 = arith.constant 0 : index
    %c640 = arith.constant 640 : index
    %42 = vector.load %arg8[%c0_12, %c640] : memref<128x1024xbf16, #tpu.memory_space<vmem>>, vector<128x128xbf16>
    tpu.vector_store %arg8[%c0_12, %c640], %41 {strides = array<i32>} : memref<128x1024xbf16, #tpu.memory_space<vmem>>, vector<128x128xbf16>,
    %c0_13 = arith.constant 0 : index
    %c6 = arith.constant 6 : index
    %43 = vector.load %arg1[%c0_13, %c6] : memref<128x8xi32, #tpu.memory_space<vmem>>, vector<128x1xi32>
    %44 = vector.broadcast %43 : vector<128x1xi32> to vector<128x128xi32>
    %45 = arith.cmpi eq, %44, %0 : vector<128x128xi32>
    %46 = arith.extui %45 : vector<128x128xi1> to vector<128x128xi32>
    %47 = arith.sitofp %46 : vector<128x128xi32> to vector<128x128xf32>
    %48 = arith.truncf %47 : vector<128x128xf32> to vector<128x128xbf16>
    %c0_14 = arith.constant 0 : index
    %c768 = arith.constant 768 : index
    %49 = vector.load %arg8[%c0_14, %c768] : memref<128x1024xbf16, #tpu.memory_space<vmem>>, vector<128x128xbf16>
    tpu.vector_store %arg8[%c0_14, %c768], %48 {strides = array<i32>} : memref<128x1024xbf16, #tpu.memory_space<vmem>>, vector<128x128xbf16>,
    %c0_15 = arith.constant 0 : index
    %c7 = arith.constant 7 : index
    %50 = vector.load %arg1[%c0_15, %c7] : memref<128x8xi32, #tpu.memory_space<vmem>>, vector<128x1xi32>
    %51 = vector.broadcast %50 : vector<128x1xi32> to vector<128x128xi32>
    %52 = arith.cmpi eq, %51, %0 : vector<128x128xi32>
    %53 = arith.extui %52 : vector<128x128xi1> to vector<128x128xi32>
    %54 = arith.sitofp %53 : vector<128x128xi32> to vector<128x128xf32>
    %55 = arith.truncf %54 : vector<128x128xf32> to vector<128x128xbf16>
    %c0_16 = arith.constant 0 : index
    %c896 = arith.constant 896 : index
    %56 = vector.load %arg8[%c0_16, %c896] : memref<128x1024xbf16, #tpu.memory_space<vmem>>, vector<128x128xbf16>
    tpu.vector_store %arg8[%c0_16, %c896], %55 {strides = array<i32>} : memref<128x1024xbf16, #tpu.memory_space<vmem>>, vector<128x128xbf16>,
    %c0_17 = arith.constant 0 : index
    %c0_18 = arith.constant 0 : index
    %57 = vector.load %arg8[%c0_17, %c0_18] : memref<128x1024xbf16, #tpu.memory_space<vmem>>, vector<128x1024xbf16>
    %c0_19 = arith.constant 0 : index
    %c0_20 = arith.constant 0 : index
    %58 = vector.load %arg2[%c0_19, %c0_20] : memref<1024x128xbf16, #tpu.memory_space<vmem>>, vector<1024x128xbf16>
    %cst = arith.constant dense<0.000000e+00> : vector<128x128xf32>
    %59 = tpu.matmul %57, %58, %cst {dimension_numbers = #tpu.dot_dimension_numbers<[1], [0], [0], [1], [0, 0, 1, 1], [], []>} : vector<128x1024xbf16>, vector<1024x128xbf16>, vector<128x128xf32> -> vector<128x128xf32>
    %c0_21 = arith.constant 0 : index
    %c0_22 = arith.constant 0 : index
    %60 = vector.load %arg5[%c0_21, %c0_22] : memref<1x128xf32, #tpu.memory_space<vmem>>, vector<1x128xf32>
    %61 = vector.broadcast %60 : vector<1x128xf32> to vector<128x128xf32>
    %62 = arith.addf %59, %61 : vector<128x128xf32>
    %63 = math.tanh %62 : vector<128x128xf32>
    %64 = arith.truncf %63 : vector<128x128xf32> to vector<128x128xbf16>
    %c0_23 = arith.constant 0 : index
    %c0_24 = arith.constant 0 : index
    %65 = vector.load %arg3[%c0_23, %c0_24] : memref<1024x128xbf16, #tpu.memory_space<vmem>>, vector<1024x128xbf16>
    %cst_25 = arith.constant dense<0.000000e+00> : vector<128x128xf32>
    %66 = tpu.matmul %57, %65, %cst_25 {dimension_numbers = #tpu.dot_dimension_numbers<[1], [0], [0], [1], [0, 0, 1, 1], [], []>} : vector<128x1024xbf16>, vector<1024x128xbf16>, vector<128x128xf32> -> vector<128x128xf32>
    %c0_26 = arith.constant 0 : index
    %c0_27 = arith.constant 0 : index
    %67 = vector.load %arg6[%c0_26, %c0_27] : memref<1x128xf32, #tpu.memory_space<vmem>>, vector<1x128xf32>
    %68 = vector.broadcast %67 : vector<1x128xf32> to vector<128x128xf32>
    %69 = arith.addf %66, %68 : vector<128x128xf32>
    %c0_28 = arith.constant 0 : index
    %c0_29 = arith.constant 0 : index
    %70 = vector.load %arg4[%c0_28, %c0_29] : memref<128x128xbf16, #tpu.memory_space<vmem>>, vector<128x128xbf16>
    %cst_30 = arith.constant dense<0.000000e+00> : vector<128x128xf32>
    %71 = tpu.matmul %64, %70, %cst_30 {dimension_numbers = #tpu.dot_dimension_numbers<[1], [0], [0], [1], [0, 0, 1, 1], [], []>} : vector<128x128xbf16>, vector<128x128xbf16>, vector<128x128xf32> -> vector<128x128xf32>
    %72 = arith.addf %69, %71 : vector<128x128xf32>
    %c0_31 = arith.constant 0 : index
    %c0_32 = arith.constant 0 : index
    %73 = vector.load %arg7[%c0_31, %c0_32] : memref<128x128xf32, #tpu.memory_space<vmem>>, vector<128x128xf32>
    tpu.vector_store %arg7[%c0_31, %c0_32], %72 {strides = array<i32>} : memref<128x128xf32, #tpu.memory_space<vmem>>, vector<128x128xf32>,
    return
  }
  func.func @transform_0(%arg0: i32) -> (i32, i32) {
    %c0_i32 = arith.constant 0 : i32
    %c0_i32_0 = arith.constant 0 : i32
    return %arg0, %c0_i32 : i32, i32
  }
  func.func @transform_1(%arg0: i32) -> (i32, i32) {
    %c0_i32 = arith.constant 0 : i32
    %c0_i32_0 = arith.constant 0 : i32
    %c0_i32_1 = arith.constant 0 : i32
    return %c0_i32, %c0_i32_0 : i32, i32
  }
  func.func @transform_2(%arg0: i32) -> (i32, i32) {
    %c0_i32 = arith.constant 0 : i32
    %c0_i32_0 = arith.constant 0 : i32
    %c0_i32_1 = arith.constant 0 : i32
    return %c0_i32, %c0_i32_0 : i32, i32
  }
  func.func @transform_3(%arg0: i32) -> (i32, i32) {
    %c0_i32 = arith.constant 0 : i32
    %c0_i32_0 = arith.constant 0 : i32
    %c0_i32_1 = arith.constant 0 : i32
    return %c0_i32, %c0_i32_0 : i32, i32
  }
  func.func @transform_4(%arg0: i32) -> (i32, i32) {
    %c0_i32 = arith.constant 0 : i32
    %c0_i32_0 = arith.constant 0 : i32
    %c0_i32_1 = arith.constant 0 : i32
    return %c0_i32, %c0_i32_0 : i32, i32
  }
  func.func @transform_5(%arg0: i32) -> (i32, i32) {
    %c0_i32 = arith.constant 0 : i32
    %c0_i32_0 = arith.constant 0 : i32
    %c0_i32_1 = arith.constant 0 : i32
    return %c0_i32, %c0_i32_0 : i32, i32
  }
  func.func @transform_6(%arg0: i32) -> (i32, i32) {
    %c0_i32 = arith.constant 0 : i32
    %c0_i32_0 = arith.constant 0 : i32
    return %arg0, %c0_i32 : i32, i32
  }
}

</mosaic_0001>

<llo_original>
// kernel: tpu_custom_call.1
$region0: #{tpu_custom_call.1}
  #allocation0 [shape = 'u32[]', space=smem, size = 0x4, offset = 0x4, fixed_abs, tag = 'smem constant byte address 0x4 - core index']
  #allocation1 [shape = 'u32[144,128]{1,0:T(1,128)}', space=vmem, size = 0x12000, scoped, tag = 'internal scratch']
  #allocation2 [shape = 'bf16[128,1024]{1,0:T(16,128)(2,1)}', space=vmem, size = 0x40000, scoped, tag = 'scratch operand']
  %s0 = inlined_call_operand.vmem [shape: s32[512,8], index: 0, kind: input, shape index: {}]
  %s1 = inlined_call_operand.vmem [shape: bf16[1024,128], index: 1, kind: input, shape index: {}]
  %s2 = inlined_call_operand.hbm [shape: bf16[1024,128], index: 2, kind: input, shape index: {}]
  %s3 = inlined_call_operand.hbm [shape: bf16[128,128], index: 3, kind: input, shape index: {}]
  %s4 = inlined_call_operand.vmem [shape: f32[1,128], index: 4, kind: input, shape index: {}]
  %s5 = inlined_call_operand.vmem [shape: f32[1,128], index: 5, kind: input, shape index: {}]
  %s6 = inlined_call_operand.hbm [shape: f32[512,128], index: 6, kind: output, shape index: {}]
  %s7 = sld [smem:[#allocation0]]
  $region65: #{tpu_custom_call.1} parent=0
    _
  %s9 = ssub.s32 1, %s7
  %s10 = scalar_select 0, %s9, %s7
  $region1: #{tpu_custom_call.1} parent=0
    #allocation3 [shape = 'u8[262144]{0}', space=vmem, size = 0x40000, scoped, tag = 'input window, operand 2, single buffered']
    #allocation4 [shape = 's32[2]{0}', space=sflag, size = 0x8, scoped, tag = 'scoped memory for tpu_custom_call.1']
    #allocation5 [shape = 's32[2]{0}', space=sflag, size = 0x8, scoped, tag = 'scoped memory for tpu_custom_call.1']
    #allocation6 [shape = 'u8[32768]{0}', space=vmem, size = 0x8000, scoped, tag = 'input window, operand 3, single buffered']
    #allocation7 [shape = 's32[1]{0}', space=sflag, size = 0x4, scoped, tag = 'scoped memory for tpu_custom_call.1']
    #allocation8 [shape = 'u8[131072]{0}', space=vmem, size = 0x20000, scoped, tag = 'output window, operand 0']
    %11 = vsyncpa [#allocation4], 0
    %12 = vsyncpa [#allocation7], 0
    %13 = vsyncpa [#allocation5], 0
    %s14 = scalar_lea.sflag [#allocation5], 1
    %15 = vsyncpa %s14, 0
    loop: start=0, step=1, limit=6
    $region2: #{tpu_custom_call.1} parent=1 // loop_pre_header
      _
    $region3: #{tpu_custom_call.1} parent=1 // loop_header
      %s17 = sphi 0, %s21
      %p18 = scmp.ge.s32.totalorder %s17, 6
      %s27 = sphi 0, %s29
      %s30 = sphi 0, %s27
      %s31 = sphi 0, %s30
      %s47 = sphi 0, %s31
      %s51 = sphi 0, %s51
      %s53 = sphi 0, %s51
      %s54 = sphi 0, %s53
      %s68 = sphi 0, %s54
      %s72 = sphi 0, %s72
      %s74 = sphi 0, %s72
      %s75 = sphi 0, %s74
      %s89 = sphi 0, %s75
      %s93 = sphi 0, %s93
      %s95 = sphi 0, %s93
      %s96 = sphi 0, %s95
      %s110 = sphi 0, %s96
      %s114 = sphi 0, %s114
      %s116 = sphi 0, %s114
      %s117 = sphi 0, %s116
      %s131 = sphi 0, %s117
      %s135 = sphi 0, %s135
      %s137 = sphi 0, %s135
      %s138 = sphi 0, %s137
      %s152 = sphi 0, %s138
      %s158 = sphi 0, %s160
      %s161 = sphi 0, %s158
      %s162 = sphi 0, %s161
      %s178 = sphi 0, %s162
    $region4: #{tpu_custom_call.1} parent=1 // loop_header_branch
      %20 = sbr.rel (%p18) target = $region8
    $region5: #{tpu_custom_call.1} parent=1 // loop_body
      %s22 = ssub.s32 %s17, 1
      %s23 = ssub.s32 %s17, 2
      %s24 = sadd.s32 %s17, 1
      %s25 = ssub.s32 %s17, %s24
      %p26 = scmp.eq.s32.totalorder %s25, 0
      %s28 = sadd.s32 %s27, 1
      %s29 = scalar_select %p26, %s27, %s28
      %p32 = pneg %p26
      %p33 = scmp.eq.s32.totalorder %s17, 3
      %p34 = por %p32, %p33
      %p35 = scmp.ne.s32.totalorder %s27, %s30
      %p36 = scmp.eq.s32.totalorder %s17, 0
      %p37 = por %p35, %p36
      %p38 = scmp.ne.s32.totalorder %s27, %s30
      %p39 = scmp.eq.s32.totalorder %s22, 3
      %p40 = por %p38, %p39
      %p41 = scmp.ne.s32.totalorder %s30, %s31
      %p42 = scmp.eq.s32.totalorder %s22, 0
      %p43 = por %p41, %p42
      %p44 = scmp.ne.s32.totalorder %s30, %s31
      %p45 = scmp.eq.s32.totalorder %s23, 3
      %p46 = por %p44, %p45
      %p48 = scmp.ne.s32.totalorder %s31, %s47
      %p49 = scmp.eq.s32.totalorder %s23, 0
      %p50 = por %p48, %p49
      %s52 = sadd.s32 %s51, 1
      %p55 = scmp.eq.s32.totalorder %s17, 3
      %p56 = scmp.ne.s32.totalorder %s51, %s53
      %p57 = scmp.eq.s32.totalorder %s17, 0
      %p58 = por %p56, %p57
      %p59 = scmp.ne.s32.totalorder %s51, %s53
      %p60 = scmp.eq.s32.totalorder %s22, 3
      %p61 = por %p59, %p60
      %p62 = scmp.ne.s32.totalorder %s53, %s54
      %p63 = scmp.eq.s32.totalorder %s22, 0
      %p64 = por %p62, %p63
      %p65 = scmp.ne.s32.totalorder %s53, %s54
      %p66 = scmp.eq.s32.totalorder %s23, 3
      %p67 = por %p65, %p66
      %p69 = scmp.ne.s32.totalorder %s54, %s68
      %p70 = scmp.eq.s32.totalorder %s23, 0
      %p71 = por %p69, %p70
      %s73 = sadd.s32 %s72, 1
      %p76 = scmp.eq.s32.totalorder %s17, 3
      %p77 = scmp.ne.s32.totalorder %s72, %s74
      %p78 = scmp.eq.s32.totalorder %s17, 0
      %p79 = por %p77, %p78
      %p80 = scmp.ne.s32.totalorder %s72, %s74
      %p81 = scmp.eq.s32.totalorder %s22, 3
      %p82 = por %p80, %p81
      %p83 = scmp.ne.s32.totalorder %s74, %s75
      %p84 = scmp.eq.s32.totalorder %s22, 0
      %p85 = por %p83, %p84
      %p86 = scmp.ne.s32.totalorder %s74, %s75
      %p87 = scmp.eq.s32.totalorder %s23, 3
      %p88 = por %p86, %p87
      %p90 = scmp.ne.s32.totalorder %s75, %s89
      %p91 = scmp.eq.s32.totalorder %s23, 0
      %p92 = por %p90, %p91
      %s94 = sadd.s32 %s93, 1
      %p97 = scmp.eq.s32.totalorder %s17, 3
      %p98 = scmp.ne.s32.totalorder %s93, %s95
      %p99 = scmp.eq.s32.totalorder %s17, 0
      %p100 = por %p98, %p99
      %p101 = scmp.ne.s32.totalorder %s93, %s95
      %p102 = scmp.eq.s32.totalorder %s22, 3
      %p103 = por %p101, %p102
      %p104 = scmp.ne.s32.totalorder %s95, %s96
      %p105 = scmp.eq.s32.totalorder %s22, 0
      %p106 = por %p104, %p105
      %p107 = scmp.ne.s32.totalorder %s95, %s96
      %p108 = scmp.eq.s32.totalorder %s23, 3
      %p109 = por %p107, %p108
      %p111 = scmp.ne.s32.totalorder %s96, %s110
      %p112 = scmp.eq.s32.totalorder %s23, 0
      %p113 = por %p111, %p112
      %s115 = sadd.s32 %s114, 1
      %p118 = scmp.eq.s32.totalorder %s17, 3
      %p119 = scmp.ne.s32.totalorder %s114, %s116
      %p120 = scmp.eq.s32.totalorder %s17, 0
      %p121 = por %p119, %p120
      %p122 = scmp.ne.s32.totalorder %s114, %s116
      %p123 = scmp.eq.s32.totalorder %s22, 3
      %p124 = por %p122, %p123
      %p125 = scmp.ne.s32.totalorder %s116, %s117
      %p126 = scmp.eq.s32.totalorder %s22, 0
      %p127 = por %p125, %p126
      %p128 = scmp.ne.s32.totalorder %s116, %s117
      %p129 = scmp.eq.s32.totalorder %s23, 3
      %p130 = por %p128, %p129
      %p132 = scmp.ne.s32.totalorder %s117, %s131
      %p133 = scmp.eq.s32.totalorder %s23, 0
      %p134 = por %p132, %p133
      %s136 = sadd.s32 %s135, 1
      %p139 = scmp.eq.s32.totalorder %s17, 3
      %p140 = scmp.ne.s32.totalorder %s135, %s137
      %p141 = scmp.eq.s32.totalorder %s17, 0
      %p142 = por %p140, %p141
      %p143 = scmp.ne.s32.totalorder %s135, %s137
      %p144 = scmp.eq.s32.totalorder %s22, 3
      %p145 = por %p143, %p144
      %p146 = scmp.ne.s32.totalorder %s137, %s138
      %p147 = scmp.eq.s32.totalorder %s22, 0
      %p148 = por %p146, %p147
      %p149 = scmp.ne.s32.totalorder %s137, %s138
      %p150 = scmp.eq.s32.totalorder %s23, 3
      %p151 = por %p149, %p150
      %p153 = scmp.ne.s32.totalorder %s138, %s152
      %p154 = scmp.eq.s32.totalorder %s23, 0
      %p155 = por %p153, %p154
      %s156 = ssub.s32 %s17, %s24
      %p157 = scmp.eq.s32.totalorder %s156, 0
      %s159 = sadd.s32 %s158, 1
      %s160 = scalar_select %p157, %s158, %s159
      %p163 = pneg %p157
      %p164 = scmp.eq.s32.totalorder %s17, 3
      %p165 = por %p163, %p164
      %p166 = scmp.ne.s32.totalorder %s158, %s161
      %p167 = scmp.eq.s32.totalorder %s17, 0
      %p168 = por %p166, %p167
      %p169 = scmp.ne.s32.totalorder %s158, %s161
      %p170 = scmp.eq.s32.totalorder %s22, 3
      %p171 = por %p169, %p170
      %p172 = scmp.ne.s32.totalorder %s161, %s162
      %p173 = scmp.eq.s32.totalorder %s22, 0
      %p174 = por %p172, %p173
      %p175 = scmp.ne.s32.totalorder %s161, %s162
      %p176 = scmp.eq.s32.totalorder %s23, 3
      %p177 = por %p175, %p176
      %p179 = scmp.ne.s32.totalorder %s162, %s178
      %p180 = scmp.eq.s32.totalorder %s23, 0
      %p181 = por %p179, %p180
      %p182 = scmp.le.s32.totalorder 1, %s17
      %p183 = scmp.lt.s32.totalorder %s17, 5
      %p184 = pnand %p182, %p183
      %p185 = pneg %p184
      // Predicated region
      $region9: #{tpu_custom_call.1} parent=5 // pred_check
        _
      $region10: #{tpu_custom_call.1} parent=5 // pred_check_branch
        %187 = sbr.rel (%p184) target = $region12
      $region11: #{tpu_custom_call.1} parent=5 // pred_region
        %s188 = ssub.s32 %s17, 1
        // Predicated region
        $region13: #{tpu_custom_call.1} parent=11 // pred_check
          %p189 = pneg %p64
        $region14: #{tpu_custom_call.1} parent=11 // pred_check_branch
          %191 = sbr.rel (%p189) target = $region16
        $region15: #{tpu_custom_call.1} parent=11 // pred_region
          _
        $region16: #{tpu_custom_call.1} parent=11 // pred_fallthru
          _
        // Predicated region
        $region17: #{tpu_custom_call.1} parent=11 // pred_check
          %p192 = pneg %p85
        $region18: #{tpu_custom_call.1} parent=11 // pred_check_branch
          %194 = sbr.rel (%p192) target = $region20
        $region19: #{tpu_custom_call.1} parent=11 // pred_region
          %s196 = ssub.s32 8192, 8192
          %197 = vsyncadd [#allocation4], %s196
          %s198 = sshll.u32 [#allocation3], 4
          %s199 = int_to_ptr.vmem [resolvable:$true] %s198
          %204 = dma.hbm_to_vmem [thread:$0]  %s2, 8192, %s199, [#allocation4], 64, 64, 4
        $region20: #{tpu_custom_call.1} parent=11 // pred_fallthru
          _
        // Predicated region
        $region21: #{tpu_custom_call.1} parent=11 // pred_check
          %p205 = pneg %p106
        $region22: #{tpu_custom_call.1} parent=11 // pred_check_branch
          %207 = sbr.rel (%p205) target = $region24
        $region23: #{tpu_custom_call.1} parent=11 // pred_region
          %s209 = ssub.s32 1024, 1024
          %210 = vsyncadd [#allocation7], %s209
          %s211 = sshll.u32 [#allocation6], 4
          %s212 = int_to_ptr.vmem [resolvable:$true] %s211
          %217 = dma.hbm_to_vmem [thread:$0]  %s3, 1024, %s212, [#allocation7], 64, 64, 4
        $region24: #{tpu_custom_call.1} parent=11 // pred_fallthru
          _
        // Predicated region
        $region25: #{tpu_custom_call.1} parent=11 // pred_check
          %p218 = pneg %p127
        $region26: #{tpu_custom_call.1} parent=11 // pred_check_branch
          %220 = sbr.rel (%p218) target = $region28
        $region27: #{tpu_custom_call.1} parent=11 // pred_region
          _
        $region28: #{tpu_custom_call.1} parent=11 // pred_fallthru
          _
        // Predicated region
        $region29: #{tpu_custom_call.1} parent=11 // pred_check
          %p221 = pneg %p148
        $region30: #{tpu_custom_call.1} parent=11 // pred_check_branch
          %223 = sbr.rel (%p221) target = $region32
        $region31: #{tpu_custom_call.1} parent=11 // pred_region
          _
        $region32: #{tpu_custom_call.1} parent=11 // pred_fallthru
          _
      $region12: #{tpu_custom_call.1} parent=5 // pred_fallthru
        _
      %p224 = scmp.lt.s32.totalorder %s17, 4
      // Predicated region
      $region33: #{tpu_custom_call.1} parent=5 // pred_check
        %p225 = pneg %p224
      $region34: #{tpu_custom_call.1} parent=5 // pred_check_branch
        %227 = sbr.rel (%p225) target = $region36
      $region35: #{tpu_custom_call.1} parent=5 // pred_region
        // Predicated region
        $region37: #{tpu_custom_call.1} parent=35 // pred_check
          %p228 = pneg %p37
        $region38: #{tpu_custom_call.1} parent=35 // pred_check_branch
          %230 = sbr.rel (%p228) target = $region40
        $region39: #{tpu_custom_call.1} parent=35 // pred_region
          %s231 = smul.u32 16, %s17
          %p232 = scmp.lt.s32.totalorder %s231, 63
          %s233 = scalar_select %p232, %s231, 63
          %s234 = smul.addr %s233, 8
          %s235 = scalar_lea.vmem %s0, %s234
          %s236 = smul.u32 16, %s17
        $region40: #{tpu_custom_call.1} parent=35 // pred_fallthru
          _
      $region36: #{tpu_custom_call.1} parent=5 // pred_fallthru
        _
      %p237 = scmp.le.s32.totalorder 1, %s17
      %p238 = scmp.lt.s32.totalorder %s17, 5
      %p239 = pnand %p237, %p238
      %p240 = pneg %p239
      // Predicated region
      $region41: #{tpu_custom_call.1} parent=5 // pred_check
        _
      $region42: #{tpu_custom_call.1} parent=5 // pred_check_branch
        %242 = sbr.rel (%p239) target = $region44
      $region43: #{tpu_custom_call.1} parent=5 // pred_region
        %s243 = ssub.s32 %s17, 1
        // Predicated region
        $region45: #{tpu_custom_call.1} parent=43 // pred_check
          %p244 = pneg %p85
        $region46: #{tpu_custom_call.1} parent=43 // pred_check_branch
          %246 = sbr.rel (%p244) target = $region48
        $region47: #{tpu_custom_call.1} parent=43 // pred_region
          %247 = dma.done [#allocation4], 8192
        $region48: #{tpu_custom_call.1} parent=43 // pred_fallthru
          _
        // Predicated region
        $region49: #{tpu_custom_call.1} parent=43 // pred_check
          %p248 = pneg %p106
        $region50: #{tpu_custom_call.1} parent=43 // pred_check_branch
          %250 = sbr.rel (%p248) target = $region52
        $region51: #{tpu_custom_call.1} parent=43 // pred_region
          %251 = dma.done [#allocation7], 1024
        $region52: #{tpu_custom_call.1} parent=43 // pred_fallthru
          _
        %s252 = smul.u32 16, %s22
        %p253 = scmp.lt.s32.totalorder %s252, 63
        %s254 = scalar_select %p253, %s252, 63
        %s255 = smul.addr %s254, 8
        %s256 = scalar_lea.vmem %s0, %s255
        %p257 = pneg %p43
        %p258 = pneg %p40
        %p259 = pneg %p64
        %p260 = pneg %p61
        %p261 = pneg %p85
        %p262 = pneg %p82
        %p263 = pneg %p106
        %p264 = pneg %p103
        %p265 = pneg %p127
        %p266 = pneg %p124
        %p267 = pneg %p148
        %p268 = pneg %p145
        %p269 = pneg %p174
        %p270 = pneg %p171
        %s271 = sand.u32 %s161, 1
        %s272 = scalar_lea.sflag [#allocation5], %s271
        %s273 = sand.u32 %s161, 1
        %s274 = smul.addr %s273, 128
        %s275 = scalar_lea.vmem [#allocation8], %s274
        %s276 = smul.u32 16, %s22
        %p277 = scmp.lt.s32.totalorder %s276, 63
        %s278 = scalar_select %p277, %s276, 63
        %s279 = smul.addr %s278, 8
        %s280 = scalar_lea.vmem %s0, %s279
        %s281 = smul.u32 16, %s22
        %s282 = smul.u32 16, %s22
        %v284 = vlaneseq
        %v285 = vand.u32 %v284, 127
        %v286 = vld [vmem:[%s280] sm:$0xff]
        %v287 = vld [vmem:[%s280 + $0x8] sm:$0xff]
        %v288 = vld [vmem:[%s280 + $0x10] sm:$0xff]
        %v289 = vld [vmem:[%s280 + $0x18] sm:$0xff]
        %v290 = vld [vmem:[%s280 + $0x20] sm:$0xff]
        %v291 = vld [vmem:[%s280 + $0x28] sm:$0xff]
        %v292 = vld [vmem:[%s280 + $0x30] sm:$0xff]
        %v293 = vld [vmem:[%s280 + $0x38] sm:$0xff]
        %v294 = vld [vmem:[%s280 + $0x40] sm:$0xff]
        %v295 = vld [vmem:[%s280 + $0x48] sm:$0xff]
        %v296 = vld [vmem:[%s280 + $0x50] sm:$0xff]
        %v297 = vld [vmem:[%s280 + $0x58] sm:$0xff]
        %v298 = vld [vmem:[%s280 + $0x60] sm:$0xff]
        %v299 = vld [vmem:[%s280 + $0x68] sm:$0xff]
        %v300 = vld [vmem:[%s280 + $0x70] sm:$0xff]
        %v301 = vld [vmem:[%s280 + $0x78] sm:$0xff]
        %302 = vset.pattern.permute.xlu0 0
        %303 = vperm.xlu0 %302, %v286
        %v304 = vpop.permute.xlu0 %303
        %305 = vset.pattern.permute.xlu0 0
        %306 = vperm.xlu0 %305, %v287
        %v307 = vpop.permute.xlu0 %306
        %308 = vset.pattern.permute.xlu0 0
        %309 = vperm.xlu0 %308, %v288
        %v310 = vpop.permute.xlu0 %309
        %311 = vset.pattern.permute.xlu0 0
        %312 = vperm.xlu0 %311, %v289
        %v313 = vpop.permute.xlu0 %312
        %314 = vset.pattern.permute.xlu0 0
        %315 = vperm.xlu0 %314, %v290
        %v316 = vpop.permute.xlu0 %315
        %317 = vset.pattern.permute.xlu0 0
        %318 = vperm.xlu0 %317, %v291
        %v319 = vpop.permute.xlu0 %318
        %320 = vset.pattern.permute.xlu0 0
        %321 = vperm.xlu0 %320, %v292
        %v322 = vpop.permute.xlu0 %321
        %323 = vset.pattern.permute.xlu0 0
        %324 = vperm.xlu0 %323, %v293
        %v325 = vpop.permute.xlu0 %324
        %326 = vset.pattern.permute.xlu0 0
        %327 = vperm.xlu0 %326, %v294
        %v328 = vpop.permute.xlu0 %327
        %329 = vset.pattern.permute.xlu0 0
        %330 = vperm.xlu0 %329, %v295
        %v331 = vpop.permute.xlu0 %330
        %332 = vset.pattern.permute.xlu0 0
        %333 = vperm.xlu0 %332, %v296
        %v334 = vpop.permute.xlu0 %333
        %335 = vset.pattern.permute.xlu0 0
        %336 = vperm.xlu0 %335, %v297
        %v337 = vpop.permute.xlu0 %336
        %338 = vset.pattern.permute.xlu0 0
        %339 = vperm.xlu0 %338, %v298
        %v340 = vpop.permute.xlu0 %339
        %341 = vset.pattern.permute.xlu0 0
        %342 = vperm.xlu0 %341, %v299
        %v343 = vpop.permute.xlu0 %342
        %344 = vset.pattern.permute.xlu0 0
        %345 = vperm.xlu0 %344, %v300
        %v346 = vpop.permute.xlu0 %345
        %347 = vset.pattern.permute.xlu0 0
        %348 = vperm.xlu0 %347, %v301
        %v349 = vpop.permute.xlu0 %348
        %vm350 = vcmp.eq.s32.totalorder %v304, %v285
        %vm351 = vcmp.eq.s32.totalorder %v307, %v285
        %vm352 = vcmp.eq.s32.totalorder %v310, %v285
        %vm353 = vcmp.eq.s32.totalorder %v313, %v285
        %vm354 = vcmp.eq.s32.totalorder %v316, %v285
        %vm355 = vcmp.eq.s32.totalorder %v319, %v285
        %vm356 = vcmp.eq.s32.totalorder %v322, %v285
        %vm357 = vcmp.eq.s32.totalorder %v325, %v285
        %vm358 = vcmp.eq.s32.totalorder %v328, %v285
        %vm359 = vcmp.eq.s32.totalorder %v331, %v285
        %vm360 = vcmp.eq.s32.totalorder %v334, %v285
        %vm361 = vcmp.eq.s32.totalorder %v337, %v285
        %vm362 = vcmp.eq.s32.totalorder %v340, %v285
        %vm363 = vcmp.eq.s32.totalorder %v343, %v285
        %vm364 = vcmp.eq.s32.totalorder %v346, %v285
        %vm365 = vcmp.eq.s32.totalorder %v349, %v285
        %v366 = vsel %vm350, 1, 0
        %v367 = vsel %vm351, 1, 0
        %v368 = vsel %vm352, 1, 0
        %v369 = vsel %vm353, 1, 0
        %v370 = vsel %vm354, 1, 0
        %v371 = vsel %vm355, 1, 0
        %v372 = vsel %vm356, 1, 0
        %v373 = vsel %vm357, 1, 0
        %v374 = vsel %vm358, 1, 0
        %v375 = vsel %vm359, 1, 0
        %v376 = vsel %vm360, 1, 0
        %v377 = vsel %vm361, 1, 0
        %v378 = vsel %vm362, 1, 0
        %v379 = vsel %vm363, 1, 0
        %v380 = vsel %vm364, 1, 0
        %v381 = vsel %vm365, 1, 0
        %v382 = vcvt.s32.f32 %v366
        %v383 = vcvt.s32.f32 %v367
        %v384 = vcvt.s32.f32 %v368
        %v385 = vcvt.s32.f32 %v369
        %v386 = vcvt.s32.f32 %v370
        %v387 = vcvt.s32.f32 %v371
        %v388 = vcvt.s32.f32 %v372
        %v389 = vcvt.s32.f32 %v373
        %v390 = vcvt.s32.f32 %v374
        %v391 = vcvt.s32.f32 %v375
        %v392 = vcvt.s32.f32 %v376
        %v393 = vcvt.s32.f32 %v377
        %v394 = vcvt.s32.f32 %v378
        %v395 = vcvt.s32.f32 %v379
        %v396 = vcvt.s32.f32 %v380
        %v397 = vcvt.s32.f32 %v381
        %v398 = vpack.c.bf16 %v383, %v382
        %v399 = vpack.c.bf16 %v385, %v384
        %v400 = vpack.c.bf16 %v387, %v386
        %v401 = vpack.c.bf16 %v389, %v388
        %v402 = vpack.c.bf16 %v391, %v390
        %v403 = vpack.c.bf16 %v393, %v392
        %v404 = vpack.c.bf16 %v395, %v394
        %v405 = vpack.c.bf16 %v397, %v396
        %406 = vst [vmem:[#allocation2] sm:$0xff] %v398
        %407 = vst [vmem:[#allocation2 + $0x40] sm:$0xff] %v399
        %408 = vst [vmem:[#allocation2 + $0x80] sm:$0xff] %v400
        %409 = vst [vmem:[#allocation2 + $0xc0] sm:$0xff] %v401
        %410 = vst [vmem:[#allocation2 + $0x100] sm:$0xff] %v402
        %411 = vst [vmem:[#allocation2 + $0x140] sm:$0xff] %v403
        %412 = vst [vmem:[#allocation2 + $0x180] sm:$0xff] %v404
        %413 = vst [vmem:[#allocation2 + $0x1c0] sm:$0xff] %v405
        %v414 = vld [vmem:[%s280] sm:$0xff]
        %v415 = vld [vmem:[%s280 + $0x8] sm:$0xff]
        %v416 = vld [vmem:[%s280 + $0x10] sm:$0xff]
        %v417 = vld [vmem:[%s280 + $0x18] sm:$0xff]
        %v418 = vld [vmem:[%s280 + $0x20] sm:$0xff]
        %v419 = vld [vmem:[%s280 + $0x28] sm:$0xff]
        %v420 = vld [vmem:[%s280 + $0x30] sm:$0xff]
        %v421 = vld [vmem:[%s280 + $0x38] sm:$0xff]
        %v422 = vld [vmem:[%s280 + $0x40] sm:$0xff]
        %v423 = vld [vmem:[%s280 + $0x48] sm:$0xff]
        %v424 = vld [vmem:[%s280 + $0x50] sm:$0xff]
        %v425 = vld [vmem:[%s280 + $0x58] sm:$0xff]
        %v426 = vld [vmem:[%s280 + $0x60] sm:$0xff]
        %v427 = vld [vmem:[%s280 + $0x68] sm:$0xff]
        %v428 = vld [vmem:[%s280 + $0x70] sm:$0xff]
        %v429 = vld [vmem:[%s280 + $0x78] sm:$0xff]
        %430 = vset.pattern.permute.xlu0 1
        %431 = vperm.xlu0 %430, %v414
        %v432 = vpop.permute.xlu0 %431
        %433 = vset.pattern.permute.xlu0 1
        %434 = vperm.xlu0 %433, %v415
        %v435 = vpop.permute.xlu0 %434
        %436 = vset.pattern.permute.xlu0 1
        %437 = vperm.xlu0 %436, %v416
        %v438 = vpop.permute.xlu0 %437
        %439 = vset.pattern.permute.xlu0 1
        %440 = vperm.xlu0 %439, %v417
        %v441 = vpop.permute.xlu0 %440
        %442 = vset.pattern.permute.xlu0 1
        %443 = vperm.xlu0 %442, %v418
        %v444 = vpop.permute.xlu0 %443
        %445 = vset.pattern.permute.xlu0 1
        %446 = vperm.xlu0 %445, %v419
        %v447 = vpop.permute.xlu0 %446
        %448 = vset.pattern.permute.xlu0 1
        %449 = vperm.xlu0 %448, %v420
        %v450 = vpop.permute.xlu0 %449
        %451 = vset.pattern.permute.xlu0 1
        %452 = vperm.xlu0 %451, %v421
        %v453 = vpop.permute.xlu0 %452
        %454 = vset.pattern.permute.xlu0 1
        %455 = vperm.xlu0 %454, %v422
        %v456 = vpop.permute.xlu0 %455
        %457 = vset.pattern.permute.xlu0 1
        %458 = vperm.xlu0 %457, %v423
        %v459 = vpop.permute.xlu0 %458
        %460 = vset.pattern.permute.xlu0 1
        %461 = vperm.xlu0 %460, %v424
        %v462 = vpop.permute.xlu0 %461
        %463 = vset.pattern.permute.xlu0 1
        %464 = vperm.xlu0 %463, %v425
        %v465 = vpop.permute.xlu0 %464
        %466 = vset.pattern.permute.xlu0 1
        %467 = vperm.xlu0 %466, %v426
        %v468 = vpop.permute.xlu0 %467
        %469 = vset.pattern.permute.xlu0 1
        %470 = vperm.xlu0 %469, %v427
        %v471 = vpop.permute.xlu0 %470
        %472 = vset.pattern.permute.xlu0 1
        %473 = vperm.xlu0 %472, %v428
        %v474 = vpop.permute.xlu0 %473
        %475 = vset.pattern.permute.xlu0 1
        %476 = vperm.xlu0 %475, %v429
        %v477 = vpop.permute.xlu0 %476
        %vm478 = vcmp.eq.s32.totalorder %v432, %v285
        %vm479 = vcmp.eq.s32.totalorder %v435, %v285
        %vm480 = vcmp.eq.s32.totalorder %v438, %v285
        %vm481 = vcmp.eq.s32.totalorder %v441, %v285
        %vm482 = vcmp.eq.s32.totalorder %v444, %v285
        %vm483 = vcmp.eq.s32.totalorder %v447, %v285
        %vm484 = vcmp.eq.s32.totalorder %v450, %v285
        %vm485 = vcmp.eq.s32.totalorder %v453, %v285
        %vm486 = vcmp.eq.s32.totalorder %v456, %v285
        %vm487 = vcmp.eq.s32.totalorder %v459, %v285
        %vm488 = vcmp.eq.s32.totalorder %v462, %v285
        %vm489 = vcmp.eq.s32.totalorder %v465, %v285
        %vm490 = vcmp.eq.s32.totalorder %v468, %v285
        %vm491 = vcmp.eq.s32.totalorder %v471, %v285
        %vm492 = vcmp.eq.s32.totalorder %v474, %v285
        %vm493 = vcmp.eq.s32.totalorder %v477, %v285
        %v494 = vsel %vm478, 1, 0
        %v495 = vsel %vm479, 1, 0
        %v496 = vsel %vm480, 1, 0
        %v497 = vsel %vm481, 1, 0
        %v498 = vsel %vm482, 1, 0
        %v499 = vsel %vm483, 1, 0
        %v500 = vsel %vm484, 1, 0
        %v501 = vsel %vm485, 1, 0
        %v502 = vsel %vm486, 1, 0
        %v503 = vsel %vm487, 1, 0
        %v504 = vsel %vm488, 1, 0
        %v505 = vsel %vm489, 1, 0
        %v506 = vsel %vm490, 1, 0
        %v507 = vsel %vm491, 1, 0
        %v508 = vsel %vm492, 1, 0
        %v509 = vsel %vm493, 1, 0
        %v510 = vcvt.s32.f32 %v494
        %v511 = vcvt.s32.f32 %v495
        %v512 = vcvt.s32.f32 %v496
        %v513 = vcvt.s32.f32 %v497
        %v514 = vcvt.s32.f32 %v498
        %v515 = vcvt.s32.f32 %v499
        %v516 = vcvt.s32.f32 %v500
        %v517 = vcvt.s32.f32 %v501
        %v518 = vcvt.s32.f32 %v502
        %v519 = vcvt.s32.f32 %v503
        %v520 = vcvt.s32.f32 %v504
        %v521 = vcvt.s32.f32 %v505
        %v522 = vcvt.s32.f32 %v506
        %v523 = vcvt.s32.f32 %v507
        %v524 = vcvt.s32.f32 %v508
        %v525 = vcvt.s32.f32 %v509
        %v526 = vpack.c.bf16 %v511, %v510
        %v527 = vpack.c.bf16 %v513, %v512
        %v528 = vpack.c.bf16 %v515, %v514
        %v529 = vpack.c.bf16 %v517, %v516
        %v530 = vpack.c.bf16 %v519, %v518
        %v531 = vpack.c.bf16 %v521, %v520
        %v532 = vpack.c.bf16 %v523, %v522
        %v533 = vpack.c.bf16 %v525, %v524
        %534 = vst [vmem:[#allocation2 + $0x8] sm:$0xff] %v526
        %535 = vst [vmem:[#allocation2 + $0x48] sm:$0xff] %v527
        %536 = vst [vmem:[#allocation2 + $0x88] sm:$0xff] %v528
        %537 = vst [vmem:[#allocation2 + $0xc8] sm:$0xff] %v529
        %538 = vst [vmem:[#allocation2 + $0x108] sm:$0xff] %v530
        %539 = vst [vmem:[#allocation2 + $0x148] sm:$0xff] %v531
        %540 = vst [vmem:[#allocation2 + $0x188] sm:$0xff] %v532
        %541 = vst [vmem:[#allocation2 + $0x1c8] sm:$0xff] %v533
        %v542 = vld [vmem:[%s280] sm:$0xff]
        %v543 = vld [vmem:[%s280 + $0x8] sm:$0xff]
        %v544 = vld [vmem:[%s280 + $0x10] sm:$0xff]
        %v545 = vld [vmem:[%s280 + $0x18] sm:$0xff]
        %v546 = vld [vmem:[%s280 + $0x20] sm:$0xff]
        %v547 = vld [vmem:[%s280 + $0x28] sm:$0xff]
        %v548 = vld [vmem:[%s280 + $0x30] sm:$0xff]
        %v549 = vld [vmem:[%s280 + $0x38] sm:$0xff]
        %v550 = vld [vmem:[%s280 + $0x40] sm:$0xff]
        %v551 = vld [vmem:[%s280 + $0x48] sm:$0xff]
        %v552 = vld [vmem:[%s280 + $0x50] sm:$0xff]
        %v553 = vld [vmem:[%s280 + $0x58] sm:$0xff]
        %v554 = vld [vmem:[%s280 + $0x60] sm:$0xff]
        %v555 = vld [vmem:[%s280 + $0x68] sm:$0xff]
        %v556 = vld [vmem:[%s280 + $0x70] sm:$0xff]
        %v557 = vld [vmem:[%s280 + $0x78] sm:$0xff]
        %558 = vset.pattern.permute.xlu0 2
        %559 = vperm.xlu0 %558, %v542
        %v560 = vpop.permute.xlu0 %559
        %561 = vset.pattern.permute.xlu0 2
        %562 = vperm.xlu0 %561, %v543
        %v563 = vpop.permute.xlu0 %562
        %564 = vset.pattern.permute.xlu0 2
        %565 = vperm.xlu0 %564, %v544
        %v566 = vpop.permute.xlu0 %565
        %567 = vset.pattern.permute.xlu0 2
        %568 = vperm.xlu0 %567, %v545
        %v569 = vpop.permute.xlu0 %568
        %570 = vset.pattern.permute.xlu0 2
        %571 = vperm.xlu0 %570, %v546
        %v572 = vpop.permute.xlu0 %571
        %573 = vset.pattern.permute.xlu0 2
        %574 = vperm.xlu0 %573, %v547
        %v575 = vpop.permute.xlu0 %574
        %576 = vset.pattern.permute.xlu0 2
        %577 = vperm.xlu0 %576, %v548
        %v578 = vpop.permute.xlu0 %577
        %579 = vset.pattern.permute.xlu0 2
        %580 = vperm.xlu0 %579, %v549
        %v581 = vpop.permute.xlu0 %580
        %582 = vset.pattern.permute.xlu0 2
        %583 = vperm.xlu0 %582, %v550
        %v584 = vpop.permute.xlu0 %583
        %585 = vset.pattern.permute.xlu0 2
        %586 = vperm.xlu0 %585, %v551
        %v587 = vpop.permute.xlu0 %586
        %588 = vset.pattern.permute.xlu0 2
        %589 = vperm.xlu0 %588, %v552
        %v590 = vpop.permute.xlu0 %589
        %591 = vset.pattern.permute.xlu0 2
        %592 = vperm.xlu0 %591, %v553
        %v593 = vpop.permute.xlu0 %592
        %594 = vset.pattern.permute.xlu0 2
        %595 = vperm.xlu0 %594, %v554
        %v596 = vpop.permute.xlu0 %595
        %597 = vset.pattern.permute.xlu0 2
        %598 = vperm.xlu0 %597, %v555
        %v599 = vpop.permute.xlu0 %598
        %600 = vset.pattern.permute.xlu0 2
        %601 = vperm.xlu0 %600, %v556
        %v602 = vpop.permute.xlu0 %601
        %603 = vset.pattern.permute.xlu0 2
        %604 = vperm.xlu0 %603, %v557
        %v605 = vpop.permute.xlu0 %604
        %vm606 = vcmp.eq.s32.totalorder %v560, %v285
        %vm607 = vcmp.eq.s32.totalorder %v563, %v285
        %vm608 = vcmp.eq.s32.totalorder %v566, %v285
        %vm609 = vcmp.eq.s32.totalorder %v569, %v285
        %vm610 = vcmp.eq.s32.totalorder %v572, %v285
        %vm611 = vcmp.eq.s32.totalorder %v575, %v285
        %vm612 = vcmp.eq.s32.totalorder %v578, %v285
        %vm613 = vcmp.eq.s32.totalorder %v581, %v285
        %vm614 = vcmp.eq.s32.totalorder %v584, %v285
        %vm615 = vcmp.eq.s32.totalorder %v587, %v285
        %vm616 = vcmp.eq.s32.totalorder %v590, %v285
        %vm617 = vcmp.eq.s32.totalorder %v593, %v285
        %vm618 = vcmp.eq.s32.totalorder %v596, %v285
        %vm619 = vcmp.eq.s32.totalorder %v599, %v285
        %vm620 = vcmp.eq.s32.totalorder %v602, %v285
        %vm621 = vcmp.eq.s32.totalorder %v605, %v285
        %v622 = vsel %vm606, 1, 0
        %v623 = vsel %vm607, 1, 0
        %v624 = vsel %vm608, 1, 0
        %v625 = vsel %vm609, 1, 0
        %v626 = vsel %vm610, 1, 0
        %v627 = vsel %vm611, 1, 0
        %v628 = vsel %vm612, 1, 0
        %v629 = vsel %vm613, 1, 0
        %v630 = vsel %vm614, 1, 0
        %v631 = vsel %vm615, 1, 0
        %v632 = vsel %vm616, 1, 0
        %v633 = vsel %vm617, 1, 0
        %v634 = vsel %vm618, 1, 0
        %v635 = vsel %vm619, 1, 0
        %v636 = vsel %vm620, 1, 0
        %v637 = vsel %vm621, 1, 0
        %v638 = vcvt.s32.f32 %v622
        %v639 = vcvt.s32.f32 %v623
        %v640 = vcvt.s32.f32 %v624
        %v641 = vcvt.s32.f32 %v625
        %v642 = vcvt.s32.f32 %v626
        %v643 = vcvt.s32.f32 %v627
        %v644 = vcvt.s32.f32 %v628
        %v645 = vcvt.s32.f32 %v629
        %v646 = vcvt.s32.f32 %v630
        %v647 = vcvt.s32.f32 %v631
        %v648 = vcvt.s32.f32 %v632
        %v649 = vcvt.s32.f32 %v633
        %v650 = vcvt.s32.f32 %v634
        %v651 = vcvt.s32.f32 %v635
        %v652 = vcvt.s32.f32 %v636
        %v653 = vcvt.s32.f32 %v637
        %v654 = vpack.c.bf16 %v639, %v638
        %v655 = vpack.c.bf16 %v641, %v640
        %v656 = vpack.c.bf16 %v643, %v642
        %v657 = vpack.c.bf16 %v645, %v644
        %v658 = vpack.c.bf16 %v647, %v646
        %v659 = vpack.c.bf16 %v649, %v648
        %v660 = vpack.c.bf16 %v651, %v650
        %v661 = vpack.c.bf16 %v653, %v652
        %662 = vst [vmem:[#allocation2 + $0x10] sm:$0xff] %v654
        %663 = vst [vmem:[#allocation2 + $0x50] sm:$0xff] %v655
        %664 = vst [vmem:[#allocation2 + $0x90] sm:$0xff] %v656
        %665 = vst [vmem:[#allocation2 + $0xd0] sm:$0xff] %v657
        %666 = vst [vmem:[#allocation2 + $0x110] sm:$0xff] %v658
        %667 = vst [vmem:[#allocation2 + $0x150] sm:$0xff] %v659
        %668 = vst [vmem:[#allocation2 + $0x190] sm:$0xff] %v660
        %669 = vst [vmem:[#allocation2 + $0x1d0] sm:$0xff] %v661
        %v670 = vld [vmem:[%s280] sm:$0xff]
        %v671 = vld [vmem:[%s280 + $0x8] sm:$0xff]
        %v672 = vld [vmem:[%s280 + $0x10] sm:$0xff]
        %v673 = vld [vmem:[%s280 + $0x18] sm:$0xff]
        %v674 = vld [vmem:[%s280 + $0x20] sm:$0xff]
        %v675 = vld [vmem:[%s280 + $0x28] sm:$0xff]
        %v676 = vld [vmem:[%s280 + $0x30] sm:$0xff]
        %v677 = vld [vmem:[%s280 + $0x38] sm:$0xff]
        %v678 = vld [vmem:[%s280 + $0x40] sm:$0xff]
        %v679 = vld [vmem:[%s280 + $0x48] sm:$0xff]
        %v680 = vld [vmem:[%s280 + $0x50] sm:$0xff]
        %v681 = vld [vmem:[%s280 + $0x58] sm:$0xff]
        %v682 = vld [vmem:[%s280 + $0x60] sm:$0xff]
        %v683 = vld [vmem:[%s280 + $0x68] sm:$0xff]
        %v684 = vld [vmem:[%s280 + $0x70] sm:$0xff]
        %v685 = vld [vmem:[%s280 + $0x78] sm:$0xff]
        %686 = vset.pattern.permute.xlu0 3
        %687 = vperm.xlu0 %686, %v670
        %v688 = vpop.permute.xlu0 %687
        %689 = vset.pattern.permute.xlu0 3
        %690 = vperm.xlu0 %689, %v671
        %v691 = vpop.permute.xlu0 %690
        %692 = vset.pattern.permute.xlu0 3
        %693 = vperm.xlu0 %692, %v672
        %v694 = vpop.permute.xlu0 %693
        %695 = vset.pattern.permute.xlu0 3
        %696 = vperm.xlu0 %695, %v673
        %v697 = vpop.permute.xlu0 %696
        %698 = vset.pattern.permute.xlu0 3
        %699 = vperm.xlu0 %698, %v674
        %v700 = vpop.permute.xlu0 %699
        %701 = vset.pattern.permute.xlu0 3
        %702 = vperm.xlu0 %701, %v675
        %v703 = vpop.permute.xlu0 %702
        %704 = vset.pattern.permute.xlu0 3
        %705 = vperm.xlu0 %704, %v676
        %v706 = vpop.permute.xlu0 %705
        %707 = vset.pattern.permute.xlu0 3
        %708 = vperm.xlu0 %707, %v677
        %v709 = vpop.permute.xlu0 %708
        %710 = vset.pattern.permute.xlu0 3
        %711 = vperm.xlu0 %710, %v678
        %v712 = vpop.permute.xlu0 %711
        %713 = vset.pattern.permute.xlu0 3
        %714 = vperm.xlu0 %713, %v679
        %v715 = vpop.permute.xlu0 %714
        %716 = vset.pattern.permute.xlu0 3
        %717 = vperm.xlu0 %716, %v680
        %v718 = vpop.permute.xlu0 %717
        %719 = vset.pattern.permute.xlu0 3
        %720 = vperm.xlu0 %719, %v681
        %v721 = vpop.permute.xlu0 %720
        %722 = vset.pattern.permute.xlu0 3
        %723 = vperm.xlu0 %722, %v682
        %v724 = vpop.permute.xlu0 %723
        %725 = vset.pattern.permute.xlu0 3
        %726 = vperm.xlu0 %725, %v683
        %v727 = vpop.permute.xlu0 %726
        %728 = vset.pattern.permute.xlu0 3
        %729 = vperm.xlu0 %728, %v684
        %v730 = vpop.permute.xlu0 %729
        %731 = vset.pattern.permute.xlu0 3
        %732 = vperm.xlu0 %731, %v685
        %v733 = vpop.permute.xlu0 %732
        %vm734 = vcmp.eq.s32.totalorder %v688, %v285
        %vm735 = vcmp.eq.s32.totalorder %v691, %v285
        %vm736 = vcmp.eq.s32.totalorder %v694, %v285
        %vm737 = vcmp.eq.s32.totalorder %v697, %v285
        %vm738 = vcmp.eq.s32.totalorder %v700, %v285
        %vm739 = vcmp.eq.s32.totalorder %v703, %v285
        %vm740 = vcmp.eq.s32.totalorder %v706, %v285
        %vm741 = vcmp.eq.s32.totalorder %v709, %v285
        %vm742 = vcmp.eq.s32.totalorder %v712, %v285
        %vm743 = vcmp.eq.s32.totalorder %v715, %v285
        %vm744 = vcmp.eq.s32.totalorder %v718, %v285
        %vm745 = vcmp.eq.s32.totalorder %v721, %v285
        %vm746 = vcmp.eq.s32.totalorder %v724, %v285
        %vm747 = vcmp.eq.s32.totalorder %v727, %v285
        %vm748 = vcmp.eq.s32.totalorder %v730, %v285
        %vm749 = vcmp.eq.s32.totalorder %v733, %v285
        %v750 = vsel %vm734, 1, 0
        %v751 = vsel %vm735, 1, 0
        %v752 = vsel %vm736, 1, 0
        %v753 = vsel %vm737, 1, 0
        %v754 = vsel %vm738, 1, 0
        %v755 = vsel %vm739, 1, 0
        %v756 = vsel %vm740, 1, 0
        %v757 = vsel %vm741, 1, 0
        %v758 = vsel %vm742, 1, 0
        %v759 = vsel %vm743, 1, 0
        %v760 = vsel %vm744, 1, 0
        %v761 = vsel %vm745, 1, 0
        %v762 = vsel %vm746, 1, 0
        %v763 = vsel %vm747, 1, 0
        %v764 = vsel %vm748, 1, 0
        %v765 = vsel %vm749, 1, 0
        %v766 = vcvt.s32.f32 %v750
        %v767 = vcvt.s32.f32 %v751
        %v768 = vcvt.s32.f32 %v752
        %v769 = vcvt.s32.f32 %v753
        %v770 = vcvt.s32.f32 %v754
        %v771 = vcvt.s32.f32 %v755
        %v772 = vcvt.s32.f32 %v756
        %v773 = vcvt.s32.f32 %v757
        %v774 = vcvt.s32.f32 %v758
        %v775 = vcvt.s32.f32 %v759
        %v776 = vcvt.s32.f32 %v760
        %v777 = vcvt.s32.f32 %v761
        %v778 = vcvt.s32.f32 %v762
        %v779 = vcvt.s32.f32 %v763
        %v780 = vcvt.s32.f32 %v764
        %v781 = vcvt.s32.f32 %v765
        %v782 = vpack.c.bf16 %v767, %v766
        %v783 = vpack.c.bf16 %v769, %v768
        %v784 = vpack.c.bf16 %v771, %v770
        %v785 = vpack.c.bf16 %v773, %v772
        %v786 = vpack.c.bf16 %v775, %v774
        %v787 = vpack.c.bf16 %v777, %v776
        %v788 = vpack.c.bf16 %v779, %v778
        %v789 = vpack.c.bf16 %v781, %v780
        %790 = vst [vmem:[#allocation2 + $0x18] sm:$0xff] %v782
        %791 = vst [vmem:[#allocation2 + $0x58] sm:$0xff] %v783
        %792 = vst [vmem:[#allocation2 + $0x98] sm:$0xff] %v784
        %793 = vst [vmem:[#allocation2 + $0xd8] sm:$0xff] %v785
        %794 = vst [vmem:[#allocation2 + $0x118] sm:$0xff] %v786
        %795 = vst [vmem:[#allocation2 + $0x158] sm:$0xff] %v787
        %796 = vst [vmem:[#allocation2 + $0x198] sm:$0xff] %v788
        %797 = vst [vmem:[#allocation2 + $0x1d8] sm:$0xff] %v789
        %v798 = vld [vmem:[%s280] sm:$0xff]
        %v799 = vld [vmem:[%s280 + $0x8] sm:$0xff]
        %v800 = vld [vmem:[%s280 + $0x10] sm:$0xff]
        %v801 = vld [vmem:[%s280 + $0x18] sm:$0xff]
        %v802 = vld [vmem:[%s280 + $0x20] sm:$0xff]
        %v803 = vld [vmem:[%s280 + $0x28] sm:$0xff]
        %v804 = vld [vmem:[%s280 + $0x30] sm:$0xff]
        %v805 = vld [vmem:[%s280 + $0x38] sm:$0xff]
        %v806 = vld [vmem:[%s280 + $0x40] sm:$0xff]
        %v807 = vld [vmem:[%s280 + $0x48] sm:$0xff]
        %v808 = vld [vmem:[%s280 + $0x50] sm:$0xff]
        %v809 = vld [vmem:[%s280 + $0x58] sm:$0xff]
        %v810 = vld [vmem:[%s280 + $0x60] sm:$0xff]
        %v811 = vld [vmem:[%s280 + $0x68] sm:$0xff]
        %v812 = vld [vmem:[%s280 + $0x70] sm:$0xff]
        %v813 = vld [vmem:[%s280 + $0x78] sm:$0xff]
        %814 = vset.pattern.permute.xlu0 4
        %815 = vperm.xlu0 %814, %v798
        %v816 = vpop.permute.xlu0 %815
        %817 = vset.pattern.permute.xlu0 4
        %818 = vperm.xlu0 %817, %v799
        %v819 = vpop.permute.xlu0 %818
        %820 = vset.pattern.permute.xlu0 4
        %821 = vperm.xlu0 %820, %v800
        %v822 = vpop.permute.xlu0 %821
        %823 = vset.pattern.permute.xlu0 4
        %824 = vperm.xlu0 %823, %v801
        %v825 = vpop.permute.xlu0 %824
        %826 = vset.pattern.permute.xlu0 4
        %827 = vperm.xlu0 %826, %v802
        %v828 = vpop.permute.xlu0 %827
        %829 = vset.pattern.permute.xlu0 4
        %830 = vperm.xlu0 %829, %v803
        %v831 = vpop.permute.xlu0 %830
        %832 = vset.pattern.permute.xlu0 4
        %833 = vperm.xlu0 %832, %v804
        %v834 = vpop.permute.xlu0 %833
        %835 = vset.pattern.permute.xlu0 4
        %836 = vperm.xlu0 %835, %v805
        %v837 = vpop.permute.xlu0 %836
        %838 = vset.pattern.permute.xlu0 4
        %839 = vperm.xlu0 %838, %v806
        %v840 = vpop.permute.xlu0 %839
        %841 = vset.pattern.permute.xlu0 4
        %842 = vperm.xlu0 %841, %v807
        %v843 = vpop.permute.xlu0 %842
        %844 = vset.pattern.permute.xlu0 4
        %845 = vperm.xlu0 %844, %v808
        %v846 = vpop.permute.xlu0 %845
        %847 = vset.pattern.permute.xlu0 4
        %848 = vperm.xlu0 %847, %v809
        %v849 = vpop.permute.xlu0 %848
        %850 = vset.pattern.permute.xlu0 4
        %851 = vperm.xlu0 %850, %v810
        %v852 = vpop.permute.xlu0 %851
        %853 = vset.pattern.permute.xlu0 4
        %854 = vperm.xlu0 %853, %v811
        %v855 = vpop.permute.xlu0 %854
        %856 = vset.pattern.permute.xlu0 4
        %857 = vperm.xlu0 %856, %v812
        %v858 = vpop.permute.xlu0 %857
        %859 = vset.pattern.permute.xlu0 4
        %860 = vperm.xlu0 %859, %v813
        %v861 = vpop.permute.xlu0 %860
        %vm862 = vcmp.eq.s32.totalorder %v816, %v285
        %vm863 = vcmp.eq.s32.totalorder %v819, %v285
        %vm864 = vcmp.eq.s32.totalorder %v822, %v285
        %vm865 = vcmp.eq.s32.totalorder %v825, %v285
        %vm866 = vcmp.eq.s32.totalorder %v828, %v285
        %vm867 = vcmp.eq.s32.totalorder %v831, %v285
        %vm868 = vcmp.eq.s32.totalorder %v834, %v285
        %vm869 = vcmp.eq.s32.totalorder %v837, %v285
        %vm870 = vcmp.eq.s32.totalorder %v840, %v285
        %vm871 = vcmp.eq.s32.totalorder %v843, %v285
        %vm872 = vcmp.eq.s32.totalorder %v846, %v285
        %vm873 = vcmp.eq.s32.totalorder %v849, %v285
        %vm874 = vcmp.eq.s32.totalorder %v852, %v285
        %vm875 = vcmp.eq.s32.totalorder %v855, %v285
        %vm876 = vcmp.eq.s32.totalorder %v858, %v285
        %vm877 = vcmp.eq.s32.totalorder %v861, %v285
        %v878 = vsel %vm862, 1, 0
        %v879 = vsel %vm863, 1, 0
        %v880 = vsel %vm864, 1, 0
        %v881 = vsel %vm865, 1, 0
        %v882 = vsel %vm866, 1, 0
        %v883 = vsel %vm867, 1, 0
        %v884 = vsel %vm868, 1, 0
        %v885 = vsel %vm869, 1, 0
        %v886 = vsel %vm870, 1, 0
        %v887 = vsel %vm871, 1, 0
        %v888 = vsel %vm872, 1, 0
        %v889 = vsel %vm873, 1, 0
        %v890 = vsel %vm874, 1, 0
        %v891 = vsel %vm875, 1, 0
        %v892 = vsel %vm876, 1, 0
        %v893 = vsel %vm877, 1, 0
        %v894 = vcvt.s32.f32 %v878
        %v895 = vcvt.s32.f32 %v879
        %v896 = vcvt.s32.f32 %v880
        %v897 = vcvt.s32.f32 %v881
        %v898 = vcvt.s32.f32 %v882
        %v899 = vcvt.s32.f32 %v883
        %v900 = vcvt.s32.f32 %v884
        %v901 = vcvt.s32.f32 %v885
        %v902 = vcvt.s32.f32 %v886
        %v903 = vcvt.s32.f32 %v887
        %v904 = vcvt.s32.f32 %v888
        %v905 = vcvt.s32.f32 %v889
        %v906 = vcvt.s32.f32 %v890
        %v907 = vcvt.s32.f32 %v891
        %v908 = vcvt.s32.f32 %v892
        %v909 = vcvt.s32.f32 %v893
        %v910 = vpack.c.bf16 %v895, %v894
        %v911 = vpack.c.bf16 %v897, %v896
        %v912 = vpack.c.bf16 %v899, %v898
        %v913 = vpack.c.bf16 %v901, %v900
        %v914 = vpack.c.bf16 %v903, %v902
        %v915 = vpack.c.bf16 %v905, %v904
        %v916 = vpack.c.bf16 %v907, %v906
        %v917 = vpack.c.bf16 %v909, %v908
        %918 = vst [vmem:[#allocation2 + $0x20] sm:$0xff] %v910
        %919 = vst [vmem:[#allocation2 + $0x60] sm:$0xff] %v911
        %920 = vst [vmem:[#allocation2 + $0xa0] sm:$0xff] %v912
        %921 = vst [vmem:[#allocation2 + $0xe0] sm:$0xff] %v913
        %922 = vst [vmem:[#allocation2 + $0x120] sm:$0xff] %v914
        %923 = vst [vmem:[#allocation2 + $0x160] sm:$0xff] %v915
        %924 = vst [vmem:[#allocation2 + $0x1a0] sm:$0xff] %v916
        %925 = vst [vmem:[#allocation2 + $0x1e0] sm:$0xff] %v917
        %v926 = vld [vmem:[%s280] sm:$0xff]
        %v927 = vld [vmem:[%s280 + $0x8] sm:$0xff]
        %v928 = vld [vmem:[%s280 + $0x10] sm:$0xff]
        %v929 = vld [vmem:[%s280 + $0x18] sm:$0xff]
        %v930 = vld [vmem:[%s280 + $0x20] sm:$0xff]
        %v931 = vld [vmem:[%s280 + $0x28] sm:$0xff]
        %v932 = vld [vmem:[%s280 + $0x30] sm:$0xff]
        %v933 = vld [vmem:[%s280 + $0x38] sm:$0xff]
        %v934 = vld [vmem:[%s280 + $0x40] sm:$0xff]
        %v935 = vld [vmem:[%s280 + $0x48] sm:$0xff]
        %v936 = vld [vmem:[%s280 + $0x50] sm:$0xff]
        %v937 = vld [vmem:[%s280 + $0x58] sm:$0xff]
        %v938 = vld [vmem:[%s280 + $0x60] sm:$0xff]
        %v939 = vld [vmem:[%s280 + $0x68] sm:$0xff]
        %v940 = vld [vmem:[%s280 + $0x70] sm:$0xff]
        %v941 = vld [vmem:[%s280 + $0x78] sm:$0xff]
        %942 = vset.pattern.permute.xlu0 5
        %943 = vperm.xlu0 %942, %v926
        %v944 = vpop.permute.xlu0 %943
        %945 = vset.pattern.permute.xlu0 5
        %946 = vperm.xlu0 %945, %v927
        %v947 = vpop.permute.xlu0 %946
        %948 = vset.pattern.permute.xlu0 5
        %949 = vperm.xlu0 %948, %v928
        %v950 = vpop.permute.xlu0 %949
        %951 = vset.pattern.permute.xlu0 5
        %952 = vperm.xlu0 %951, %v929
        %v953 = vpop.permute.xlu0 %952
        %954 = vset.pattern.permute.xlu0 5
        %955 = vperm.xlu0 %954, %v930
        %v956 = vpop.permute.xlu0 %955
        %957 = vset.pattern.permute.xlu0 5
        %958 = vperm.xlu0 %957, %v931
        %v959 = vpop.permute.xlu0 %958
        %960 = vset.pattern.permute.xlu0 5
        %961 = vperm.xlu0 %960, %v932
        %v962 = vpop.permute.xlu0 %961
        %963 = vset.pattern.permute.xlu0 5
        %964 = vperm.xlu0 %963, %v933
        %v965 = vpop.permute.xlu0 %964
        %966 = vset.pattern.permute.xlu0 5
        %967 = vperm.xlu0 %966, %v934
        %v968 = vpop.permute.xlu0 %967
        %969 = vset.pattern.permute.xlu0 5
        %970 = vperm.xlu0 %969, %v935
        %v971 = vpop.permute.xlu0 %970
        %972 = vset.pattern.permute.xlu0 5
        %973 = vperm.xlu0 %972, %v936
        %v974 = vpop.permute.xlu0 %973
        %975 = vset.pattern.permute.xlu0 5
        %976 = vperm.xlu0 %975, %v937
        %v977 = vpop.permute.xlu0 %976
        %978 = vset.pattern.permute.xlu0 5
        %979 = vperm.xlu0 %978, %v938
        %v980 = vpop.permute.xlu0 %979
        %981 = vset.pattern.permute.xlu0 5
        %982 = vperm.xlu0 %981, %v939
        %v983 = vpop.permute.xlu0 %982
        %984 = vset.pattern.permute.xlu0 5
        %985 = vperm.xlu0 %984, %v940
        %v986 = vpop.permute.xlu0 %985
        %987 = vset.pattern.permute.xlu0 5
        %988 = vperm.xlu0 %987, %v941
        %v989 = vpop.permute.xlu0 %988
        %vm990 = vcmp.eq.s32.totalorder %v944, %v285
        %vm991 = vcmp.eq.s32.totalorder %v947, %v285
        %vm992 = vcmp.eq.s32.totalorder %v950, %v285
        %vm993 = vcmp.eq.s32.totalorder %v953, %v285
        %vm994 = vcmp.eq.s32.totalorder %v956, %v285
        %vm995 = vcmp.eq.s32.totalorder %v959, %v285
        %vm996 = vcmp.eq.s32.totalorder %v962, %v285
        %vm997 = vcmp.eq.s32.totalorder %v965, %v285
        %vm998 = vcmp.eq.s32.totalorder %v968, %v285
        %vm999 = vcmp.eq.s32.totalorder %v971, %v285
        %vm1000 = vcmp.eq.s32.totalorder %v974, %v285
        %vm1001 = vcmp.eq.s32.totalorder %v977, %v285
        %vm1002 = vcmp.eq.s32.totalorder %v980, %v285
        %vm1003 = vcmp.eq.s32.totalorder %v983, %v285
        %vm1004 = vcmp.eq.s32.totalorder %v986, %v285
        %vm1005 = vcmp.eq.s32.totalorder %v989, %v285
        %v1006 = vsel %vm990, 1, 0
        %v1007 = vsel %vm991, 1, 0
        %v1008 = vsel %vm992, 1, 0
        %v1009 = vsel %vm993, 1, 0
        %v1010 = vsel %vm994, 1, 0
        %v1011 = vsel %vm995, 1, 0
        %v1012 = vsel %vm996, 1, 0
        %v1013 = vsel %vm997, 1, 0
        %v1014 = vsel %vm998, 1, 0
        %v1015 = vsel %vm999, 1, 0
        %v1016 = vsel %vm1000, 1, 0
        %v1017 = vsel %vm1001, 1, 0
        %v1018 = vsel %vm1002, 1, 0
        %v1019 = vsel %vm1003, 1, 0
        %v1020 = vsel %vm1004, 1, 0
        %v1021 = vsel %vm1005, 1, 0
        %v1022 = vcvt.s32.f32 %v1006
        %v1023 = vcvt.s32.f32 %v1007
        %v1024 = vcvt.s32.f32 %v1008
        %v1025 = vcvt.s32.f32 %v1009
        %v1026 = vcvt.s32.f32 %v1010
        %v1027 = vcvt.s32.f32 %v1011
        %v1028 = vcvt.s32.f32 %v1012
        %v1029 = vcvt.s32.f32 %v1013
        %v1030 = vcvt.s32.f32 %v1014
        %v1031 = vcvt.s32.f32 %v1015
        %v1032 = vcvt.s32.f32 %v1016
        %v1033 = vcvt.s32.f32 %v1017
        %v1034 = vcvt.s32.f32 %v1018
        %v1035 = vcvt.s32.f32 %v1019
        %v1036 = vcvt.s32.f32 %v1020
        %v1037 = vcvt.s32.f32 %v1021
        %v1038 = vpack.c.bf16 %v1023, %v1022
        %v1039 = vpack.c.bf16 %v1025, %v1024
        %v1040 = vpack.c.bf16 %v1027, %v1026
        %v1041 = vpack.c.bf16 %v1029, %v1028
        %v1042 = vpack.c.bf16 %v1031, %v1030
        %v1043 = vpack.c.bf16 %v1033, %v1032
        %v1044 = vpack.c.bf16 %v1035, %v1034
        %v1045 = vpack.c.bf16 %v1037, %v1036
        %1046 = vst [vmem:[#allocation2 + $0x28] sm:$0xff] %v1038
        %1047 = vst [vmem:[#allocation2 + $0x68] sm:$0xff] %v1039
        %1048 = vst [vmem:[#allocation2 + $0xa8] sm:$0xff] %v1040
        %1049 = vst [vmem:[#allocation2 + $0xe8] sm:$0xff] %v1041
        %1050 = vst [vmem:[#allocation2 + $0x128] sm:$0xff] %v1042
        %1051 = vst [vmem:[#allocation2 + $0x168] sm:$0xff] %v1043
        %1052 = vst [vmem:[#allocation2 + $0x1a8] sm:$0xff] %v1044
        %1053 = vst [vmem:[#allocation2 + $0x1e8] sm:$0xff] %v1045
        %v1054 = vld [vmem:[%s280] sm:$0xff]
        %v1055 = vld [vmem:[%s280 + $0x8] sm:$0xff]
        %v1056 = vld [vmem:[%s280 + $0x10] sm:$0xff]
        %v1057 = vld [vmem:[%s280 + $0x18] sm:$0xff]
        %v1058 = vld [vmem:[%s280 + $0x20] sm:$0xff]
        %v1059 = vld [vmem:[%s280 + $0x28] sm:$0xff]
        %v1060 = vld [vmem:[%s280 + $0x30] sm:$0xff]
        %v1061 = vld [vmem:[%s280 + $0x38] sm:$0xff]
        %v1062 = vld [vmem:[%s280 + $0x40] sm:$0xff]
        %v1063 = vld [vmem:[%s280 + $0x48] sm:$0xff]
        %v1064 = vld [vmem:[%s280 + $0x50] sm:$0xff]
        %v1065 = vld [vmem:[%s280 + $0x58] sm:$0xff]
        %v1066 = vld [vmem:[%s280 + $0x60] sm:$0xff]
        %v1067 = vld [vmem:[%s280 + $0x68] sm:$0xff]
        %v1068 = vld [vmem:[%s280 + $0x70] sm:$0xff]
        %v1069 = vld [vmem:[%s280 + $0x78] sm:$0xff]
        %1070 = vset.pattern.permute.xlu0 6
        %1071 = vperm.xlu0 %1070, %v1054
        %v1072 = vpop.permute.xlu0 %1071
        %1073 = vset.pattern.permute.xlu0 6
        %1074 = vperm.xlu0 %1073, %v1055
        %v1075 = vpop.permute.xlu0 %1074
        %1076 = vset.pattern.permute.xlu0 6
        %1077 = vperm.xlu0 %1076, %v1056
        %v1078 = vpop.permute.xlu0 %1077
        %1079 = vset.pattern.permute.xlu0 6
        %1080 = vperm.xlu0 %1079, %v1057
        %v1081 = vpop.permute.xlu0 %1080
        %1082 = vset.pattern.permute.xlu0 6
        %1083 = vperm.xlu0 %1082, %v1058
        %v1084 = vpop.permute.xlu0 %1083
        %1085 = vset.pattern.permute.xlu0 6
        %1086 = vperm.xlu0 %1085, %v1059
        %v1087 = vpop.permute.xlu0 %1086
        %1088 = vset.pattern.permute.xlu0 6
        %1089 = vperm.xlu0 %1088, %v1060
        %v1090 = vpop.permute.xlu0 %1089
        %1091 = vset.pattern.permute.xlu0 6
        %1092 = vperm.xlu0 %1091, %v1061
        %v1093 = vpop.permute.xlu0 %1092
        %1094 = vset.pattern.permute.xlu0 6
        %1095 = vperm.xlu0 %1094, %v1062
        %v1096 = vpop.permute.xlu0 %1095
        %1097 = vset.pattern.permute.xlu0 6
        %1098 = vperm.xlu0 %1097, %v1063
        %v1099 = vpop.permute.xlu0 %1098
        %1100 = vset.pattern.permute.xlu0 6
        %1101 = vperm.xlu0 %1100, %v1064
        %v1102 = vpop.permute.xlu0 %1101
        %1103 = vset.pattern.permute.xlu0 6
        %1104 = vperm.xlu0 %1103, %v1065
        %v1105 = vpop.permute.xlu0 %1104
        %1106 = vset.pattern.permute.xlu0 6
        %1107 = vperm.xlu0 %1106, %v1066
        %v1108 = vpop.permute.xlu0 %1107
        %1109 = vset.pattern.permute.xlu0 6
        %1110 = vperm.xlu0 %1109, %v1067
        %v1111 = vpop.permute.xlu0 %1110
        %1112 = vset.pattern.permute.xlu0 6
        %1113 = vperm.xlu0 %1112, %v1068
        %v1114 = vpop.permute.xlu0 %1113
        %1115 = vset.pattern.permute.xlu0 6
        %1116 = vperm.xlu0 %1115, %v1069
        %v1117 = vpop.permute.xlu0 %1116
        %vm1118 = vcmp.eq.s32.totalorder %v1072, %v285
        %vm1119 = vcmp.eq.s32.totalorder %v1075, %v285
        %vm1120 = vcmp.eq.s32.totalorder %v1078, %v285
        %vm1121 = vcmp.eq.s32.totalorder %v1081, %v285
        %vm1122 = vcmp.eq.s32.totalorder %v1084, %v285
        %vm1123 = vcmp.eq.s32.totalorder %v1087, %v285
        %vm1124 = vcmp.eq.s32.totalorder %v1090, %v285
        %vm1125 = vcmp.eq.s32.totalorder %v1093, %v285
        %vm1126 = vcmp.eq.s32.totalorder %v1096, %v285
        %vm1127 = vcmp.eq.s32.totalorder %v1099, %v285
        %vm1128 = vcmp.eq.s32.totalorder %v1102, %v285
        %vm1129 = vcmp.eq.s32.totalorder %v1105, %v285
        %vm1130 = vcmp.eq.s32.totalorder %v1108, %v285
        %vm1131 = vcmp.eq.s32.totalorder %v1111, %v285
        %vm1132 = vcmp.eq.s32.totalorder %v1114, %v285
        %vm1133 = vcmp.eq.s32.totalorder %v1117, %v285
        %v1134 = vsel %vm1118, 1, 0
        %v1135 = vsel %vm1119, 1, 0
        %v1136 = vsel %vm1120, 1, 0
        %v1137 = vsel %vm1121, 1, 0
        %v1138 = vsel %vm1122, 1, 0
        %v1139 = vsel %vm1123, 1, 0
        %v1140 = vsel %vm1124, 1, 0
        %v1141 = vsel %vm1125, 1, 0
        %v1142 = vsel %vm1126, 1, 0
        %v1143 = vsel %vm1127, 1, 0
        %v1144 = vsel %vm1128, 1, 0
        %v1145 = vsel %vm1129, 1, 0
        %v1146 = vsel %vm1130, 1, 0
        %v1147 = vsel %vm1131, 1, 0
        %v1148 = vsel %vm1132, 1, 0
        %v1149 = vsel %vm1133, 1, 0
        %v1150 = vcvt.s32.f32 %v1134
        %v1151 = vcvt.s32.f32 %v1135
        %v1152 = vcvt.s32.f32 %v1136
        %v1153 = vcvt.s32.f32 %v1137
        %v1154 = vcvt.s32.f32 %v1138
        %v1155 = vcvt.s32.f32 %v1139
        %v1156 = vcvt.s32.f32 %v1140
        %v1157 = vcvt.s32.f32 %v1141
        %v1158 = vcvt.s32.f32 %v1142
        %v1159 = vcvt.s32.f32 %v1143
        %v1160 = vcvt.s32.f32 %v1144
        %v1161 = vcvt.s32.f32 %v1145
        %v1162 = vcvt.s32.f32 %v1146
        %v1163 = vcvt.s32.f32 %v1147
        %v1164 = vcvt.s32.f32 %v1148
        %v1165 = vcvt.s32.f32 %v1149
        %v1166 = vpack.c.bf16 %v1151, %v1150
        %v1167 = vpack.c.bf16 %v1153, %v1152
        %v1168 = vpack.c.bf16 %v1155, %v1154
        %v1169 = vpack.c.bf16 %v1157, %v1156
        %v1170 = vpack.c.bf16 %v1159, %v1158
        %v1171 = vpack.c.bf16 %v1161, %v1160
        %v1172 = vpack.c.bf16 %v1163, %v1162
        %v1173 = vpack.c.bf16 %v1165, %v1164
        %1174 = vst [vmem:[#allocation2 + $0x30] sm:$0xff] %v1166
        %1175 = vst [vmem:[#allocation2 + $0x70] sm:$0xff] %v1167
        %1176 = vst [vmem:[#allocation2 + $0xb0] sm:$0xff] %v1168
        %1177 = vst [vmem:[#allocation2 + $0xf0] sm:$0xff] %v1169
        %1178 = vst [vmem:[#allocation2 + $0x130] sm:$0xff] %v1170
        %1179 = vst [vmem:[#allocation2 + $0x170] sm:$0xff] %v1171
        %1180 = vst [vmem:[#allocation2 + $0x1b0] sm:$0xff] %v1172
        %1181 = vst [vmem:[#allocation2 + $0x1f0] sm:$0xff] %v1173
        %v1182 = vld [vmem:[%s280] sm:$0xff]
        %v1183 = vld [vmem:[%s280 + $0x8] sm:$0xff]
        %v1184 = vld [vmem:[%s280 + $0x10] sm:$0xff]
        %v1185 = vld [vmem:[%s280 + $0x18] sm:$0xff]
        %v1186 = vld [vmem:[%s280 + $0x20] sm:$0xff]
        %v1187 = vld [vmem:[%s280 + $0x28] sm:$0xff]
        %v1188 = vld [vmem:[%s280 + $0x30] sm:$0xff]
        %v1189 = vld [vmem:[%s280 + $0x38] sm:$0xff]
        %v1190 = vld [vmem:[%s280 + $0x40] sm:$0xff]
        %v1191 = vld [vmem:[%s280 + $0x48] sm:$0xff]
        %v1192 = vld [vmem:[%s280 + $0x50] sm:$0xff]
        %v1193 = vld [vmem:[%s280 + $0x58] sm:$0xff]
        %v1194 = vld [vmem:[%s280 + $0x60] sm:$0xff]
        %v1195 = vld [vmem:[%s280 + $0x68] sm:$0xff]
        %v1196 = vld [vmem:[%s280 + $0x70] sm:$0xff]
        %v1197 = vld [vmem:[%s280 + $0x78] sm:$0xff]
        %1198 = vset.pattern.permute.xlu0 7
        %1199 = vperm.xlu0 %1198, %v1182
        %v1200 = vpop.permute.xlu0 %1199
        %1201 = vset.pattern.permute.xlu0 7
        %1202 = vperm.xlu0 %1201, %v1183
        %v1203 = vpop.permute.xlu0 %1202
        %1204 = vset.pattern.permute.xlu0 7
        %1205 = vperm.xlu0 %1204, %v1184
        %v1206 = vpop.permute.xlu0 %1205
        %1207 = vset.pattern.permute.xlu0 7
        %1208 = vperm.xlu0 %1207, %v1185
        %v1209 = vpop.permute.xlu0 %1208
        %1210 = vset.pattern.permute.xlu0 7
        %1211 = vperm.xlu0 %1210, %v1186
        %v1212 = vpop.permute.xlu0 %1211
        %1213 = vset.pattern.permute.xlu0 7
        %1214 = vperm.xlu0 %1213, %v1187
        %v1215 = vpop.permute.xlu0 %1214
        %1216 = vset.pattern.permute.xlu0 7
        %1217 = vperm.xlu0 %1216, %v1188
        %v1218 = vpop.permute.xlu0 %1217
        %1219 = vset.pattern.permute.xlu0 7
        %1220 = vperm.xlu0 %1219, %v1189
        %v1221 = vpop.permute.xlu0 %1220
        %1222 = vset.pattern.permute.xlu0 7
        %1223 = vperm.xlu0 %1222, %v1190
        %v1224 = vpop.permute.xlu0 %1223
        %1225 = vset.pattern.permute.xlu0 7
        %1226 = vperm.xlu0 %1225, %v1191
        %v1227 = vpop.permute.xlu0 %1226
        %1228 = vset.pattern.permute.xlu0 7
        %1229 = vperm.xlu0 %1228, %v1192
        %v1230 = vpop.permute.xlu0 %1229
        %1231 = vset.pattern.permute.xlu0 7
        %1232 = vperm.xlu0 %1231, %v1193
        %v1233 = vpop.permute.xlu0 %1232
        %1234 = vset.pattern.permute.xlu0 7
        %1235 = vperm.xlu0 %1234, %v1194
        %v1236 = vpop.permute.xlu0 %1235
        %1237 = vset.pattern.permute.xlu0 7
        %1238 = vperm.xlu0 %1237, %v1195
        %v1239 = vpop.permute.xlu0 %1238
        %1240 = vset.pattern.permute.xlu0 7
        %1241 = vperm.xlu0 %1240, %v1196
        %v1242 = vpop.permute.xlu0 %1241
        %1243 = vset.pattern.permute.xlu0 7
        %1244 = vperm.xlu0 %1243, %v1197
        %v1245 = vpop.permute.xlu0 %1244
        %vm1246 = vcmp.eq.s32.totalorder %v1200, %v285
        %vm1247 = vcmp.eq.s32.totalorder %v1203, %v285
        %vm1248 = vcmp.eq.s32.totalorder %v1206, %v285
        %vm1249 = vcmp.eq.s32.totalorder %v1209, %v285
        %vm1250 = vcmp.eq.s32.totalorder %v1212, %v285
        %vm1251 = vcmp.eq.s32.totalorder %v1215, %v285
        %vm1252 = vcmp.eq.s32.totalorder %v1218, %v285
        %vm1253 = vcmp.eq.s32.totalorder %v1221, %v285
        %vm1254 = vcmp.eq.s32.totalorder %v1224, %v285
        %vm1255 = vcmp.eq.s32.totalorder %v1227, %v285
        %vm1256 = vcmp.eq.s32.totalorder %v1230, %v285
        %vm1257 = vcmp.eq.s32.totalorder %v1233, %v285
        %vm1258 = vcmp.eq.s32.totalorder %v1236, %v285
        %vm1259 = vcmp.eq.s32.totalorder %v1239, %v285
        %vm1260 = vcmp.eq.s32.totalorder %v1242, %v285
        %vm1261 = vcmp.eq.s32.totalorder %v1245, %v285
        %v1262 = vsel %vm1246, 1, 0
        %v1263 = vsel %vm1247, 1, 0
        %v1264 = vsel %vm1248, 1, 0
        %v1265 = vsel %vm1249, 1, 0
        %v1266 = vsel %vm1250, 1, 0
        %v1267 = vsel %vm1251, 1, 0
        %v1268 = vsel %vm1252, 1, 0
        %v1269 = vsel %vm1253, 1, 0
        %v1270 = vsel %vm1254, 1, 0
        %v1271 = vsel %vm1255, 1, 0
        %v1272 = vsel %vm1256, 1, 0
        %v1273 = vsel %vm1257, 1, 0
        %v1274 = vsel %vm1258, 1, 0
        %v1275 = vsel %vm1259, 1, 0
        %v1276 = vsel %vm1260, 1, 0
        %v1277 = vsel %vm1261, 1, 0
        %v1278 = vcvt.s32.f32 %v1262
        %v1279 = vcvt.s32.f32 %v1263
        %v1280 = vcvt.s32.f32 %v1264
        %v1281 = vcvt.s32.f32 %v1265
        %v1282 = vcvt.s32.f32 %v1266
        %v1283 = vcvt.s32.f32 %v1267
        %v1284 = vcvt.s32.f32 %v1268
        %v1285 = vcvt.s32.f32 %v1269
        %v1286 = vcvt.s32.f32 %v1270
        %v1287 = vcvt.s32.f32 %v1271
        %v1288 = vcvt.s32.f32 %v1272
        %v1289 = vcvt.s32.f32 %v1273
        %v1290 = vcvt.s32.f32 %v1274
        %v1291 = vcvt.s32.f32 %v1275
        %v1292 = vcvt.s32.f32 %v1276
        %v1293 = vcvt.s32.f32 %v1277
        %v1294 = vpack.c.bf16 %v1279, %v1278
        %v1295 = vpack.c.bf16 %v1281, %v1280
        %v1296 = vpack.c.bf16 %v1283, %v1282
        %v1297 = vpack.c.bf16 %v1285, %v1284
        %v1298 = vpack.c.bf16 %v1287, %v1286
        %v1299 = vpack.c.bf16 %v1289, %v1288
        %v1300 = vpack.c.bf16 %v1291, %v1290
        %v1301 = vpack.c.bf16 %v1293, %v1292
        %1302 = vst [vmem:[#allocation2 + $0x38] sm:$0xff] %v1294
        %1303 = vst [vmem:[#allocation2 + $0x78] sm:$0xff] %v1295
        %1304 = vst [vmem:[#allocation2 + $0xb8] sm:$0xff] %v1296
        %1305 = vst [vmem:[#allocation2 + $0xf8] sm:$0xff] %v1297
        %1306 = vst [vmem:[#allocation2 + $0x138] sm:$0xff] %v1298
        %1307 = vst [vmem:[#allocation2 + $0x178] sm:$0xff] %v1299
        %1308 = vst [vmem:[#allocation2 + $0x1b8] sm:$0xff] %v1300
        %1309 = vst [vmem:[#allocation2 + $0x1f8] sm:$0xff] %v1301
        %v1310 = vld [vmem:[#allocation2] sm:$0xff]
        %v1311 = vld [vmem:[#allocation2 + $0x8] sm:$0xff]
        %v1312 = vld [vmem:[#allocation2 + $0x10] sm:$0xff]
        %v1313 = vld [vmem:[#allocation2 + $0x18] sm:$0xff]
        %v1314 = vld [vmem:[#allocation2 + $0x20] sm:$0xff]
        %v1315 = vld [vmem:[#allocation2 + $0x28] sm:$0xff]
        %v1316 = vld [vmem:[#allocation2 + $0x30] sm:$0xff]
        %v1317 = vld [vmem:[#allocation2 + $0x38] sm:$0xff]
        %v1318 = vld [vmem:[#allocation2 + $0x40] sm:$0xff]
        %v1319 = vld [vmem:[#allocation2 + $0x48] sm:$0xff]
        %v1320 = vld [vmem:[#allocation2 + $0x50] sm:$0xff]
        %v1321 = vld [vmem:[#allocation2 + $0x58] sm:$0xff]
        %v1322 = vld [vmem:[#allocation2 + $0x60] sm:$0xff]
        %v1323 = vld [vmem:[#allocation2 + $0x68] sm:$0xff]
        %v1324 = vld [vmem:[#allocation2 + $0x70] sm:$0xff]
        %v1325 = vld [vmem:[#allocation2 + $0x78] sm:$0xff]
        %v1326 = vld [vmem:[#allocation2 + $0x80] sm:$0xff]
        %v1327 = vld [vmem:[#allocation2 + $0x88] sm:$0xff]
        %v1328 = vld [vmem:[#allocation2 + $0x90] sm:$0xff]
        %v1329 = vld [vmem:[#allocation2 + $0x98] sm:$0xff]
        %v1330 = vld [vmem:[#allocation2 + $0xa0] sm:$0xff]
        %v1331 = vld [vmem:[#allocation2 + $0xa8] sm:$0xff]
        %v1332 = vld [vmem:[#allocation2 + $0xb0] sm:$0xff]
        %v1333 = vld [vmem:[#allocation2 + $0xb8] sm:$0xff]
        %v1334 = vld [vmem:[#allocation2 + $0xc0] sm:$0xff]
        %v1335 = vld [vmem:[#allocation2 + $0xc8] sm:$0xff]
        %v1336 = vld [vmem:[#allocation2 + $0xd0] sm:$0xff]
        %v1337 = vld [vmem:[#allocation2 + $0xd8] sm:$0xff]
        %v1338 = vld [vmem:[#allocation2 + $0xe0] sm:$0xff]
        %v1339 = vld [vmem:[#allocation2 + $0xe8] sm:$0xff]
        %v1340 = vld [vmem:[#allocation2 + $0xf0] sm:$0xff]
        %v1341 = vld [vmem:[#allocation2 + $0xf8] sm:$0xff]
        %v1342 = vld [vmem:[#allocation2 + $0x100] sm:$0xff]
        %v1343 = vld [vmem:[#allocation2 + $0x108] sm:$0xff]
        %v1344 = vld [vmem:[#allocation2 + $0x110] sm:$0xff]
        %v1345 = vld [vmem:[#allocation2 + $0x118] sm:$0xff]
        %v1346 = vld [vmem:[#allocation2 + $0x120] sm:$0xff]
        %v1347 = vld [vmem:[#allocation2 + $0x128] sm:$0xff]
        %v1348 = vld [vmem:[#allocation2 + $0x130] sm:$0xff]
        %v1349 = vld [vmem:[#allocation2 + $0x138] sm:$0xff]
        %v1350 = vld [vmem:[#allocation2 + $0x140] sm:$0xff]
        %v1351 = vld [vmem:[#allocation2 + $0x148] sm:$0xff]
        %v1352 = vld [vmem:[#allocation2 + $0x150] sm:$0xff]
        %v1353 = vld [vmem:[#allocation2 + $0x158] sm:$0xff]
        %v1354 = vld [vmem:[#allocation2 + $0x160] sm:$0xff]
        %v1355 = vld [vmem:[#allocation2 + $0x168] sm:$0xff]
        %v1356 = vld [vmem:[#allocation2 + $0x170] sm:$0xff]
        %v1357 = vld [vmem:[#allocation2 + $0x178] sm:$0xff]
        %v1358 = vld [vmem:[#allocation2 + $0x180] sm:$0xff]
        %v1359 = vld [vmem:[#allocation2 + $0x188] sm:$0xff]
        %v1360 = vld [vmem:[#allocation2 + $0x190] sm:$0xff]
        %v1361 = vld [vmem:[#allocation2 + $0x198] sm:$0xff]
        %v1362 = vld [vmem:[#allocation2 + $0x1a0] sm:$0xff]
        %v1363 = vld [vmem:[#allocation2 + $0x1a8] sm:$0xff]
        %v1364 = vld [vmem:[#allocation2 + $0x1b0] sm:$0xff]
        %v1365 = vld [vmem:[#allocation2 + $0x1b8] sm:$0xff]
        %v1366 = vld [vmem:[#allocation2 + $0x1c0] sm:$0xff]
        %v1367 = vld [vmem:[#allocation2 + $0x1c8] sm:$0xff]
        %v1368 = vld [vmem:[#allocation2 + $0x1d0] sm:$0xff]
        %v1369 = vld [vmem:[#allocation2 + $0x1d8] sm:$0xff]
        %v1370 = vld [vmem:[#allocation2 + $0x1e0] sm:$0xff]
        %v1371 = vld [vmem:[#allocation2 + $0x1e8] sm:$0xff]
        %v1372 = vld [vmem:[#allocation2 + $0x1f0] sm:$0xff]
        %v1373 = vld [vmem:[#allocation2 + $0x1f8] sm:$0xff]
        %v1374 = vld [vmem:[%s1] sm:$0xf]
        %v1375 = vld [vmem:[%s1 + $0x4] sm:$0xf]
        %v1376 = vld [vmem:[%s1 + $0x8] sm:$0xf]
        %v1377 = vld [vmem:[%s1 + $0xc] sm:$0xf]
        %v1378 = vld [vmem:[%s1 + $0x10] sm:$0xf]
        %v1379 = vld [vmem:[%s1 + $0x14] sm:$0xf]
        %v1380 = vld [vmem:[%s1 + $0x18] sm:$0xf]
        %v1381 = vld [vmem:[%s1 + $0x1c] sm:$0xf]
        %v1382 = vld [vmem:[%s1 + $0x20] sm:$0xf]
        %v1383 = vld [vmem:[%s1 + $0x24] sm:$0xf]
        %v1384 = vld [vmem:[%s1 + $0x28] sm:$0xf]
        %v1385 = vld [vmem:[%s1 + $0x2c] sm:$0xf]
        %v1386 = vld [vmem:[%s1 + $0x30] sm:$0xf]
        %v1387 = vld [vmem:[%s1 + $0x34] sm:$0xf]
        %v1388 = vld [vmem:[%s1 + $0x38] sm:$0xf]
        %v1389 = vld [vmem:[%s1 + $0x3c] sm:$0xf]
        %v1390 = vld [vmem:[%s1 + $0x40] sm:$0xf]
        %v1391 = vld [vmem:[%s1 + $0x44] sm:$0xf]
        %v1392 = vld [vmem:[%s1 + $0x48] sm:$0xf]
        %v1393 = vld [vmem:[%s1 + $0x4c] sm:$0xf]
        %v1394 = vld [vmem:[%s1 + $0x50] sm:$0xf]
        %v1395 = vld [vmem:[%s1 + $0x54] sm:$0xf]
        %v1396 = vld [vmem:[%s1 + $0x58] sm:$0xf]
        %v1397 = vld [vmem:[%s1 + $0x5c] sm:$0xf]
        %v1398 = vld [vmem:[%s1 + $0x60] sm:$0xf]
        %v1399 = vld [vmem:[%s1 + $0x64] sm:$0xf]
        %v1400 = vld [vmem:[%s1 + $0x68] sm:$0xf]
        %v1401 = vld [vmem:[%s1 + $0x6c] sm:$0xf]
        %v1402 = vld [vmem:[%s1 + $0x70] sm:$0xf]
        %v1403 = vld [vmem:[%s1 + $0x74] sm:$0xf]
        %v1404 = vld [vmem:[%s1 + $0x78] sm:$0xf]
        %v1405 = vld [vmem:[%s1 + $0x7c] sm:$0xf]
        %v1406 = vld [vmem:[%s1 + $0x80] sm:$0xf]
        %v1407 = vld [vmem:[%s1 + $0x84] sm:$0xf]
        %v1408 = vld [vmem:[%s1 + $0x88] sm:$0xf]
        %v1409 = vld [vmem:[%s1 + $0x8c] sm:$0xf]
        %v1410 = vld [vmem:[%s1 + $0x90] sm:$0xf]
        %v1411 = vld [vmem:[%s1 + $0x94] sm:$0xf]
        %v1412 = vld [vmem:[%s1 + $0x98] sm:$0xf]
        %v1413 = vld [vmem:[%s1 + $0x9c] sm:$0xf]
        %v1414 = vld [vmem:[%s1 + $0xa0] sm:$0xf]
        %v1415 = vld [vmem:[%s1 + $0xa4] sm:$0xf]
        %v1416 = vld [vmem:[%s1 + $0xa8] sm:$0xf]
        %v1417 = vld [vmem:[%s1 + $0xac] sm:$0xf]
        %v1418 = vld [vmem:[%s1 + $0xb0] sm:$0xf]
        %v1419 = vld [vmem:[%s1 + $0xb4] sm:$0xf]
        %v1420 = vld [vmem:[%s1 + $0xb8] sm:$0xf]
        %v1421 = vld [vmem:[%s1 + $0xbc] sm:$0xf]
        %v1422 = vld [vmem:[%s1 + $0xc0] sm:$0xf]
        %v1423 = vld [vmem:[%s1 + $0xc4] sm:$0xf]
        %v1424 = vld [vmem:[%s1 + $0xc8] sm:$0xf]
        %v1425 = vld [vmem:[%s1 + $0xcc] sm:$0xf]
        %v1426 = vld [vmem:[%s1 + $0xd0] sm:$0xf]
        %v1427 = vld [vmem:[%s1 + $0xd4] sm:$0xf]
        %v1428 = vld [vmem:[%s1 + $0xd8] sm:$0xf]
        %v1429 = vld [vmem:[%s1 + $0xdc] sm:$0xf]
        %v1430 = vld [vmem:[%s1 + $0xe0] sm:$0xf]
        %v1431 = vld [vmem:[%s1 + $0xe4] sm:$0xf]
        %v1432 = vld [vmem:[%s1 + $0xe8] sm:$0xf]
        %v1433 = vld [vmem:[%s1 + $0xec] sm:$0xf]
        %v1434 = vld [vmem:[%s1 + $0xf0] sm:$0xf]
        %v1435 = vld [vmem:[%s1 + $0xf4] sm:$0xf]
        %v1436 = vld [vmem:[%s1 + $0xf8] sm:$0xf]
        %v1437 = vld [vmem:[%s1 + $0xfc] sm:$0xf]
        %v1438 = vld [vmem:[%s1 + $0x100] sm:$0xf]
        %v1439 = vld [vmem:[%s1 + $0x104] sm:$0xf]
        %v1440 = vld [vmem:[%s1 + $0x108] sm:$0xf]
        %v1441 = vld [vmem:[%s1 + $0x10c] sm:$0xf]
        %v1442 = vld [vmem:[%s1 + $0x110] sm:$0xf]
        %v1443 = vld [vmem:[%s1 + $0x114] sm:$0xf]
        %v1444 = vld [vmem:[%s1 + $0x118] sm:$0xf]
        %v1445 = vld [vmem:[%s1 + $0x11c] sm:$0xf]
        %v1446 = vld [vmem:[%s1 + $0x120] sm:$0xf]
        %v1447 = vld [vmem:[%s1 + $0x124] sm:$0xf]
        %v1448 = vld [vmem:[%s1 + $0x128] sm:$0xf]
        %v1449 = vld [vmem:[%s1 + $0x12c] sm:$0xf]
        %v1450 = vld [vmem:[%s1 + $0x130] sm:$0xf]
        %v1451 = vld [vmem:[%s1 + $0x134] sm:$0xf]
        %v1452 = vld [vmem:[%s1 + $0x138] sm:$0xf]
        %v1453 = vld [vmem:[%s1 + $0x13c] sm:$0xf]
        %v1454 = vld [vmem:[%s1 + $0x140] sm:$0xf]
        %v1455 = vld [vmem:[%s1 + $0x144] sm:$0xf]
        %v1456 = vld [vmem:[%s1 + $0x148] sm:$0xf]
        %v1457 = vld [vmem:[%s1 + $0x14c] sm:$0xf]
        %v1458 = vld [vmem:[%s1 + $0x150] sm:$0xf]
        %v1459 = vld [vmem:[%s1 + $0x154] sm:$0xf]
        %v1460 = vld [vmem:[%s1 + $0x158] sm:$0xf]
        %v1461 = vld [vmem:[%s1 + $0x15c] sm:$0xf]
        %v1462 = vld [vmem:[%s1 + $0x160] sm:$0xf]
        %v1463 = vld [vmem:[%s1 + $0x164] sm:$0xf]
        %v1464 = vld [vmem:[%s1 + $0x168] sm:$0xf]
        %v1465 = vld [vmem:[%s1 + $0x16c] sm:$0xf]
        %v1466 = vld [vmem:[%s1 + $0x170] sm:$0xf]
        %v1467 = vld [vmem:[%s1 + $0x174] sm:$0xf]
        %v1468 = vld [vmem:[%s1 + $0x178] sm:$0xf]
        %v1469 = vld [vmem:[%s1 + $0x17c] sm:$0xf]
        %v1470 = vld [vmem:[%s1 + $0x180] sm:$0xf]
        %v1471 = vld [vmem:[%s1 + $0x184] sm:$0xf]
        %v1472 = vld [vmem:[%s1 + $0x188] sm:$0xf]
        %v1473 = vld [vmem:[%s1 + $0x18c] sm:$0xf]
        %v1474 = vld [vmem:[%s1 + $0x190] sm:$0xf]
        %v1475 = vld [vmem:[%s1 + $0x194] sm:$0xf]
        %v1476 = vld [vmem:[%s1 + $0x198] sm:$0xf]
        %v1477 = vld [vmem:[%s1 + $0x19c] sm:$0xf]
        %v1478 = vld [vmem:[%s1 + $0x1a0] sm:$0xf]
        %v1479 = vld [vmem:[%s1 + $0x1a4] sm:$0xf]
        %v1480 = vld [vmem:[%s1 + $0x1a8] sm:$0xf]
        %v1481 = vld [vmem:[%s1 + $0x1ac] sm:$0xf]
        %v1482 = vld [vmem:[%s1 + $0x1b0] sm:$0xf]
        %v1483 = vld [vmem:[%s1 + $0x1b4] sm:$0xf]
        %v1484 = vld [vmem:[%s1 + $0x1b8] sm:$0xf]
        %v1485 = vld [vmem:[%s1 + $0x1bc] sm:$0xf]
        %v1486 = vld [vmem:[%s1 + $0x1c0] sm:$0xf]
        %v1487 = vld [vmem:[%s1 + $0x1c4] sm:$0xf]
        %v1488 = vld [vmem:[%s1 + $0x1c8] sm:$0xf]
        %v1489 = vld [vmem:[%s1 + $0x1cc] sm:$0xf]
        %v1490 = vld [vmem:[%s1 + $0x1d0] sm:$0xf]
        %v1491 = vld [vmem:[%s1 + $0x1d4] sm:$0xf]
        %v1492 = vld [vmem:[%s1 + $0x1d8] sm:$0xf]
        %v1493 = vld [vmem:[%s1 + $0x1dc] sm:$0xf]
        %v1494 = vld [vmem:[%s1 + $0x1e0] sm:$0xf]
        %v1495 = vld [vmem:[%s1 + $0x1e4] sm:$0xf]
        %v1496 = vld [vmem:[%s1 + $0x1e8] sm:$0xf]
        %v1497 = vld [vmem:[%s1 + $0x1ec] sm:$0xf]
        %v1498 = vld [vmem:[%s1 + $0x1f0] sm:$0xf]
        %v1499 = vld [vmem:[%s1 + $0x1f4] sm:$0xf]
        %v1500 = vld [vmem:[%s1 + $0x1f8] sm:$0xf]
        %v1501 = vld [vmem:[%s1 + $0x1fc] sm:$0xf]
        %v1502 = vld [vmem:[%s4] sm:$0x1]
        %v1504 = vlaneseq
        %v1505 = vshrl.u32 %v1504, 7
        %v1506 = vsub.s32 0, %v1505
        %v1507 = vrot.slane %v1502, %v1506
        %v1637 = vunpack.c.l.b16 %v1374
        %v1638 = vunpack.c.l.b16 %v1375
        %v1639 = vunpack.c.l.b16 %v1376
        %v1640 = vunpack.c.l.b16 %v1377
        %v1641 = vunpack.c.l.b16 %v1378
        %v1642 = vunpack.c.l.b16 %v1379
        %v1643 = vunpack.c.l.b16 %v1380
        %v1644 = vunpack.c.l.b16 %v1381
        %v1645 = vunpack.c.l.b16 %v1382
        %v1646 = vunpack.c.l.b16 %v1383
        %v1647 = vunpack.c.l.b16 %v1384
        %v1648 = vunpack.c.l.b16 %v1385
        %v1649 = vunpack.c.l.b16 %v1386
        %v1650 = vunpack.c.l.b16 %v1387
        %v1651 = vunpack.c.l.b16 %v1388
        %v1652 = vunpack.c.l.b16 %v1389
        %v1653 = vunpack.c.l.b16 %v1390
        %v1654 = vunpack.c.l.b16 %v1391
        %v1655 = vunpack.c.l.b16 %v1392
        %v1656 = vunpack.c.l.b16 %v1393
        %v1657 = vunpack.c.l.b16 %v1394
        %v1658 = vunpack.c.l.b16 %v1395
        %v1659 = vunpack.c.l.b16 %v1396
        %v1660 = vunpack.c.l.b16 %v1397
        %v1661 = vunpack.c.l.b16 %v1398
        %v1662 = vunpack.c.l.b16 %v1399
        %v1663 = vunpack.c.l.b16 %v1400
        %v1664 = vunpack.c.l.b16 %v1401
        %v1665 = vunpack.c.l.b16 %v1402
        %v1666 = vunpack.c.l.b16 %v1403
        %v1667 = vunpack.c.l.b16 %v1404
        %v1668 = vunpack.c.l.b16 %v1405
        %v1669 = vunpack.c.l.b16 %v1406
        %v1670 = vunpack.c.l.b16 %v1407
        %v1671 = vunpack.c.l.b16 %v1408
        %v1672 = vunpack.c.l.b16 %v1409
        %v1673 = vunpack.c.l.b16 %v1410
        %v1674 = vunpack.c.l.b16 %v1411
        %v1675 = vunpack.c.l.b16 %v1412
        %v1676 = vunpack.c.l.b16 %v1413
        %v1677 = vunpack.c.l.b16 %v1414
        %v1678 = vunpack.c.l.b16 %v1415
        %v1679 = vunpack.c.l.b16 %v1416
        %v1680 = vunpack.c.l.b16 %v1417
        %v1681 = vunpack.c.l.b16 %v1418
        %v1682 = vunpack.c.l.b16 %v1419
        %v1683 = vunpack.c.l.b16 %v1420
        %v1684 = vunpack.c.l.b16 %v1421
        %v1685 = vunpack.c.l.b16 %v1422
        %v1686 = vunpack.c.l.b16 %v1423
        %v1687 = vunpack.c.l.b16 %v1424
        %v1688 = vunpack.c.l.b16 %v1425
        %v1689 = vunpack.c.l.b16 %v1426
        %v1690 = vunpack.c.l.b16 %v1427
        %v1691 = vunpack.c.l.b16 %v1428
        %v1692 = vunpack.c.l.b16 %v1429
        %v1693 = vunpack.c.l.b16 %v1430
        %v1694 = vunpack.c.l.b16 %v1431
        %v1695 = vunpack.c.l.b16 %v1432
        %v1696 = vunpack.c.l.b16 %v1433
        %v1697 = vunpack.c.l.b16 %v1434
        %v1698 = vunpack.c.l.b16 %v1435
        %v1699 = vunpack.c.l.b16 %v1436
        %v1700 = vunpack.c.l.b16 %v1437
        %v1701 = vunpack.c.l.b16 %v1438
        %v1702 = vunpack.c.l.b16 %v1439
        %v1703 = vunpack.c.l.b16 %v1440
        %v1704 = vunpack.c.l.b16 %v1441
        %v1705 = vunpack.c.l.b16 %v1442
        %v1706 = vunpack.c.l.b16 %v1443
        %v1707 = vunpack.c.l.b16 %v1444
        %v1708 = vunpack.c.l.b16 %v1445
        %v1709 = vunpack.c.l.b16 %v1446
        %v1710 = vunpack.c.l.b16 %v1447
        %v1711 = vunpack.c.l.b16 %v1448
        %v1712 = vunpack.c.l.b16 %v1449
        %v1713 = vunpack.c.l.b16 %v1450
        %v1714 = vunpack.c.l.b16 %v1451
        %v1715 = vunpack.c.l.b16 %v1452
        %v1716 = vunpack.c.l.b16 %v1453
        %v1717 = vunpack.c.l.b16 %v1454
        %v1718 = vunpack.c.l.b16 %v1455
        %v1719 = vunpack.c.l.b16 %v1456
        %v1720 = vunpack.c.l.b16 %v1457
        %v1721 = vunpack.c.l.b16 %v1458
        %v1722 = vunpack.c.l.b16 %v1459
        %v1723 = vunpack.c.l.b16 %v1460
        %v1724 = vunpack.c.l.b16 %v1461
        %v1725 = vunpack.c.l.b16 %v1462
        %v1726 = vunpack.c.l.b16 %v1463
        %v1727 = vunpack.c.l.b16 %v1464
        %v1728 = vunpack.c.l.b16 %v1465
        %v1729 = vunpack.c.l.b16 %v1466
        %v1730 = vunpack.c.l.b16 %v1467
        %v1731 = vunpack.c.l.b16 %v1468
        %v1732 = vunpack.c.l.b16 %v1469
        %v1733 = vunpack.c.l.b16 %v1470
        %v1734 = vunpack.c.l.b16 %v1471
        %v1735 = vunpack.c.l.b16 %v1472
        %v1736 = vunpack.c.l.b16 %v1473
        %v1737 = vunpack.c.l.b16 %v1474
        %v1738 = vunpack.c.l.b16 %v1475
        %v1739 = vunpack.c.l.b16 %v1476
        %v1740 = vunpack.c.l.b16 %v1477
        %v1741 = vunpack.c.l.b16 %v1478
        %v1742 = vunpack.c.l.b16 %v1479
        %v1743 = vunpack.c.l.b16 %v1480
        %v1744 = vunpack.c.l.b16 %v1481
        %v1745 = vunpack.c.l.b16 %v1482
        %v1746 = vunpack.c.l.b16 %v1483
        %v1747 = vunpack.c.l.b16 %v1484
        %v1748 = vunpack.c.l.b16 %v1485
        %v1749 = vunpack.c.l.b16 %v1486
        %v1750 = vunpack.c.l.b16 %v1487
        %v1751 = vunpack.c.l.b16 %v1488
        %v1752 = vunpack.c.l.b16 %v1489
        %v1753 = vunpack.c.l.b16 %v1490
        %v1754 = vunpack.c.l.b16 %v1491
        %v1755 = vunpack.c.l.b16 %v1492
        %v1756 = vunpack.c.l.b16 %v1493
        %v1757 = vunpack.c.l.b16 %v1494
        %v1758 = vunpack.c.l.b16 %v1495
        %v1759 = vunpack.c.l.b16 %v1496
        %v1760 = vunpack.c.l.b16 %v1497
        %v1761 = vunpack.c.l.b16 %v1498
        %v1762 = vunpack.c.l.b16 %v1499
        %v1763 = vunpack.c.l.b16 %v1500
        %v1764 = vunpack.c.l.b16 %v1501
        %v1765 = vpack.c.b16 %v1638, %v1637
        %v1766 = vpack.c.b16 %v1640, %v1639
        %v1767 = vpack.c.b16 %v1642, %v1641
        %v1768 = vpack.c.b16 %v1644, %v1643
        %v1769 = vpack.c.b16 %v1646, %v1645
        %v1770 = vpack.c.b16 %v1648, %v1647
        %v1771 = vpack.c.b16 %v1650, %v1649
        %v1772 = vpack.c.b16 %v1652, %v1651
        %v1773 = vpack.c.b16 %v1654, %v1653
        %v1774 = vpack.c.b16 %v1656, %v1655
        %v1775 = vpack.c.b16 %v1658, %v1657
        %v1776 = vpack.c.b16 %v1660, %v1659
        %v1777 = vpack.c.b16 %v1662, %v1661
        %v1778 = vpack.c.b16 %v1664, %v1663
        %v1779 = vpack.c.b16 %v1666, %v1665
        %v1780 = vpack.c.b16 %v1668, %v1667
        %v1781 = vpack.c.b16 %v1670, %v1669
        %v1782 = vpack.c.b16 %v1672, %v1671
        %v1783 = vpack.c.b16 %v1674, %v1673
        %v1784 = vpack.c.b16 %v1676, %v1675
        %v1785 = vpack.c.b16 %v1678, %v1677
        %v1786 = vpack.c.b16 %v1680, %v1679
        %v1787 = vpack.c.b16 %v1682, %v1681
        %v1788 = vpack.c.b16 %v1684, %v1683
        %v1789 = vpack.c.b16 %v1686, %v1685
        %v1790 = vpack.c.b16 %v1688, %v1687
        %v1791 = vpack.c.b16 %v1690, %v1689
        %v1792 = vpack.c.b16 %v1692, %v1691
        %v1793 = vpack.c.b16 %v1694, %v1693
        %v1794 = vpack.c.b16 %v1696, %v1695
        %v1795 = vpack.c.b16 %v1698, %v1697
        %v1796 = vpack.c.b16 %v1700, %v1699
        %v1797 = vpack.c.b16 %v1702, %v1701
        %v1798 = vpack.c.b16 %v1704, %v1703
        %v1799 = vpack.c.b16 %v1706, %v1705
        %v1800 = vpack.c.b16 %v1708, %v1707
        %v1801 = vpack.c.b16 %v1710, %v1709
        %v1802 = vpack.c.b16 %v1712, %v1711
        %v1803 = vpack.c.b16 %v1714, %v1713
        %v1804 = vpack.c.b16 %v1716, %v1715
        %v1805 = vpack.c.b16 %v1718, %v1717
        %v1806 = vpack.c.b16 %v1720, %v1719
        %v1807 = vpack.c.b16 %v1722, %v1721
        %v1808 = vpack.c.b16 %v1724, %v1723
        %v1809 = vpack.c.b16 %v1726, %v1725
        %v1810 = vpack.c.b16 %v1728, %v1727
        %v1811 = vpack.c.b16 %v1730, %v1729
        %v1812 = vpack.c.b16 %v1732, %v1731
        %v1813 = vpack.c.b16 %v1734, %v1733
        %v1814 = vpack.c.b16 %v1736, %v1735
        %v1815 = vpack.c.b16 %v1738, %v1737
        %v1816 = vpack.c.b16 %v1740, %v1739
        %v1817 = vpack.c.b16 %v1742, %v1741
        %v1818 = vpack.c.b16 %v1744, %v1743
        %v1819 = vpack.c.b16 %v1746, %v1745
        %v1820 = vpack.c.b16 %v1748, %v1747
        %v1821 = vpack.c.b16 %v1750, %v1749
        %v1822 = vpack.c.b16 %v1752, %v1751
        %v1823 = vpack.c.b16 %v1754, %v1753
        %v1824 = vpack.c.b16 %v1756, %v1755
        %v1825 = vpack.c.b16 %v1758, %v1757
        %v1826 = vpack.c.b16 %v1760, %v1759
        %v1827 = vpack.c.b16 %v1762, %v1761
        %v1828 = vpack.c.b16 %v1764, %v1763
        %1893 = vmatprep.subr.bf16.mxu0 0
        %1894 = vmatpush1.bf16.msra.mxu0 %v1765
        %1895 = vmatprep.subr.bf16.mxu0 0
        %1896 = vmatpush1.bf16.msra.mxu0 %v1766
        %1897 = vmatprep.subr.bf16.mxu0 0
        %1898 = vmatpush1.bf16.msra.mxu0 %v1767
        %1899 = vmatprep.subr.bf16.mxu0 0
        %1900 = vmatpush1.bf16.msra.mxu0 %v1768
        %1901 = vmatprep.subr.bf16.mxu0 0
        %1902 = vmatpush1.bf16.msra.mxu0 %v1769
        %1903 = vmatprep.subr.bf16.mxu0 0
        %1904 = vmatpush1.bf16.msra.mxu0 %v1770
        %1905 = vmatprep.subr.bf16.mxu0 0
        %1906 = vmatpush1.bf16.msra.mxu0 %v1771
        %1907 = vmatprep.subr.bf16.mxu0 0
        %1908 = vmatpush1.bf16.msra.mxu0 %v1772
        %1909 = vmatprep.subr.bf16.mxu0 0
        %1910 = vmatpush1.bf16.msra.mxu0 %v1773
        %1911 = vmatprep.subr.bf16.mxu0 0
        %1912 = vmatpush1.bf16.msra.mxu0 %v1774
        %1913 = vmatprep.subr.bf16.mxu0 0
        %1914 = vmatpush1.bf16.msra.mxu0 %v1775
        %1915 = vmatprep.subr.bf16.mxu0 0
        %1916 = vmatpush1.bf16.msra.mxu0 %v1776
        %1917 = vmatprep.subr.bf16.mxu0 0
        %1918 = vmatpush1.bf16.msra.mxu0 %v1777
        %1919 = vmatprep.subr.bf16.mxu0 0
        %1920 = vmatpush1.bf16.msra.mxu0 %v1778
        %1921 = vmatprep.subr.bf16.mxu0 0
        %1922 = vmatpush1.bf16.msra.mxu0 %v1779
        %1923 = vmatprep.subr.bf16.mxu0 0
        %1924 = vmatpush1.bf16.msra.mxu0 %v1780
        %1925 = vmatprep.mubr.bf16.mxu0 %v1311
        %1926 = vmatmul.mubr.bf16.gmra.mrb[0].mxu0 %v1310
        %v1927 = vpop.f32.mrb[0].mxu0
        %v1928 = vadd.f32 %v1507, %v1927
        %v1929 = vpop.f32.mrb[0].mxu0
        %v1930 = vpop.f32.mrb[0].mxu0
        %v1931 = vadd.f32 %v1507, %v1930
        %v1932 = vpop.f32.mrb[0].mxu0
        %1933 = vmatprep.mubr.bf16.mxu0 %v1319
        %1934 = vmatmul.mubr.bf16.gmra.mrb[0].mxu0 %v1318
        %v1935 = vpop.f32.mrb[0].mxu0
        %v1936 = vadd.f32 %v1507, %v1935
        %v1937 = vpop.f32.mrb[0].mxu0
        %v1938 = vpop.f32.mrb[0].mxu0
        %v1939 = vadd.f32 %v1507, %v1938
        %v1940 = vpop.f32.mrb[0].mxu0
        %1941 = vmatprep.mubr.bf16.mxu0 %v1327
        %1942 = vmatmul.mubr.bf16.gmra.mrb[0].mxu0 %v1326
        %v1943 = vpop.f32.mrb[0].mxu0
        %v1944 = vadd.f32 %v1507, %v1943
        %v1945 = vpop.f32.mrb[0].mxu0
        %v1946 = vpop.f32.mrb[0].mxu0
        %v1947 = vadd.f32 %v1507, %v1946
        %v1948 = vpop.f32.mrb[0].mxu0
        %1949 = vmatprep.mubr.bf16.mxu0 %v1335
        %1950 = vmatmul.mubr.bf16.gmra.mrb[0].mxu0 %v1334
        %v1951 = vpop.f32.mrb[0].mxu0
        %v1952 = vadd.f32 %v1507, %v1951
        %v1953 = vpop.f32.mrb[0].mxu0
        %v1954 = vpop.f32.mrb[0].mxu0
        %v1955 = vadd.f32 %v1507, %v1954
        %v1956 = vpop.f32.mrb[0].mxu0
        %1957 = vmatprep.mubr.bf16.mxu0 %v1343
        %1958 = vmatmul.mubr.bf16.gmra.mrb[0].mxu0 %v1342
        %v1959 = vpop.f32.mrb[0].mxu0
        %v1960 = vadd.f32 %v1507, %v1959
        %v1961 = vpop.f32.mrb[0].mxu0
        %v1962 = vpop.f32.mrb[0].mxu0
        %v1963 = vadd.f32 %v1507, %v1962
        %v1964 = vpop.f32.mrb[0].mxu0
        %1965 = vmatprep.mubr.bf16.mxu0 %v1351
        %1966 = vmatmul.mubr.bf16.gmra.mrb[0].mxu0 %v1350
        %v1967 = vpop.f32.mrb[0].mxu0
        %v1968 = vadd.f32 %v1507, %v1967
        %v1969 = vpop.f32.mrb[0].mxu0
        %v1970 = vpop.f32.mrb[0].mxu0
        %v1971 = vadd.f32 %v1507, %v1970
        %v1972 = vpop.f32.mrb[0].mxu0
        %1973 = vmatprep.mubr.bf16.mxu0 %v1359
        %1974 = vmatmul.mubr.bf16.gmra.mrb[0].mxu0 %v1358
        %v1975 = vpop.f32.mrb[0].mxu0
        %v1976 = vadd.f32 %v1507, %v1975
        %v1977 = vpop.f32.mrb[0].mxu0
        %v1978 = vpop.f32.mrb[0].mxu0
        %v1979 = vadd.f32 %v1507, %v1978
        %v1980 = vpop.f32.mrb[0].mxu0
        %1981 = vmatprep.mubr.bf16.mxu0 %v1367
        %1982 = vmatmul.mubr.bf16.gmra.mrb[0].mxu0 %v1366
        %v1983 = vpop.f32.mrb[0].mxu0
        %v1984 = vadd.f32 %v1507, %v1983
        %v1985 = vpop.f32.mrb[0].mxu0
        %v1986 = vpop.f32.mrb[0].mxu0
        %v1987 = vadd.f32 %v1507, %v1986
        %v1988 = vpop.f32.mrb[0].mxu0
        %1989 = vdwg.mxu0
        %1990 = vmatprep.subr.bf16.mxu0 0
        %1991 = vmatpush1.bf16.msra.mxu0 %v1781
        %1992 = vmatprep.subr.bf16.mxu0 0
        %1993 = vmatpush1.bf16.msra.mxu0 %v1782
        %1994 = vmatprep.subr.bf16.mxu0 0
        %1995 = vmatpush1.bf16.msra.mxu0 %v1783
        %1996 = vmatprep.subr.bf16.mxu0 0
        %1997 = vmatpush1.bf16.msra.mxu0 %v1784
        %1998 = vmatprep.subr.bf16.mxu0 0
        %1999 = vmatpush1.bf16.msra.mxu0 %v1785
        %2000 = vmatprep.subr.bf16.mxu0 0
        %2001 = vmatpush1.bf16.msra.mxu0 %v1786
        %2002 = vmatprep.subr.bf16.mxu0 0
        %2003 = vmatpush1.bf16.msra.mxu0 %v1787
        %2004 = vmatprep.subr.bf16.mxu0 0
        %2005 = vmatpush1.bf16.msra.mxu0 %v1788
        %2006 = vmatprep.subr.bf16.mxu0 0
        %2007 = vmatpush1.bf16.msra.mxu0 %v1789
        %2008 = vmatprep.subr.bf16.mxu0 0
        %2009 = vmatpush1.bf16.msra.mxu0 %v1790
        %2010 = vmatprep.subr.bf16.mxu0 0
        %2011 = vmatpush1.bf16.msra.mxu0 %v1791
        %2012 = vmatprep.subr.bf16.mxu0 0
        %2013 = vmatpush1.bf16.msra.mxu0 %v1792
        %2014 = vmatprep.subr.bf16.mxu0 0
        %2015 = vmatpush1.bf16.msra.mxu0 %v1793
        %2016 = vmatprep.subr.bf16.mxu0 0
        %2017 = vmatpush1.bf16.msra.mxu0 %v1794
        %2018 = vmatprep.subr.bf16.mxu0 0
        %2019 = vmatpush1.bf16.msra.mxu0 %v1795
        %2020 = vmatprep.subr.bf16.mxu0 0
        %2021 = vmatpush1.bf16.msra.mxu0 %v1796
        %2022 = vmatprep.mubr.bf16.mxu0 %v1313
        %2023 = vmatmul.mubr.bf16.gmra.mrb[0].mxu0 %v1312
        %v2024 = vpop.f32.mrb[0].mxu0
        %v2025 = vadd.f32 %v1928, %v2024
        %v2026 = vpop.f32.mrb[0].mxu0
        %v2027 = vpop.f32.mrb[0].mxu0
        %v2028 = vadd.f32 %v1931, %v2027
        %v2029 = vpop.f32.mrb[0].mxu0
        %2030 = vmatprep.mubr.bf16.mxu0 %v1321
        %2031 = vmatmul.mubr.bf16.gmra.mrb[0].mxu0 %v1320
        %v2032 = vpop.f32.mrb[0].mxu0
        %v2033 = vadd.f32 %v1936, %v2032
        %v2034 = vpop.f32.mrb[0].mxu0
        %v2035 = vpop.f32.mrb[0].mxu0
        %v2036 = vadd.f32 %v1939, %v2035
        %v2037 = vpop.f32.mrb[0].mxu0
        %2038 = vmatprep.mubr.bf16.mxu0 %v1329
        %2039 = vmatmul.mubr.bf16.gmra.mrb[0].mxu0 %v1328
        %v2040 = vpop.f32.mrb[0].mxu0
        %v2041 = vadd.f32 %v1944, %v2040
        %v2042 = vpop.f32.mrb[0].mxu0
        %v2043 = vpop.f32.mrb[0].mxu0
        %v2044 = vadd.f32 %v1947, %v2043
        %v2045 = vpop.f32.mrb[0].mxu0
        %2046 = vmatprep.mubr.bf16.mxu0 %v1337
        %2047 = vmatmul.mubr.bf16.gmra.mrb[0].mxu0 %v1336
        %v2048 = vpop.f32.mrb[0].mxu0
        %v2049 = vadd.f32 %v1952, %v2048
        %v2050 = vpop.f32.mrb[0].mxu0
        %v2051 = vpop.f32.mrb[0].mxu0
        %v2052 = vadd.f32 %v1955, %v2051
        %v2053 = vpop.f32.mrb[0].mxu0
        %2054 = vmatprep.mubr.bf16.mxu0 %v1345
        %2055 = vmatmul.mubr.bf16.gmra.mrb[0].mxu0 %v1344
        %v2056 = vpop.f32.mrb[0].mxu0
        %v2057 = vadd.f32 %v1960, %v2056
        %v2058 = vpop.f32.mrb[0].mxu0
        %v2059 = vpop.f32.mrb[0].mxu0
        %v2060 = vadd.f32 %v1963, %v2059
        %v2061 = vpop.f32.mrb[0].mxu0
        %2062 = vmatprep.mubr.bf16.mxu0 %v1353
        %2063 = vmatmul.mubr.bf16.gmra.mrb[0].mxu0 %v1352
        %v2064 = vpop.f32.mrb[0].mxu0
        %v2065 = vadd.f32 %v1968, %v2064
        %v2066 = vpop.f32.mrb[0].mxu0
        %v2067 = vpop.f32.mrb[0].mxu0
        %v2068 = vadd.f32 %v1971, %v2067
        %v2069 = vpop.f32.mrb[0].mxu0
        %2070 = vmatprep.mubr.bf16.mxu0 %v1361
        %2071 = vmatmul.mubr.bf16.gmra.mrb[0].mxu0 %v1360
        %v2072 = vpop.f32.mrb[0].mxu0
        %v2073 = vadd.f32 %v1976, %v2072
        %v2074 = vpop.f32.mrb[0].mxu0
        %v2075 = vpop.f32.mrb[0].mxu0
        %v2076 = vadd.f32 %v1979, %v2075
        %v2077 = vpop.f32.mrb[0].mxu0
        %2078 = vmatprep.mubr.bf16.mxu0 %v1369
        %2079 = vmatmul.mubr.bf16.gmra.mrb[0].mxu0 %v1368
        %v2080 = vpop.f32.mrb[0].mxu0
        %v2081 = vadd.f32 %v1984, %v2080
        %v2082 = vpop.f32.mrb[0].mxu0
        %v2083 = vpop.f32.mrb[0].mxu0
        %v2084 = vadd.f32 %v1987, %v2083
        %v2085 = vpop.f32.mrb[0].mxu0
        %2086 = vdwg.mxu0
        %2087 = vmatprep.subr.bf16.mxu0 0
        %2088 = vmatpush1.bf16.msra.mxu0 %v1797
        %2089 = vmatprep.subr.bf16.mxu0 0
        %2090 = vmatpush1.bf16.msra.mxu0 %v1798
        %2091 = vmatprep.subr.bf16.mxu0 0
        %2092 = vmatpush1.bf16.msra.mxu0 %v1799
        %2093 = vmatprep.subr.bf16.mxu0 0
        %2094 = vmatpush1.bf16.msra.mxu0 %v1800
        %2095 = vmatprep.subr.bf16.mxu0 0
        %2096 = vmatpush1.bf16.msra.mxu0 %v1801
        %2097 = vmatprep.subr.bf16.mxu0 0
        %2098 = vmatpush1.bf16.msra.mxu0 %v1802
        %2099 = vmatprep.subr.bf16.mxu0 0
        %2100 = vmatpush1.bf16.msra.mxu0 %v1803
        %2101 = vmatprep.subr.bf16.mxu0 0
        %2102 = vmatpush1.bf16.msra.mxu0 %v1804
        %2103 = vmatprep.subr.bf16.mxu0 0
        %2104 = vmatpush1.bf16.msra.mxu0 %v1805
        %2105 = vmatprep.subr.bf16.mxu0 0
        %2106 = vmatpush1.bf16.msra.mxu0 %v1806
        %2107 = vmatprep.subr.bf16.mxu0 0
        %2108 = vmatpush1.bf16.msra.mxu0 %v1807
        %2109 = vmatprep.subr.bf16.mxu0 0
        %2110 = vmatpush1.bf16.msra.mxu0 %v1808
        %2111 = vmatprep.subr.bf16.mxu0 0
        %2112 = vmatpush1.bf16.msra.mxu0 %v1809
        %2113 = vmatprep.subr.bf16.mxu0 0
        %2114 = vmatpush1.bf16.msra.mxu0 %v1810
        %2115 = vmatprep.subr.bf16.mxu0 0
        %2116 = vmatpush1.bf16.msra.mxu0 %v1811
        %2117 = vmatprep.subr.bf16.mxu0 0
        %2118 = vmatpush1.bf16.msra.mxu0 %v1812
        %2119 = vmatprep.mubr.bf16.mxu0 %v1315
        %2120 = vmatmul.mubr.bf16.gmra.mrb[0].mxu0 %v1314
        %v2121 = vpop.f32.mrb[0].mxu0
        %v2122 = vadd.f32 %v2025, %v2121
        %v2123 = vpop.f32.mrb[0].mxu0
        %v2124 = vpop.f32.mrb[0].mxu0
        %v2125 = vadd.f32 %v2028, %v2124
        %v2126 = vpop.f32.mrb[0].mxu0
        %2127 = vmatprep.mubr.bf16.mxu0 %v1323
        %2128 = vmatmul.mubr.bf16.gmra.mrb[0].mxu0 %v1322
        %v2129 = vpop.f32.mrb[0].mxu0
        %v2130 = vadd.f32 %v2033, %v2129
        %v2131 = vpop.f32.mrb[0].mxu0
        %v2132 = vpop.f32.mrb[0].mxu0
        %v2133 = vadd.f32 %v2036, %v2132
        %v2134 = vpop.f32.mrb[0].mxu0
        %2135 = vmatprep.mubr.bf16.mxu0 %v1331
        %2136 = vmatmul.mubr.bf16.gmra.mrb[0].mxu0 %v1330
        %v2137 = vpop.f32.mrb[0].mxu0
        %v2138 = vadd.f32 %v2041, %v2137
        %v2139 = vpop.f32.mrb[0].mxu0
        %v2140 = vpop.f32.mrb[0].mxu0
        %v2141 = vadd.f32 %v2044, %v2140
        %v2142 = vpop.f32.mrb[0].mxu0
        %2143 = vmatprep.mubr.bf16.mxu0 %v1339
        %2144 = vmatmul.mubr.bf16.gmra.mrb[0].mxu0 %v1338
        %v2145 = vpop.f32.mrb[0].mxu0
        %v2146 = vadd.f32 %v2049, %v2145
        %v2147 = vpop.f32.mrb[0].mxu0
        %v2148 = vpop.f32.mrb[0].mxu0
        %v2149 = vadd.f32 %v2052, %v2148
        %v2150 = vpop.f32.mrb[0].mxu0
        %2151 = vmatprep.mubr.bf16.mxu0 %v1347
        %2152 = vmatmul.mubr.bf16.gmra.mrb[0].mxu0 %v1346
        %v2153 = vpop.f32.mrb[0].mxu0
        %v2154 = vadd.f32 %v2057, %v2153
        %v2155 = vpop.f32.mrb[0].mxu0
        %v2156 = vpop.f32.mrb[0].mxu0
        %v2157 = vadd.f32 %v2060, %v2156
        %v2158 = vpop.f32.mrb[0].mxu0
        %2159 = vmatprep.mubr.bf16.mxu0 %v1355
        %2160 = vmatmul.mubr.bf16.gmra.mrb[0].mxu0 %v1354
        %v2161 = vpop.f32.mrb[0].mxu0
        %v2162 = vadd.f32 %v2065, %v2161
        %v2163 = vpop.f32.mrb[0].mxu0
        %v2164 = vpop.f32.mrb[0].mxu0
        %v2165 = vadd.f32 %v2068, %v2164
        %v2166 = vpop.f32.mrb[0].mxu0
        %2167 = vmatprep.mubr.bf16.mxu0 %v1363
        %2168 = vmatmul.mubr.bf16.gmra.mrb[0].mxu0 %v1362
        %v2169 = vpop.f32.mrb[0].mxu0
        %v2170 = vadd.f32 %v2073, %v2169
        %v2171 = vpop.f32.mrb[0].mxu0
        %v2172 = vpop.f32.mrb[0].mxu0
        %v2173 = vadd.f32 %v2076, %v2172
        %v2174 = vpop.f32.mrb[0].mxu0
        %2175 = vmatprep.mubr.bf16.mxu0 %v1371
        %2176 = vmatmul.mubr.bf16.gmra.mrb[0].mxu0 %v1370
        %v2177 = vpop.f32.mrb[0].mxu0
        %v2178 = vadd.f32 %v2081, %v2177
        %v2179 = vpop.f32.mrb[0].mxu0
        %v2180 = vpop.f32.mrb[0].mxu0
        %v2181 = vadd.f32 %v2084, %v2180
        %v2182 = vpop.f32.mrb[0].mxu0
        %2183 = vdwg.mxu0
        %2184 = vmatprep.subr.bf16.mxu0 0
        %2185 = vmatpush1.bf16.msra.mxu0 %v1813
        %2186 = vmatprep.subr.bf16.mxu0 0
        %2187 = vmatpush1.bf16.msra.mxu0 %v1814
        %2188 = vmatprep.subr.bf16.mxu0 0
        %2189 = vmatpush1.bf16.msra.mxu0 %v1815
        %2190 = vmatprep.subr.bf16.mxu0 0
        %2191 = vmatpush1.bf16.msra.mxu0 %v1816
        %2192 = vmatprep.subr.bf16.mxu0 0
        %2193 = vmatpush1.bf16.msra.mxu0 %v1817
        %2194 = vmatprep.subr.bf16.mxu0 0
        %2195 = vmatpush1.bf16.msra.mxu0 %v1818
        %2196 = vmatprep.subr.bf16.mxu0 0
        %2197 = vmatpush1.bf16.msra.mxu0 %v1819
        %2198 = vmatprep.subr.bf16.mxu0 0
        %2199 = vmatpush1.bf16.msra.mxu0 %v1820
        %2200 = vmatprep.subr.bf16.mxu0 0
        %2201 = vmatpush1.bf16.msra.mxu0 %v1821
        %2202 = vmatprep.subr.bf16.mxu0 0
        %2203 = vmatpush1.bf16.msra.mxu0 %v1822
        %2204 = vmatprep.subr.bf16.mxu0 0
        %2205 = vmatpush1.bf16.msra.mxu0 %v1823
        %2206 = vmatprep.subr.bf16.mxu0 0
        %2207 = vmatpush1.bf16.msra.mxu0 %v1824
        %2208 = vmatprep.subr.bf16.mxu0 0
        %2209 = vmatpush1.bf16.msra.mxu0 %v1825
        %2210 = vmatprep.subr.bf16.mxu0 0
        %2211 = vmatpush1.bf16.msra.mxu0 %v1826
        %2212 = vmatprep.subr.bf16.mxu0 0
        %2213 = vmatpush1.bf16.msra.mxu0 %v1827
        %2214 = vmatprep.subr.bf16.mxu0 0
        %2215 = vmatpush1.bf16.msra.mxu0 %v1828
        %2216 = vmatprep.mubr.bf16.mxu0 %v1317
        %2217 = vmatmul.mubr.bf16.gmra.mrb[0].mxu0 %v1316
        %v2218 = vpop.f32.mrb[0].mxu0
        %v2219 = vadd.f32 %v2122, %v2218
        %v2220 = vpop.f32.mrb[0].mxu0
        %v2221 = vpop.f32.mrb[0].mxu0
        %v2222 = vadd.f32 %v2125, %v2221
        %v2223 = vpop.f32.mrb[0].mxu0
        %2224 = vmatprep.mubr.bf16.mxu0 %v1325
        %2225 = vmatmul.mubr.bf16.gmra.mrb[0].mxu0 %v1324
        %v2226 = vpop.f32.mrb[0].mxu0
        %v2227 = vadd.f32 %v2130, %v2226
        %v2228 = vpop.f32.mrb[0].mxu0
        %v2229 = vpop.f32.mrb[0].mxu0
        %v2230 = vadd.f32 %v2133, %v2229
        %v2231 = vpop.f32.mrb[0].mxu0
        %2232 = vmatprep.mubr.bf16.mxu0 %v1333
        %2233 = vmatmul.mubr.bf16.gmra.mrb[0].mxu0 %v1332
        %v2234 = vpop.f32.mrb[0].mxu0
        %v2235 = vadd.f32 %v2138, %v2234
        %v2236 = vpop.f32.mrb[0].mxu0
        %v2237 = vpop.f32.mrb[0].mxu0
        %v2238 = vadd.f32 %v2141, %v2237
        %v2239 = vpop.f32.mrb[0].mxu0
        %2240 = vmatprep.mubr.bf16.mxu0 %v1341
        %2241 = vmatmul.mubr.bf16.gmra.mrb[0].mxu0 %v1340
        %v2242 = vpop.f32.mrb[0].mxu0
        %v2243 = vadd.f32 %v2146, %v2242
        %v2244 = vpop.f32.mrb[0].mxu0
        %v2245 = vpop.f32.mrb[0].mxu0
        %v2246 = vadd.f32 %v2149, %v2245
        %v2247 = vpop.f32.mrb[0].mxu0
        %2248 = vmatprep.mubr.bf16.mxu0 %v1349
        %2249 = vmatmul.mubr.bf16.gmra.mrb[0].mxu0 %v1348
        %v2250 = vpop.f32.mrb[0].mxu0
        %v2251 = vadd.f32 %v2154, %v2250
        %v2252 = vpop.f32.mrb[0].mxu0
        %v2253 = vpop.f32.mrb[0].mxu0
        %v2254 = vadd.f32 %v2157, %v2253
        %v2255 = vpop.f32.mrb[0].mxu0
        %2256 = vmatprep.mubr.bf16.mxu0 %v1357
        %2257 = vmatmul.mubr.bf16.gmra.mrb[0].mxu0 %v1356
        %v2258 = vpop.f32.mrb[0].mxu0
        %v2259 = vadd.f32 %v2162, %v2258
        %v2260 = vpop.f32.mrb[0].mxu0
        %v2261 = vpop.f32.mrb[0].mxu0
        %v2262 = vadd.f32 %v2165, %v2261
        %v2263 = vpop.f32.mrb[0].mxu0
        %2264 = vmatprep.mubr.bf16.mxu0 %v1365
        %2265 = vmatmul.mubr.bf16.gmra.mrb[0].mxu0 %v1364
        %v2266 = vpop.f32.mrb[0].mxu0
        %v2267 = vadd.f32 %v2170, %v2266
        %v2268 = vpop.f32.mrb[0].mxu0
        %v2269 = vpop.f32.mrb[0].mxu0
        %v2270 = vadd.f32 %v2173, %v2269
        %v2271 = vpop.f32.mrb[0].mxu0
        %2272 = vmatprep.mubr.bf16.mxu0 %v1373
        %2273 = vmatmul.mubr.bf16.gmra.mrb[0].mxu0 %v1372
        %v2274 = vpop.f32.mrb[0].mxu0
        %v2275 = vadd.f32 %v2178, %v2274
        %v2276 = vpop.f32.mrb[0].mxu0
        %v2277 = vpop.f32.mrb[0].mxu0
        %v2278 = vadd.f32 %v2181, %v2277
        %v2279 = vpop.f32.mrb[0].mxu0
        %2280 = vdwg.mxu0
        %v2281 = vtanh.pop %v2219
        %v2282 = vtanh.pop %v2222
        %v2283 = vtanh.pop %v2227
        %v2284 = vtanh.pop %v2230
        %v2285 = vtanh.pop %v2235
        %v2286 = vtanh.pop %v2238
        %v2287 = vtanh.pop %v2243
        %v2288 = vtanh.pop %v2246
        %v2289 = vtanh.pop %v2251
        %v2290 = vtanh.pop %v2254
        %v2291 = vtanh.pop %v2259
        %v2292 = vtanh.pop %v2262
        %v2293 = vtanh.pop %v2267
        %v2294 = vtanh.pop %v2270
        %v2295 = vtanh.pop %v2275
        %v2296 = vtanh.pop %v2278
        %v2297 = vpack.c.bf16 %v2282, %v2281
        %v2298 = vpack.c.bf16 %v2284, %v2283
        %v2299 = vpack.c.bf16 %v2286, %v2285
        %v2300 = vpack.c.bf16 %v2288, %v2287
        %v2301 = vpack.c.bf16 %v2290, %v2289
        %v2302 = vpack.c.bf16 %v2292, %v2291
        %v2303 = vpack.c.bf16 %v2294, %v2293
        %v2304 = vpack.c.bf16 %v2296, %v2295
        %v2305 = vld [vmem:[#allocation3] sm:$0xf]
        %v2306 = vld [vmem:[#allocation3 + $0x4] sm:$0xf]
        %v2307 = vld [vmem:[#allocation3 + $0x8] sm:$0xf]
        %v2308 = vld [vmem:[#allocation3 + $0xc] sm:$0xf]
        %v2309 = vld [vmem:[#allocation3 + $0x10] sm:$0xf]
        %v2310 = vld [vmem:[#allocation3 + $0x14] sm:$0xf]
        %v2311 = vld [vmem:[#allocation3 + $0x18] sm:$0xf]
        %v2312 = vld [vmem:[#allocation3 + $0x1c] sm:$0xf]
        %v2313 = vld [vmem:[#allocation3 + $0x20] sm:$0xf]
        %v2314 = vld [vmem:[#allocation3 + $0x24] sm:$0xf]
        %v2315 = vld [vmem:[#allocation3 + $0x28] sm:$0xf]
        %v2316 = vld [vmem:[#allocation3 + $0x2c] sm:$0xf]
        %v2317 = vld [vmem:[#allocation3 + $0x30] sm:$0xf]
        %v2318 = vld [vmem:[#allocation3 + $0x34] sm:$0xf]
        %v2319 = vld [vmem:[#allocation3 + $0x38] sm:$0xf]
        %v2320 = vld [vmem:[#allocation3 + $0x3c] sm:$0xf]
        %v2321 = vld [vmem:[#allocation3 + $0x40] sm:$0xf]
        %v2322 = vld [vmem:[#allocation3 + $0x44] sm:$0xf]
        %v2323 = vld [vmem:[#allocation3 + $0x48] sm:$0xf]
        %v2324 = vld [vmem:[#allocation3 + $0x4c] sm:$0xf]
        %v2325 = vld [vmem:[#allocation3 + $0x50] sm:$0xf]
        %v2326 = vld [vmem:[#allocation3 + $0x54] sm:$0xf]
        %v2327 = vld [vmem:[#allocation3 + $0x58] sm:$0xf]
        %v2328 = vld [vmem:[#allocation3 + $0x5c] sm:$0xf]
        %v2329 = vld [vmem:[#allocation3 + $0x60] sm:$0xf]
        %v2330 = vld [vmem:[#allocation3 + $0x64] sm:$0xf]
        %v2331 = vld [vmem:[#allocation3 + $0x68] sm:$0xf]
        %v2332 = vld [vmem:[#allocation3 + $0x6c] sm:$0xf]
        %v2333 = vld [vmem:[#allocation3 + $0x70] sm:$0xf]
        %v2334 = vld [vmem:[#allocation3 + $0x74] sm:$0xf]
        %v2335 = vld [vmem:[#allocation3 + $0x78] sm:$0xf]
        %v2336 = vld [vmem:[#allocation3 + $0x7c] sm:$0xf]
        %v2337 = vld [vmem:[#allocation3 + $0x80] sm:$0xf]
        %v2338 = vld [vmem:[#allocation3 + $0x84] sm:$0xf]
        %v2339 = vld [vmem:[#allocation3 + $0x88] sm:$0xf]
        %v2340 = vld [vmem:[#allocation3 + $0x8c] sm:$0xf]
        %v2341 = vld [vmem:[#allocation3 + $0x90] sm:$0xf]
        %v2342 = vld [vmem:[#allocation3 + $0x94] sm:$0xf]
        %v2343 = vld [vmem:[#allocation3 + $0x98] sm:$0xf]
        %v2344 = vld [vmem:[#allocation3 + $0x9c] sm:$0xf]
        %v2345 = vld [vmem:[#allocation3 + $0xa0] sm:$0xf]
        %v2346 = vld [vmem:[#allocation3 + $0xa4] sm:$0xf]
        %v2347 = vld [vmem:[#allocation3 + $0xa8] sm:$0xf]
        %v2348 = vld [vmem:[#allocation3 + $0xac] sm:$0xf]
        %v2349 = vld [vmem:[#allocation3 + $0xb0] sm:$0xf]
        %v2350 = vld [vmem:[#allocation3 + $0xb4] sm:$0xf]
        %v2351 = vld [vmem:[#allocation3 + $0xb8] sm:$0xf]
        %v2352 = vld [vmem:[#allocation3 + $0xbc] sm:$0xf]
        %v2353 = vld [vmem:[#allocation3 + $0xc0] sm:$0xf]
        %v2354 = vld [vmem:[#allocation3 + $0xc4] sm:$0xf]
        %v2355 = vld [vmem:[#allocation3 + $0xc8] sm:$0xf]
        %v2356 = vld [vmem:[#allocation3 + $0xcc] sm:$0xf]
        %v2357 = vld [vmem:[#allocation3 + $0xd0] sm:$0xf]
        %v2358 = vld [vmem:[#allocation3 + $0xd4] sm:$0xf]
        %v2359 = vld [vmem:[#allocation3 + $0xd8] sm:$0xf]
        %v2360 = vld [vmem:[#allocation3 + $0xdc] sm:$0xf]
        %v2361 = vld [vmem:[#allocation3 + $0xe0] sm:$0xf]
        %v2362 = vld [vmem:[#allocation3 + $0xe4] sm:$0xf]
        %v2363 = vld [vmem:[#allocation3 + $0xe8] sm:$0xf]
        %v2364 = vld [vmem:[#allocation3 + $0xec] sm:$0xf]
        %v2365 = vld [vmem:[#allocation3 + $0xf0] sm:$0xf]
        %v2366 = vld [vmem:[#allocation3 + $0xf4] sm:$0xf]
        %v2367 = vld [vmem:[#allocation3 + $0xf8] sm:$0xf]
        %v2368 = vld [vmem:[#allocation3 + $0xfc] sm:$0xf]
        %v2369 = vld [vmem:[#allocation3 + $0x100] sm:$0xf]
        %v2370 = vld [vmem:[#allocation3 + $0x104] sm:$0xf]
        %v2371 = vld [vmem:[#allocation3 + $0x108] sm:$0xf]
        %v2372 = vld [vmem:[#allocation3 + $0x10c] sm:$0xf]
        %v2373 = vld [vmem:[#allocation3 + $0x110] sm:$0xf]
        %v2374 = vld [vmem:[#allocation3 + $0x114] sm:$0xf]
        %v2375 = vld [vmem:[#allocation3 + $0x118] sm:$0xf]
        %v2376 = vld [vmem:[#allocation3 + $0x11c] sm:$0xf]
        %v2377 = vld [vmem:[#allocation3 + $0x120] sm:$0xf]
        %v2378 = vld [vmem:[#allocation3 + $0x124] sm:$0xf]
        %v2379 = vld [vmem:[#allocation3 + $0x128] sm:$0xf]
        %v2380 = vld [vmem:[#allocation3 + $0x12c] sm:$0xf]
        %v2381 = vld [vmem:[#allocation3 + $0x130] sm:$0xf]
        %v2382 = vld [vmem:[#allocation3 + $0x134] sm:$0xf]
        %v2383 = vld [vmem:[#allocation3 + $0x138] sm:$0xf]
        %v2384 = vld [vmem:[#allocation3 + $0x13c] sm:$0xf]
        %v2385 = vld [vmem:[#allocation3 + $0x140] sm:$0xf]
        %v2386 = vld [vmem:[#allocation3 + $0x144] sm:$0xf]
        %v2387 = vld [vmem:[#allocation3 + $0x148] sm:$0xf]
        %v2388 = vld [vmem:[#allocation3 + $0x14c] sm:$0xf]
        %v2389 = vld [vmem:[#allocation3 + $0x150] sm:$0xf]
        %v2390 = vld [vmem:[#allocation3 + $0x154] sm:$0xf]
        %v2391 = vld [vmem:[#allocation3 + $0x158] sm:$0xf]
        %v2392 = vld [vmem:[#allocation3 + $0x15c] sm:$0xf]
        %v2393 = vld [vmem:[#allocation3 + $0x160] sm:$0xf]
        %v2394 = vld [vmem:[#allocation3 + $0x164] sm:$0xf]
        %v2395 = vld [vmem:[#allocation3 + $0x168] sm:$0xf]
        %v2396 = vld [vmem:[#allocation3 + $0x16c] sm:$0xf]
        %v2397 = vld [vmem:[#allocation3 + $0x170] sm:$0xf]
        %v2398 = vld [vmem:[#allocation3 + $0x174] sm:$0xf]
        %v2399 = vld [vmem:[#allocation3 + $0x178] sm:$0xf]
        %v2400 = vld [vmem:[#allocation3 + $0x17c] sm:$0xf]
        %v2401 = vld [vmem:[#allocation3 + $0x180] sm:$0xf]
        %v2402 = vld [vmem:[#allocation3 + $0x184] sm:$0xf]
        %v2403 = vld [vmem:[#allocation3 + $0x188] sm:$0xf]
        %v2404 = vld [vmem:[#allocation3 + $0x18c] sm:$0xf]
        %v2405 = vld [vmem:[#allocation3 + $0x190] sm:$0xf]
        %v2406 = vld [vmem:[#allocation3 + $0x194] sm:$0xf]
        %v2407 = vld [vmem:[#allocation3 + $0x198] sm:$0xf]
        %v2408 = vld [vmem:[#allocation3 + $0x19c] sm:$0xf]
        %v2409 = vld [vmem:[#allocation3 + $0x1a0] sm:$0xf]
        %v2410 = vld [vmem:[#allocation3 + $0x1a4] sm:$0xf]
        %v2411 = vld [vmem:[#allocation3 + $0x1a8] sm:$0xf]
        %v2412 = vld [vmem:[#allocation3 + $0x1ac] sm:$0xf]
        %v2413 = vld [vmem:[#allocation3 + $0x1b0] sm:$0xf]
        %v2414 = vld [vmem:[#allocation3 + $0x1b4] sm:$0xf]
        %v2415 = vld [vmem:[#allocation3 + $0x1b8] sm:$0xf]
        %v2416 = vld [vmem:[#allocation3 + $0x1bc] sm:$0xf]
        %v2417 = vld [vmem:[#allocation3 + $0x1c0] sm:$0xf]
        %v2418 = vld [vmem:[#allocation3 + $0x1c4] sm:$0xf]
        %v2419 = vld [vmem:[#allocation3 + $0x1c8] sm:$0xf]
        %v2420 = vld [vmem:[#allocation3 + $0x1cc] sm:$0xf]
        %v2421 = vld [vmem:[#allocation3 + $0x1d0] sm:$0xf]
        %v2422 = vld [vmem:[#allocation3 + $0x1d4] sm:$0xf]
        %v2423 = vld [vmem:[#allocation3 + $0x1d8] sm:$0xf]
        %v2424 = vld [vmem:[#allocation3 + $0x1dc] sm:$0xf]
        %v2425 = vld [vmem:[#allocation3 + $0x1e0] sm:$0xf]
        %v2426 = vld [vmem:[#allocation3 + $0x1e4] sm:$0xf]
        %v2427 = vld [vmem:[#allocation3 + $0x1e8] sm:$0xf]
        %v2428 = vld [vmem:[#allocation3 + $0x1ec] sm:$0xf]
        %v2429 = vld [vmem:[#allocation3 + $0x1f0] sm:$0xf]
        %v2430 = vld [vmem:[#allocation3 + $0x1f4] sm:$0xf]
        %v2431 = vld [vmem:[#allocation3 + $0x1f8] sm:$0xf]
        %v2432 = vld [vmem:[#allocation3 + $0x1fc] sm:$0xf]
        %v2433 = vld [vmem:[%s5] sm:$0x1]
        %v2435 = vlaneseq
        %v2436 = vshrl.u32 %v2435, 7
        %v2437 = vsub.s32 0, %v2436
        %v2438 = vrot.slane %v2433, %v2437
        %v2568 = vunpack.c.l.b16 %v2305
        %v2569 = vunpack.c.l.b16 %v2306
        %v2570 = vunpack.c.l.b16 %v2307
        %v2571 = vunpack.c.l.b16 %v2308
        %v2572 = vunpack.c.l.b16 %v2309
        %v2573 = vunpack.c.l.b16 %v2310
        %v2574 = vunpack.c.l.b16 %v2311
        %v2575 = vunpack.c.l.b16 %v2312
        %v2576 = vunpack.c.l.b16 %v2313
        %v2577 = vunpack.c.l.b16 %v2314
        %v2578 = vunpack.c.l.b16 %v2315
        %v2579 = vunpack.c.l.b16 %v2316
        %v2580 = vunpack.c.l.b16 %v2317
        %v2581 = vunpack.c.l.b16 %v2318
        %v2582 = vunpack.c.l.b16 %v2319
        %v2583 = vunpack.c.l.b16 %v2320
        %v2584 = vunpack.c.l.b16 %v2321
        %v2585 = vunpack.c.l.b16 %v2322
        %v2586 = vunpack.c.l.b16 %v2323
        %v2587 = vunpack.c.l.b16 %v2324
        %v2588 = vunpack.c.l.b16 %v2325
        %v2589 = vunpack.c.l.b16 %v2326
        %v2590 = vunpack.c.l.b16 %v2327
        %v2591 = vunpack.c.l.b16 %v2328
        %v2592 = vunpack.c.l.b16 %v2329
        %v2593 = vunpack.c.l.b16 %v2330
        %v2594 = vunpack.c.l.b16 %v2331
        %v2595 = vunpack.c.l.b16 %v2332
        %v2596 = vunpack.c.l.b16 %v2333
        %v2597 = vunpack.c.l.b16 %v2334
        %v2598 = vunpack.c.l.b16 %v2335
        %v2599 = vunpack.c.l.b16 %v2336
        %v2600 = vunpack.c.l.b16 %v2337
        %v2601 = vunpack.c.l.b16 %v2338
        %v2602 = vunpack.c.l.b16 %v2339
        %v2603 = vunpack.c.l.b16 %v2340
        %v2604 = vunpack.c.l.b16 %v2341
        %v2605 = vunpack.c.l.b16 %v2342
        %v2606 = vunpack.c.l.b16 %v2343
        %v2607 = vunpack.c.l.b16 %v2344
        %v2608 = vunpack.c.l.b16 %v2345
        %v2609 = vunpack.c.l.b16 %v2346
        %v2610 = vunpack.c.l.b16 %v2347
        %v2611 = vunpack.c.l.b16 %v2348
        %v2612 = vunpack.c.l.b16 %v2349
        %v2613 = vunpack.c.l.b16 %v2350
        %v2614 = vunpack.c.l.b16 %v2351
        %v2615 = vunpack.c.l.b16 %v2352
        %v2616 = vunpack.c.l.b16 %v2353
        %v2617 = vunpack.c.l.b16 %v2354
        %v2618 = vunpack.c.l.b16 %v2355
        %v2619 = vunpack.c.l.b16 %v2356
        %v2620 = vunpack.c.l.b16 %v2357
        %v2621 = vunpack.c.l.b16 %v2358
        %v2622 = vunpack.c.l.b16 %v2359
        %v2623 = vunpack.c.l.b16 %v2360
        %v2624 = vunpack.c.l.b16 %v2361
        %v2625 = vunpack.c.l.b16 %v2362
        %v2626 = vunpack.c.l.b16 %v2363
        %v2627 = vunpack.c.l.b16 %v2364
        %v2628 = vunpack.c.l.b16 %v2365
        %v2629 = vunpack.c.l.b16 %v2366
        %v2630 = vunpack.c.l.b16 %v2367
        %v2631 = vunpack.c.l.b16 %v2368
        %v2632 = vunpack.c.l.b16 %v2369
        %v2633 = vunpack.c.l.b16 %v2370
        %v2634 = vunpack.c.l.b16 %v2371
        %v2635 = vunpack.c.l.b16 %v2372
        %v2636 = vunpack.c.l.b16 %v2373
        %v2637 = vunpack.c.l.b16 %v2374
        %v2638 = vunpack.c.l.b16 %v2375
        %v2639 = vunpack.c.l.b16 %v2376
        %v2640 = vunpack.c.l.b16 %v2377
        %v2641 = vunpack.c.l.b16 %v2378
        %v2642 = vunpack.c.l.b16 %v2379
        %v2643 = vunpack.c.l.b16 %v2380
        %v2644 = vunpack.c.l.b16 %v2381
        %v2645 = vunpack.c.l.b16 %v2382
        %v2646 = vunpack.c.l.b16 %v2383
        %v2647 = vunpack.c.l.b16 %v2384
        %v2648 = vunpack.c.l.b16 %v2385
        %v2649 = vunpack.c.l.b16 %v2386
        %v2650 = vunpack.c.l.b16 %v2387
        %v2651 = vunpack.c.l.b16 %v2388
        %v2652 = vunpack.c.l.b16 %v2389
        %v2653 = vunpack.c.l.b16 %v2390
        %v2654 = vunpack.c.l.b16 %v2391
        %v2655 = vunpack.c.l.b16 %v2392
        %v2656 = vunpack.c.l.b16 %v2393
        %v2657 = vunpack.c.l.b16 %v2394
        %v2658 = vunpack.c.l.b16 %v2395
        %v2659 = vunpack.c.l.b16 %v2396
        %v2660 = vunpack.c.l.b16 %v2397
        %v2661 = vunpack.c.l.b16 %v2398
        %v2662 = vunpack.c.l.b16 %v2399
        %v2663 = vunpack.c.l.b16 %v2400
        %v2664 = vunpack.c.l.b16 %v2401
        %v2665 = vunpack.c.l.b16 %v2402
        %v2666 = vunpack.c.l.b16 %v2403
        %v2667 = vunpack.c.l.b16 %v2404
        %v2668 = vunpack.c.l.b16 %v2405
        %v2669 = vunpack.c.l.b16 %v2406
        %v2670 = vunpack.c.l.b16 %v2407
        %v2671 = vunpack.c.l.b16 %v2408
        %v2672 = vunpack.c.l.b16 %v2409
        %v2673 = vunpack.c.l.b16 %v2410
        %v2674 = vunpack.c.l.b16 %v2411
        %v2675 = vunpack.c.l.b16 %v2412
        %v2676 = vunpack.c.l.b16 %v2413
        %v2677 = vunpack.c.l.b16 %v2414
        %v2678 = vunpack.c.l.b16 %v2415
        %v2679 = vunpack.c.l.b16 %v2416
        %v2680 = vunpack.c.l.b16 %v2417
        %v2681 = vunpack.c.l.b16 %v2418
        %v2682 = vunpack.c.l.b16 %v2419
        %v2683 = vunpack.c.l.b16 %v2420
        %v2684 = vunpack.c.l.b16 %v2421
        %v2685 = vunpack.c.l.b16 %v2422
        %v2686 = vunpack.c.l.b16 %v2423
        %v2687 = vunpack.c.l.b16 %v2424
        %v2688 = vunpack.c.l.b16 %v2425
        %v2689 = vunpack.c.l.b16 %v2426
        %v2690 = vunpack.c.l.b16 %v2427
        %v2691 = vunpack.c.l.b16 %v2428
        %v2692 = vunpack.c.l.b16 %v2429
        %v2693 = vunpack.c.l.b16 %v2430
        %v2694 = vunpack.c.l.b16 %v2431
        %v2695 = vunpack.c.l.b16 %v2432
        %v2696 = vpack.c.b16 %v2569, %v2568
        %v2697 = vpack.c.b16 %v2571, %v2570
        %v2698 = vpack.c.b16 %v2573, %v2572
        %v2699 = vpack.c.b16 %v2575, %v2574
        %v2700 = vpack.c.b16 %v2577, %v2576
        %v2701 = vpack.c.b16 %v2579, %v2578
        %v2702 = vpack.c.b16 %v2581, %v2580
        %v2703 = vpack.c.b16 %v2583, %v2582
        %v2704 = vpack.c.b16 %v2585, %v2584
        %v2705 = vpack.c.b16 %v2587, %v2586
        %v2706 = vpack.c.b16 %v2589, %v2588
        %v2707 = vpack.c.b16 %v2591, %v2590
        %v2708 = vpack.c.b16 %v2593, %v2592
        %v2709 = vpack.c.b16 %v2595, %v2594
        %v2710 = vpack.c.b16 %v2597, %v2596
        %v2711 = vpack.c.b16 %v2599, %v2598
        %v2712 = vpack.c.b16 %v2601, %v2600
        %v2713 = vpack.c.b16 %v2603, %v2602
        %v2714 = vpack.c.b16 %v2605, %v2604
        %v2715 = vpack.c.b16 %v2607, %v2606
        %v2716 = vpack.c.b16 %v2609, %v2608
        %v2717 = vpack.c.b16 %v2611, %v2610
        %v2718 = vpack.c.b16 %v2613, %v2612
        %v2719 = vpack.c.b16 %v2615, %v2614
        %v2720 = vpack.c.b16 %v2617, %v2616
        %v2721 = vpack.c.b16 %v2619, %v2618
        %v2722 = vpack.c.b16 %v2621, %v2620
        %v2723 = vpack.c.b16 %v2623, %v2622
        %v2724 = vpack.c.b16 %v2625, %v2624
        %v2725 = vpack.c.b16 %v2627, %v2626
        %v2726 = vpack.c.b16 %v2629, %v2628
        %v2727 = vpack.c.b16 %v2631, %v2630
        %v2728 = vpack.c.b16 %v2633, %v2632
        %v2729 = vpack.c.b16 %v2635, %v2634
        %v2730 = vpack.c.b16 %v2637, %v2636
        %v2731 = vpack.c.b16 %v2639, %v2638
        %v2732 = vpack.c.b16 %v2641, %v2640
        %v2733 = vpack.c.b16 %v2643, %v2642
        %v2734 = vpack.c.b16 %v2645, %v2644
        %v2735 = vpack.c.b16 %v2647, %v2646
        %v2736 = vpack.c.b16 %v2649, %v2648
        %v2737 = vpack.c.b16 %v2651, %v2650
        %v2738 = vpack.c.b16 %v2653, %v2652
        %v2739 = vpack.c.b16 %v2655, %v2654
        %v2740 = vpack.c.b16 %v2657, %v2656
        %v2741 = vpack.c.b16 %v2659, %v2658
        %v2742 = vpack.c.b16 %v2661, %v2660
        %v2743 = vpack.c.b16 %v2663, %v2662
        %v2744 = vpack.c.b16 %v2665, %v2664
        %v2745 = vpack.c.b16 %v2667, %v2666
        %v2746 = vpack.c.b16 %v2669, %v2668
        %v2747 = vpack.c.b16 %v2671, %v2670
        %v2748 = vpack.c.b16 %v2673, %v2672
        %v2749 = vpack.c.b16 %v2675, %v2674
        %v2750 = vpack.c.b16 %v2677, %v2676
        %v2751 = vpack.c.b16 %v2679, %v2678
        %v2752 = vpack.c.b16 %v2681, %v2680
        %v2753 = vpack.c.b16 %v2683, %v2682
        %v2754 = vpack.c.b16 %v2685, %v2684
        %v2755 = vpack.c.b16 %v2687, %v2686
        %v2756 = vpack.c.b16 %v2689, %v2688
        %v2757 = vpack.c.b16 %v2691, %v2690
        %v2758 = vpack.c.b16 %v2693, %v2692
        %v2759 = vpack.c.b16 %v2695, %v2694
        %2824 = vmatprep.subr.bf16.mxu0 0
        %2825 = vmatpush1.bf16.msra.mxu0 %v2696
        %2826 = vmatprep.subr.bf16.mxu0 0
        %2827 = vmatpush1.bf16.msra.mxu0 %v2697
        %2828 = vmatprep.subr.bf16.mxu0 0
        %2829 = vmatpush1.bf16.msra.mxu0 %v2698
        %2830 = vmatprep.subr.bf16.mxu0 0
        %2831 = vmatpush1.bf16.msra.mxu0 %v2699
        %2832 = vmatprep.subr.bf16.mxu0 0
        %2833 = vmatpush1.bf16.msra.mxu0 %v2700
        %2834 = vmatprep.subr.bf16.mxu0 0
        %2835 = vmatpush1.bf16.msra.mxu0 %v2701
        %2836 = vmatprep.subr.bf16.mxu0 0
        %2837 = vmatpush1.bf16.msra.mxu0 %v2702
        %2838 = vmatprep.subr.bf16.mxu0 0
        %2839 = vmatpush1.bf16.msra.mxu0 %v2703
        %2840 = vmatprep.subr.bf16.mxu0 0
        %2841 = vmatpush1.bf16.msra.mxu0 %v2704
        %2842 = vmatprep.subr.bf16.mxu0 0
        %2843 = vmatpush1.bf16.msra.mxu0 %v2705
        %2844 = vmatprep.subr.bf16.mxu0 0
        %2845 = vmatpush1.bf16.msra.mxu0 %v2706
        %2846 = vmatprep.subr.bf16.mxu0 0
        %2847 = vmatpush1.bf16.msra.mxu0 %v2707
        %2848 = vmatprep.subr.bf16.mxu0 0
        %2849 = vmatpush1.bf16.msra.mxu0 %v2708
        %2850 = vmatprep.subr.bf16.mxu0 0
        %2851 = vmatpush1.bf16.msra.mxu0 %v2709
        %2852 = vmatprep.subr.bf16.mxu0 0
        %2853 = vmatpush1.bf16.msra.mxu0 %v2710
        %2854 = vmatprep.subr.bf16.mxu0 0
        %2855 = vmatpush1.bf16.msra.mxu0 %v2711
        %2856 = vmatprep.mubr.bf16.mxu0 %v1311
        %2857 = vmatmul.mubr.bf16.gmra.mrb[0].mxu0 %v1310
        %v2858 = vpop.f32.mrb[0].mxu0
        %v2859 = vadd.f32 %v2438, %v2858
        %v2860 = vpop.f32.mrb[0].mxu0
        %v2861 = vpop.f32.mrb[0].mxu0
        %v2862 = vadd.f32 %v2438, %v2861
        %v2863 = vpop.f32.mrb[0].mxu0
        %2864 = vmatprep.mubr.bf16.mxu0 %v1319
        %2865 = vmatmul.mubr.bf16.gmra.mrb[0].mxu0 %v1318
        %v2866 = vpop.f32.mrb[0].mxu0
        %v2867 = vadd.f32 %v2438, %v2866
        %v2868 = vpop.f32.mrb[0].mxu0
        %v2869 = vpop.f32.mrb[0].mxu0
        %v2870 = vadd.f32 %v2438, %v2869
        %v2871 = vpop.f32.mrb[0].mxu0
        %2872 = vmatprep.mubr.bf16.mxu0 %v1327
        %2873 = vmatmul.mubr.bf16.gmra.mrb[0].mxu0 %v1326
        %v2874 = vpop.f32.mrb[0].mxu0
        %v2875 = vadd.f32 %v2438, %v2874
        %v2876 = vpop.f32.mrb[0].mxu0
        %v2877 = vpop.f32.mrb[0].mxu0
        %v2878 = vadd.f32 %v2438, %v2877
        %v2879 = vpop.f32.mrb[0].mxu0
        %2880 = vmatprep.mubr.bf16.mxu0 %v1335
        %2881 = vmatmul.mubr.bf16.gmra.mrb[0].mxu0 %v1334
        %v2882 = vpop.f32.mrb[0].mxu0
        %v2883 = vadd.f32 %v2438, %v2882
        %v2884 = vpop.f32.mrb[0].mxu0
        %v2885 = vpop.f32.mrb[0].mxu0
        %v2886 = vadd.f32 %v2438, %v2885
        %v2887 = vpop.f32.mrb[0].mxu0
        %2888 = vmatprep.mubr.bf16.mxu0 %v1343
        %2889 = vmatmul.mubr.bf16.gmra.mrb[0].mxu0 %v1342
        %v2890 = vpop.f32.mrb[0].mxu0
        %v2891 = vadd.f32 %v2438, %v2890
        %v2892 = vpop.f32.mrb[0].mxu0
        %v2893 = vpop.f32.mrb[0].mxu0
        %v2894 = vadd.f32 %v2438, %v2893
        %v2895 = vpop.f32.mrb[0].mxu0
        %2896 = vmatprep.mubr.bf16.mxu0 %v1351
        %2897 = vmatmul.mubr.bf16.gmra.mrb[0].mxu0 %v1350
        %v2898 = vpop.f32.mrb[0].mxu0
        %v2899 = vadd.f32 %v2438, %v2898
        %v2900 = vpop.f32.mrb[0].mxu0
        %v2901 = vpop.f32.mrb[0].mxu0
        %v2902 = vadd.f32 %v2438, %v2901
        %v2903 = vpop.f32.mrb[0].mxu0
        %2904 = vmatprep.mubr.bf16.mxu0 %v1359
        %2905 = vmatmul.mubr.bf16.gmra.mrb[0].mxu0 %v1358
        %v2906 = vpop.f32.mrb[0].mxu0
        %v2907 = vadd.f32 %v2438, %v2906
        %v2908 = vpop.f32.mrb[0].mxu0
        %v2909 = vpop.f32.mrb[0].mxu0
        %v2910 = vadd.f32 %v2438, %v2909
        %v2911 = vpop.f32.mrb[0].mxu0
        %2912 = vmatprep.mubr.bf16.mxu0 %v1367
        %2913 = vmatmul.mubr.bf16.gmra.mrb[0].mxu0 %v1366
        %v2914 = vpop.f32.mrb[0].mxu0
        %v2915 = vadd.f32 %v2438, %v2914
        %v2916 = vpop.f32.mrb[0].mxu0
        %v2917 = vpop.f32.mrb[0].mxu0
        %v2918 = vadd.f32 %v2438, %v2917
        %v2919 = vpop.f32.mrb[0].mxu0
        %2920 = vdwg.mxu0
        %2921 = vmatprep.subr.bf16.mxu0 0
        %2922 = vmatpush1.bf16.msra.mxu0 %v2712
        %2923 = vmatprep.subr.bf16.mxu0 0
        %2924 = vmatpush1.bf16.msra.mxu0 %v2713
        %2925 = vmatprep.subr.bf16.mxu0 0
        %2926 = vmatpush1.bf16.msra.mxu0 %v2714
        %2927 = vmatprep.subr.bf16.mxu0 0
        %2928 = vmatpush1.bf16.msra.mxu0 %v2715
        %2929 = vmatprep.subr.bf16.mxu0 0
        %2930 = vmatpush1.bf16.msra.mxu0 %v2716
        %2931 = vmatprep.subr.bf16.mxu0 0
        %2932 = vmatpush1.bf16.msra.mxu0 %v2717
        %2933 = vmatprep.subr.bf16.mxu0 0
        %2934 = vmatpush1.bf16.msra.mxu0 %v2718
        %2935 = vmatprep.subr.bf16.mxu0 0
        %2936 = vmatpush1.bf16.msra.mxu0 %v2719
        %2937 = vmatprep.subr.bf16.mxu0 0
        %2938 = vmatpush1.bf16.msra.mxu0 %v2720
        %2939 = vmatprep.subr.bf16.mxu0 0
        %2940 = vmatpush1.bf16.msra.mxu0 %v2721
        %2941 = vmatprep.subr.bf16.mxu0 0
        %2942 = vmatpush1.bf16.msra.mxu0 %v2722
        %2943 = vmatprep.subr.bf16.mxu0 0
        %2944 = vmatpush1.bf16.msra.mxu0 %v2723
        %2945 = vmatprep.subr.bf16.mxu0 0
        %2946 = vmatpush1.bf16.msra.mxu0 %v2724
        %2947 = vmatprep.subr.bf16.mxu0 0
        %2948 = vmatpush1.bf16.msra.mxu0 %v2725
        %2949 = vmatprep.subr.bf16.mxu0 0
        %2950 = vmatpush1.bf16.msra.mxu0 %v2726
        %2951 = vmatprep.subr.bf16.mxu0 0
        %2952 = vmatpush1.bf16.msra.mxu0 %v2727
        %2953 = vmatprep.mubr.bf16.mxu0 %v1313
        %2954 = vmatmul.mubr.bf16.gmra.mrb[0].mxu0 %v1312
        %v2955 = vpop.f32.mrb[0].mxu0
        %v2956 = vadd.f32 %v2859, %v2955
        %v2957 = vpop.f32.mrb[0].mxu0
        %v2958 = vpop.f32.mrb[0].mxu0
        %v2959 = vadd.f32 %v2862, %v2958
        %v2960 = vpop.f32.mrb[0].mxu0
        %2961 = vmatprep.mubr.bf16.mxu0 %v1321
        %2962 = vmatmul.mubr.bf16.gmra.mrb[0].mxu0 %v1320
        %v2963 = vpop.f32.mrb[0].mxu0
        %v2964 = vadd.f32 %v2867, %v2963
        %v2965 = vpop.f32.mrb[0].mxu0
        %v2966 = vpop.f32.mrb[0].mxu0
        %v2967 = vadd.f32 %v2870, %v2966
        %v2968 = vpop.f32.mrb[0].mxu0
        %2969 = vmatprep.mubr.bf16.mxu0 %v1329
        %2970 = vmatmul.mubr.bf16.gmra.mrb[0].mxu0 %v1328
        %v2971 = vpop.f32.mrb[0].mxu0
        %v2972 = vadd.f32 %v2875, %v2971
        %v2973 = vpop.f32.mrb[0].mxu0
        %v2974 = vpop.f32.mrb[0].mxu0
        %v2975 = vadd.f32 %v2878, %v2974
        %v2976 = vpop.f32.mrb[0].mxu0
        %2977 = vmatprep.mubr.bf16.mxu0 %v1337
        %2978 = vmatmul.mubr.bf16.gmra.mrb[0].mxu0 %v1336
        %v2979 = vpop.f32.mrb[0].mxu0
        %v2980 = vadd.f32 %v2883, %v2979
        %v2981 = vpop.f32.mrb[0].mxu0
        %v2982 = vpop.f32.mrb[0].mxu0
        %v2983 = vadd.f32 %v2886, %v2982
        %v2984 = vpop.f32.mrb[0].mxu0
        %2985 = vmatprep.mubr.bf16.mxu0 %v1345
        %2986 = vmatmul.mubr.bf16.gmra.mrb[0].mxu0 %v1344
        %v2987 = vpop.f32.mrb[0].mxu0
        %v2988 = vadd.f32 %v2891, %v2987
        %v2989 = vpop.f32.mrb[0].mxu0
        %v2990 = vpop.f32.mrb[0].mxu0
        %v2991 = vadd.f32 %v2894, %v2990
        %v2992 = vpop.f32.mrb[0].mxu0
        %2993 = vmatprep.mubr.bf16.mxu0 %v1353
        %2994 = vmatmul.mubr.bf16.gmra.mrb[0].mxu0 %v1352
        %v2995 = vpop.f32.mrb[0].mxu0
        %v2996 = vadd.f32 %v2899, %v2995
        %v2997 = vpop.f32.mrb[0].mxu0
        %v2998 = vpop.f32.mrb[0].mxu0
        %v2999 = vadd.f32 %v2902, %v2998
        %v3000 = vpop.f32.mrb[0].mxu0
        %3001 = vmatprep.mubr.bf16.mxu0 %v1361
        %3002 = vmatmul.mubr.bf16.gmra.mrb[0].mxu0 %v1360
        %v3003 = vpop.f32.mrb[0].mxu0
        %v3004 = vadd.f32 %v2907, %v3003
        %v3005 = vpop.f32.mrb[0].mxu0
        %v3006 = vpop.f32.mrb[0].mxu0
        %v3007 = vadd.f32 %v2910, %v3006
        %v3008 = vpop.f32.mrb[0].mxu0
        %3009 = vmatprep.mubr.bf16.mxu0 %v1369
        %3010 = vmatmul.mubr.bf16.gmra.mrb[0].mxu0 %v1368
        %v3011 = vpop.f32.mrb[0].mxu0
        %v3012 = vadd.f32 %v2915, %v3011
        %v3013 = vpop.f32.mrb[0].mxu0
        %v3014 = vpop.f32.mrb[0].mxu0
        %v3015 = vadd.f32 %v2918, %v3014
        %v3016 = vpop.f32.mrb[0].mxu0
        %3017 = vdwg.mxu0
        %3018 = vmatprep.subr.bf16.mxu0 0
        %3019 = vmatpush1.bf16.msra.mxu0 %v2728
        %3020 = vmatprep.subr.bf16.mxu0 0
        %3021 = vmatpush1.bf16.msra.mxu0 %v2729
        %3022 = vmatprep.subr.bf16.mxu0 0
        %3023 = vmatpush1.bf16.msra.mxu0 %v2730
        %3024 = vmatprep.subr.bf16.mxu0 0
        %3025 = vmatpush1.bf16.msra.mxu0 %v2731
        %3026 = vmatprep.subr.bf16.mxu0 0
        %3027 = vmatpush1.bf16.msra.mxu0 %v2732
        %3028 = vmatprep.subr.bf16.mxu0 0
        %3029 = vmatpush1.bf16.msra.mxu0 %v2733
        %3030 = vmatprep.subr.bf16.mxu0 0
        %3031 = vmatpush1.bf16.msra.mxu0 %v2734
        %3032 = vmatprep.subr.bf16.mxu0 0
        %3033 = vmatpush1.bf16.msra.mxu0 %v2735
        %3034 = vmatprep.subr.bf16.mxu0 0
        %3035 = vmatpush1.bf16.msra.mxu0 %v2736
        %3036 = vmatprep.subr.bf16.mxu0 0
        %3037 = vmatpush1.bf16.msra.mxu0 %v2737
        %3038 = vmatprep.subr.bf16.mxu0 0
        %3039 = vmatpush1.bf16.msra.mxu0 %v2738
        %3040 = vmatprep.subr.bf16.mxu0 0
        %3041 = vmatpush1.bf16.msra.mxu0 %v2739
        %3042 = vmatprep.subr.bf16.mxu0 0
        %3043 = vmatpush1.bf16.msra.mxu0 %v2740
        %3044 = vmatprep.subr.bf16.mxu0 0
        %3045 = vmatpush1.bf16.msra.mxu0 %v2741
        %3046 = vmatprep.subr.bf16.mxu0 0
        %3047 = vmatpush1.bf16.msra.mxu0 %v2742
        %3048 = vmatprep.subr.bf16.mxu0 0
        %3049 = vmatpush1.bf16.msra.mxu0 %v2743
        %3050 = vmatprep.mubr.bf16.mxu0 %v1315
        %3051 = vmatmul.mubr.bf16.gmra.mrb[0].mxu0 %v1314
        %v3052 = vpop.f32.mrb[0].mxu0
        %v3053 = vadd.f32 %v2956, %v3052
        %v3054 = vpop.f32.mrb[0].mxu0
        %v3055 = vpop.f32.mrb[0].mxu0
        %v3056 = vadd.f32 %v2959, %v3055
        %v3057 = vpop.f32.mrb[0].mxu0
        %3058 = vmatprep.mubr.bf16.mxu0 %v1323
        %3059 = vmatmul.mubr.bf16.gmra.mrb[0].mxu0 %v1322
        %v3060 = vpop.f32.mrb[0].mxu0
        %v3061 = vadd.f32 %v2964, %v3060
        %v3062 = vpop.f32.mrb[0].mxu0
        %v3063 = vpop.f32.mrb[0].mxu0
        %v3064 = vadd.f32 %v2967, %v3063
        %v3065 = vpop.f32.mrb[0].mxu0
        %3066 = vmatprep.mubr.bf16.mxu0 %v1331
        %3067 = vmatmul.mubr.bf16.gmra.mrb[0].mxu0 %v1330
        %v3068 = vpop.f32.mrb[0].mxu0
        %v3069 = vadd.f32 %v2972, %v3068
        %v3070 = vpop.f32.mrb[0].mxu0
        %v3071 = vpop.f32.mrb[0].mxu0
        %v3072 = vadd.f32 %v2975, %v3071
        %v3073 = vpop.f32.mrb[0].mxu0
        %3074 = vmatprep.mubr.bf16.mxu0 %v1339
        %3075 = vmatmul.mubr.bf16.gmra.mrb[0].mxu0 %v1338
        %v3076 = vpop.f32.mrb[0].mxu0
        %v3077 = vadd.f32 %v2980, %v3076
        %v3078 = vpop.f32.mrb[0].mxu0
        %v3079 = vpop.f32.mrb[0].mxu0
        %v3080 = vadd.f32 %v2983, %v3079
        %v3081 = vpop.f32.mrb[0].mxu0
        %3082 = vmatprep.mubr.bf16.mxu0 %v1347
        %3083 = vmatmul.mubr.bf16.gmra.mrb[0].mxu0 %v1346
        %v3084 = vpop.f32.mrb[0].mxu0
        %v3085 = vadd.f32 %v2988, %v3084
        %v3086 = vpop.f32.mrb[0].mxu0
        %v3087 = vpop.f32.mrb[0].mxu0
        %v3088 = vadd.f32 %v2991, %v3087
        %v3089 = vpop.f32.mrb[0].mxu0
        %3090 = vmatprep.mubr.bf16.mxu0 %v1355
        %3091 = vmatmul.mubr.bf16.gmra.mrb[0].mxu0 %v1354
        %v3092 = vpop.f32.mrb[0].mxu0
        %v3093 = vadd.f32 %v2996, %v3092
        %v3094 = vpop.f32.mrb[0].mxu0
        %v3095 = vpop.f32.mrb[0].mxu0
        %v3096 = vadd.f32 %v2999, %v3095
        %v3097 = vpop.f32.mrb[0].mxu0
        %3098 = vmatprep.mubr.bf16.mxu0 %v1363
        %3099 = vmatmul.mubr.bf16.gmra.mrb[0].mxu0 %v1362
        %v3100 = vpop.f32.mrb[0].mxu0
        %v3101 = vadd.f32 %v3004, %v3100
        %v3102 = vpop.f32.mrb[0].mxu0
        %v3103 = vpop.f32.mrb[0].mxu0
        %v3104 = vadd.f32 %v3007, %v3103
        %v3105 = vpop.f32.mrb[0].mxu0
        %3106 = vmatprep.mubr.bf16.mxu0 %v1371
        %3107 = vmatmul.mubr.bf16.gmra.mrb[0].mxu0 %v1370
        %v3108 = vpop.f32.mrb[0].mxu0
        %v3109 = vadd.f32 %v3012, %v3108
        %v3110 = vpop.f32.mrb[0].mxu0
        %v3111 = vpop.f32.mrb[0].mxu0
        %v3112 = vadd.f32 %v3015, %v3111
        %v3113 = vpop.f32.mrb[0].mxu0
        %3114 = vdwg.mxu0
        %3115 = vmatprep.subr.bf16.mxu0 0
        %3116 = vmatpush1.bf16.msra.mxu0 %v2744
        %3117 = vmatprep.subr.bf16.mxu0 0
        %3118 = vmatpush1.bf16.msra.mxu0 %v2745
        %3119 = vmatprep.subr.bf16.mxu0 0
        %3120 = vmatpush1.bf16.msra.mxu0 %v2746
        %3121 = vmatprep.subr.bf16.mxu0 0
        %3122 = vmatpush1.bf16.msra.mxu0 %v2747
        %3123 = vmatprep.subr.bf16.mxu0 0
        %3124 = vmatpush1.bf16.msra.mxu0 %v2748
        %3125 = vmatprep.subr.bf16.mxu0 0
        %3126 = vmatpush1.bf16.msra.mxu0 %v2749
        %3127 = vmatprep.subr.bf16.mxu0 0
        %3128 = vmatpush1.bf16.msra.mxu0 %v2750
        %3129 = vmatprep.subr.bf16.mxu0 0
        %3130 = vmatpush1.bf16.msra.mxu0 %v2751
        %3131 = vmatprep.subr.bf16.mxu0 0
        %3132 = vmatpush1.bf16.msra.mxu0 %v2752
        %3133 = vmatprep.subr.bf16.mxu0 0
        %3134 = vmatpush1.bf16.msra.mxu0 %v2753
        %3135 = vmatprep.subr.bf16.mxu0 0
        %3136 = vmatpush1.bf16.msra.mxu0 %v2754
        %3137 = vmatprep.subr.bf16.mxu0 0
        %3138 = vmatpush1.bf16.msra.mxu0 %v2755
        %3139 = vmatprep.subr.bf16.mxu0 0
        %3140 = vmatpush1.bf16.msra.mxu0 %v2756
        %3141 = vmatprep.subr.bf16.mxu0 0
        %3142 = vmatpush1.bf16.msra.mxu0 %v2757
        %3143 = vmatprep.subr.bf16.mxu0 0
        %3144 = vmatpush1.bf16.msra.mxu0 %v2758
        %3145 = vmatprep.subr.bf16.mxu0 0
        %3146 = vmatpush1.bf16.msra.mxu0 %v2759
        %3147 = vmatprep.mubr.bf16.mxu0 %v1317
        %3148 = vmatmul.mubr.bf16.gmra.mrb[0].mxu0 %v1316
        %v3149 = vpop.f32.mrb[0].mxu0
        %v3150 = vadd.f32 %v3053, %v3149
        %v3151 = vpop.f32.mrb[0].mxu0
        %v3152 = vpop.f32.mrb[0].mxu0
        %v3153 = vadd.f32 %v3056, %v3152
        %v3154 = vpop.f32.mrb[0].mxu0
        %3155 = vmatprep.mubr.bf16.mxu0 %v1325
        %3156 = vmatmul.mubr.bf16.gmra.mrb[0].mxu0 %v1324
        %v3157 = vpop.f32.mrb[0].mxu0
        %v3158 = vadd.f32 %v3061, %v3157
        %v3159 = vpop.f32.mrb[0].mxu0
        %v3160 = vpop.f32.mrb[0].mxu0
        %v3161 = vadd.f32 %v3064, %v3160
        %v3162 = vpop.f32.mrb[0].mxu0
        %3163 = vmatprep.mubr.bf16.mxu0 %v1333
        %3164 = vmatmul.mubr.bf16.gmra.mrb[0].mxu0 %v1332
        %v3165 = vpop.f32.mrb[0].mxu0
        %v3166 = vadd.f32 %v3069, %v3165
        %v3167 = vpop.f32.mrb[0].mxu0
        %v3168 = vpop.f32.mrb[0].mxu0
        %v3169 = vadd.f32 %v3072, %v3168
        %v3170 = vpop.f32.mrb[0].mxu0
        %3171 = vmatprep.mubr.bf16.mxu0 %v1341
        %3172 = vmatmul.mubr.bf16.gmra.mrb[0].mxu0 %v1340
        %v3173 = vpop.f32.mrb[0].mxu0
        %v3174 = vadd.f32 %v3077, %v3173
        %v3175 = vpop.f32.mrb[0].mxu0
        %v3176 = vpop.f32.mrb[0].mxu0
        %v3177 = vadd.f32 %v3080, %v3176
        %v3178 = vpop.f32.mrb[0].mxu0
        %3179 = vmatprep.mubr.bf16.mxu0 %v1349
        %3180 = vmatmul.mubr.bf16.gmra.mrb[0].mxu0 %v1348
        %v3181 = vpop.f32.mrb[0].mxu0
        %v3182 = vadd.f32 %v3085, %v3181
        %v3183 = vpop.f32.mrb[0].mxu0
        %v3184 = vpop.f32.mrb[0].mxu0
        %v3185 = vadd.f32 %v3088, %v3184
        %v3186 = vpop.f32.mrb[0].mxu0
        %3187 = vmatprep.mubr.bf16.mxu0 %v1357
        %3188 = vmatmul.mubr.bf16.gmra.mrb[0].mxu0 %v1356
        %v3189 = vpop.f32.mrb[0].mxu0
        %v3190 = vadd.f32 %v3093, %v3189
        %v3191 = vpop.f32.mrb[0].mxu0
        %v3192 = vpop.f32.mrb[0].mxu0
        %v3193 = vadd.f32 %v3096, %v3192
        %v3194 = vpop.f32.mrb[0].mxu0
        %3195 = vmatprep.mubr.bf16.mxu0 %v1365
        %3196 = vmatmul.mubr.bf16.gmra.mrb[0].mxu0 %v1364
        %v3197 = vpop.f32.mrb[0].mxu0
        %v3198 = vadd.f32 %v3101, %v3197
        %v3199 = vpop.f32.mrb[0].mxu0
        %v3200 = vpop.f32.mrb[0].mxu0
        %v3201 = vadd.f32 %v3104, %v3200
        %v3202 = vpop.f32.mrb[0].mxu0
        %3203 = vmatprep.mubr.bf16.mxu0 %v1373
        %3204 = vmatmul.mubr.bf16.gmra.mrb[0].mxu0 %v1372
        %v3205 = vpop.f32.mrb[0].mxu0
        %v3206 = vadd.f32 %v3109, %v3205
        %v3207 = vpop.f32.mrb[0].mxu0
        %v3208 = vpop.f32.mrb[0].mxu0
        %v3209 = vadd.f32 %v3112, %v3208
        %v3210 = vpop.f32.mrb[0].mxu0
        %3211 = vdwg.mxu0
        %v3212 = vld [vmem:[#allocation6] sm:$0xf]
        %v3213 = vld [vmem:[#allocation6 + $0x4] sm:$0xf]
        %v3214 = vld [vmem:[#allocation6 + $0x8] sm:$0xf]
        %v3215 = vld [vmem:[#allocation6 + $0xc] sm:$0xf]
        %v3216 = vld [vmem:[#allocation6 + $0x10] sm:$0xf]
        %v3217 = vld [vmem:[#allocation6 + $0x14] sm:$0xf]
        %v3218 = vld [vmem:[#allocation6 + $0x18] sm:$0xf]
        %v3219 = vld [vmem:[#allocation6 + $0x1c] sm:$0xf]
        %v3220 = vld [vmem:[#allocation6 + $0x20] sm:$0xf]
        %v3221 = vld [vmem:[#allocation6 + $0x24] sm:$0xf]
        %v3222 = vld [vmem:[#allocation6 + $0x28] sm:$0xf]
        %v3223 = vld [vmem:[#allocation6 + $0x2c] sm:$0xf]
        %v3224 = vld [vmem:[#allocation6 + $0x30] sm:$0xf]
        %v3225 = vld [vmem:[#allocation6 + $0x34] sm:$0xf]
        %v3226 = vld [vmem:[#allocation6 + $0x38] sm:$0xf]
        %v3227 = vld [vmem:[#allocation6 + $0x3c] sm:$0xf]
        %v3244 = vunpack.c.l.b16 %v3212
        %v3245 = vunpack.c.l.b16 %v3213
        %v3246 = vunpack.c.l.b16 %v3214
        %v3247 = vunpack.c.l.b16 %v3215
        %v3248 = vunpack.c.l.b16 %v3216
        %v3249 = vunpack.c.l.b16 %v3217
        %v3250 = vunpack.c.l.b16 %v3218
        %v3251 = vunpack.c.l.b16 %v3219
        %v3252 = vunpack.c.l.b16 %v3220
        %v3253 = vunpack.c.l.b16 %v3221
        %v3254 = vunpack.c.l.b16 %v3222
        %v3255 = vunpack.c.l.b16 %v3223
        %v3256 = vunpack.c.l.b16 %v3224
        %v3257 = vunpack.c.l.b16 %v3225
        %v3258 = vunpack.c.l.b16 %v3226
        %v3259 = vunpack.c.l.b16 %v3227
        %v3260 = vpack.c.b16 %v3245, %v3244
        %v3261 = vpack.c.b16 %v3247, %v3246
        %v3262 = vpack.c.b16 %v3249, %v3248
        %v3263 = vpack.c.b16 %v3251, %v3250
        %v3264 = vpack.c.b16 %v3253, %v3252
        %v3265 = vpack.c.b16 %v3255, %v3254
        %v3266 = vpack.c.b16 %v3257, %v3256
        %v3267 = vpack.c.b16 %v3259, %v3258
        %3276 = vmatprep.subr.bf16.mxu0 0
        %3277 = vmatpush1.bf16.msra.mxu0 %v3260
        %3278 = vmatprep.subr.bf16.mxu0 0
        %3279 = vmatpush1.bf16.msra.mxu0 %v3261
        %3280 = vmatprep.subr.bf16.mxu0 0
        %3281 = vmatpush1.bf16.msra.mxu0 %v3262
        %3282 = vmatprep.subr.bf16.mxu0 0
        %3283 = vmatpush1.bf16.msra.mxu0 %v3263
        %3284 = vmatprep.subr.bf16.mxu0 0
        %3285 = vmatpush1.bf16.msra.mxu0 %v3264
        %3286 = vmatprep.subr.bf16.mxu0 0
        %3287 = vmatpush1.bf16.msra.mxu0 %v3265
        %3288 = vmatprep.subr.bf16.mxu0 0
        %3289 = vmatpush1.bf16.msra.mxu0 %v3266
        %3290 = vmatprep.subr.bf16.mxu0 0
        %3291 = vmatpush1.bf16.msra.mxu0 %v3267
        %3292 = vmatprep.subr.bf16.mxu0 0
        %3293 = vmatpush1.bf16.msra.mxu0 0
        %3294 = vmatprep.subr.bf16.mxu0 0
        %3295 = vmatpush1.bf16.msra.mxu0 0
        %3296 = vmatprep.subr.bf16.mxu0 0
        %3297 = vmatpush1.bf16.msra.mxu0 0
        %3298 = vmatprep.subr.bf16.mxu0 0
        %3299 = vmatpush1.bf16.msra.mxu0 0
        %3300 = vmatprep.subr.bf16.mxu0 0
        %3301 = vmatpush1.bf16.msra.mxu0 0
        %3302 = vmatprep.subr.bf16.mxu0 0
        %3303 = vmatpush1.bf16.msra.mxu0 0
        %3304 = vmatprep.subr.bf16.mxu0 0
        %3305 = vmatpush1.bf16.msra.mxu0 0
        %3306 = vmatprep.subr.bf16.mxu0 0
        %3307 = vmatpush1.bf16.msra.mxu0 0
        %3308 = vmatprep.mubr.bf16.mxu0 0
        %3309 = vmatmul.mubr.bf16.gmra.mrb[0].mxu0 %v2297
        %v3310 = vpop.f32.mrb[0].mxu0
        %v3311 = vadd.f32 0.0, %v3310
        %v3312 = vpop.f32.mrb[0].mxu0
        %v3313 = vpop.f32.mrb[0].mxu0
        %v3314 = vadd.f32 0.0, %v3313
        %v3315 = vpop.f32.mrb[0].mxu0
        %3316 = vmatprep.mubr.bf16.mxu0 0
        %3317 = vmatmul.mubr.bf16.gmra.mrb[0].mxu0 %v2298
        %v3318 = vpop.f32.mrb[0].mxu0
        %v3319 = vadd.f32 0.0, %v3318
        %v3320 = vpop.f32.mrb[0].mxu0
        %v3321 = vpop.f32.mrb[0].mxu0
        %v3322 = vadd.f32 0.0, %v3321
        %v3323 = vpop.f32.mrb[0].mxu0
        %3324 = vmatprep.mubr.bf16.mxu0 0
        %3325 = vmatmul.mubr.bf16.gmra.mrb[0].mxu0 %v2299
        %v3326 = vpop.f32.mrb[0].mxu0
        %v3327 = vadd.f32 0.0, %v3326
        %v3328 = vpop.f32.mrb[0].mxu0
        %v3329 = vpop.f32.mrb[0].mxu0
        %v3330 = vadd.f32 0.0, %v3329
        %v3331 = vpop.f32.mrb[0].mxu0
        %3332 = vmatprep.mubr.bf16.mxu0 0
        %3333 = vmatmul.mubr.bf16.gmra.mrb[0].mxu0 %v2300
        %v3334 = vpop.f32.mrb[0].mxu0
        %v3335 = vadd.f32 0.0, %v3334
        %v3336 = vpop.f32.mrb[0].mxu0
        %v3337 = vpop.f32.mrb[0].mxu0
        %v3338 = vadd.f32 0.0, %v3337
        %v3339 = vpop.f32.mrb[0].mxu0
        %3340 = vmatprep.mubr.bf16.mxu0 0
        %3341 = vmatmul.mubr.bf16.gmra.mrb[0].mxu0 %v2301
        %v3342 = vpop.f32.mrb[0].mxu0
        %v3343 = vadd.f32 0.0, %v3342
        %v3344 = vpop.f32.mrb[0].mxu0
        %v3345 = vpop.f32.mrb[0].mxu0
        %v3346 = vadd.f32 0.0, %v3345
        %v3347 = vpop.f32.mrb[0].mxu0
        %3348 = vmatprep.mubr.bf16.mxu0 0
        %3349 = vmatmul.mubr.bf16.gmra.mrb[0].mxu0 %v2302
        %v3350 = vpop.f32.mrb[0].mxu0
        %v3351 = vadd.f32 0.0, %v3350
        %v3352 = vpop.f32.mrb[0].mxu0
        %v3353 = vpop.f32.mrb[0].mxu0
        %v3354 = vadd.f32 0.0, %v3353
        %v3355 = vpop.f32.mrb[0].mxu0
        %3356 = vmatprep.mubr.bf16.mxu0 0
        %3357 = vmatmul.mubr.bf16.gmra.mrb[0].mxu0 %v2303
        %v3358 = vpop.f32.mrb[0].mxu0
        %v3359 = vadd.f32 0.0, %v3358
        %v3360 = vpop.f32.mrb[0].mxu0
        %v3361 = vpop.f32.mrb[0].mxu0
        %v3362 = vadd.f32 0.0, %v3361
        %v3363 = vpop.f32.mrb[0].mxu0
        %3364 = vmatprep.mubr.bf16.mxu0 0
        %3365 = vmatmul.mubr.bf16.gmra.mrb[0].mxu0 %v2304
        %v3366 = vpop.f32.mrb[0].mxu0
        %v3367 = vadd.f32 0.0, %v3366
        %v3368 = vpop.f32.mrb[0].mxu0
        %v3369 = vpop.f32.mrb[0].mxu0
        %v3370 = vadd.f32 0.0, %v3369
        %v3371 = vpop.f32.mrb[0].mxu0
        %3372 = vdwg.mxu0
        %v3373 = vadd.f32 %v3150, %v3311
        %v3374 = vadd.f32 %v3153, %v3314
        %v3375 = vadd.f32 %v3158, %v3319
        %v3376 = vadd.f32 %v3161, %v3322
        %v3377 = vadd.f32 %v3166, %v3327
        %v3378 = vadd.f32 %v3169, %v3330
        %v3379 = vadd.f32 %v3174, %v3335
        %v3380 = vadd.f32 %v3177, %v3338
        %v3381 = vadd.f32 %v3182, %v3343
        %v3382 = vadd.f32 %v3185, %v3346
        %v3383 = vadd.f32 %v3190, %v3351
        %v3384 = vadd.f32 %v3193, %v3354
        %v3385 = vadd.f32 %v3198, %v3359
        %v3386 = vadd.f32 %v3201, %v3362
        %v3387 = vadd.f32 %v3206, %v3367
        %v3388 = vadd.f32 %v3209, %v3370
        %3389 = vst [vmem:[%s275] sm:$0xff] %v3373
        %3390 = vst [vmem:[%s275 + $0x8] sm:$0xff] %v3374
        %3391 = vst [vmem:[%s275 + $0x10] sm:$0xff] %v3375
        %3392 = vst [vmem:[%s275 + $0x18] sm:$0xff] %v3376
        %3393 = vst [vmem:[%s275 + $0x20] sm:$0xff] %v3377
        %3394 = vst [vmem:[%s275 + $0x28] sm:$0xff] %v3378
        %3395 = vst [vmem:[%s275 + $0x30] sm:$0xff] %v3379
        %3396 = vst [vmem:[%s275 + $0x38] sm:$0xff] %v3380
        %3397 = vst [vmem:[%s275 + $0x40] sm:$0xff] %v3381
        %3398 = vst [vmem:[%s275 + $0x48] sm:$0xff] %v3382
        %3399 = vst [vmem:[%s275 + $0x50] sm:$0xff] %v3383
        %3400 = vst [vmem:[%s275 + $0x58] sm:$0xff] %v3384
        %3401 = vst [vmem:[%s275 + $0x60] sm:$0xff] %v3385
        %3402 = vst [vmem:[%s275 + $0x68] sm:$0xff] %v3386
        %3403 = vst [vmem:[%s275 + $0x70] sm:$0xff] %v3387
        %3404 = vst [vmem:[%s275 + $0x78] sm:$0xff] %v3388
        %s3405 = sand.u32 %s161, 1
        %s3406 = scalar_lea.sflag [#allocation5], %s3405
        %s3407 = sand.u32 %s161, 1
        %s3408 = smul.addr %s3407, 128
        %s3409 = scalar_lea.vmem [#allocation8], %s3408
        // Predicated region
        $region53: #{tpu_custom_call.1} parent=43 // pred_check
          %p3410 = pneg %p171
        $region54: #{tpu_custom_call.1} parent=43 // pred_check_branch
          %3412 = sbr.rel (%p3410) target = $region56
        $region55: #{tpu_custom_call.1} parent=43 // pred_region
          %s3413 = smul.u32 16, %s22
          %s3415 = ssub.s32 2048, 2048
          %3416 = vsyncadd %s3406, %s3415
          %s3417 = smul.addr %s3413, 128
          %s3418 = scalar_lea.hbm %s6, %s3417
          %s3419 = sshll.u32 %s3409, 4
          %s3420 = int_to_ptr.vmem [resolvable:$true] %s3419
          %3425 = dma.vmem_to_hbm [thread:$0]  %s3420, 2048, %s3418, %s3406, 128, 128, 8
        $region56: #{tpu_custom_call.1} parent=43 // pred_fallthru
          _
      $region44: #{tpu_custom_call.1} parent=5 // pred_fallthru
        _
      %p3426 = scmp.le.s32.totalorder 2, %s17
      // Predicated region
      $region57: #{tpu_custom_call.1} parent=5 // pred_check
        %p3427 = pneg %p3426
      $region58: #{tpu_custom_call.1} parent=5 // pred_check_branch
        %3429 = sbr.rel (%p3427) target = $region60
      $region59: #{tpu_custom_call.1} parent=5 // pred_region
        %s3430 = ssub.s32 %s17, 2
        // Predicated region
        $region61: #{tpu_custom_call.1} parent=59 // pred_check
          %p3431 = pneg %p177
        $region62: #{tpu_custom_call.1} parent=59 // pred_check_branch
          %3433 = sbr.rel (%p3431) target = $region64
        $region63: #{tpu_custom_call.1} parent=59 // pred_region
          %s3434 = sand.u32 %s162, 1
          %s3435 = scalar_lea.sflag [#allocation5], %s3434
          %s3436 = sand.u32 %s162, 1
          %s3437 = smul.addr %s3436, 128
          %s3438 = scalar_lea.vmem [#allocation8], %s3437
          %3439 = dma.done %s3435, 2048
        $region64: #{tpu_custom_call.1} parent=59 // pred_fallthru
          _
      $region60: #{tpu_custom_call.1} parent=5 // pred_fallthru
        _
    $region6: #{tpu_custom_call.1} parent=1 // loop_footer
      %s21 = sadd.s32 1, %s17
    $region7: #{tpu_custom_call.1} parent=1 // loop_footer_branch
      %16 = sbr.rel target = $region3
    $region8: #{tpu_custom_call.1} parent=1 // loop_exit
      _
    %3440 = vsyncpa [#allocation4], 1
    %s3441 = scalar_lea.sflag [#allocation4], 1
    %3442 = vsyncpa %s3441, 1
    %3443 = vsyncpa [#allocation7], 1
    %3444 = vsyncpa [#allocation5], 1
    %s3445 = scalar_lea.sflag [#allocation5], 1
    %3446 = vsyncpa %s3445, 1

</llo_original>
